<compile_context>
chip_gen: v7x
topology: tpu7x:2x2x1
jax: 0.10.0
libtpu: 0.0.40
codegen_flags: <defaults>
</compile_context>

<pallas_src>
import functools
import math

import jax
import jax.numpy as jnp
import numpy as np
from jax import lax
from jax.experimental import pallas as pl
from jax.experimental.pallas import tpu as pltpu


# ----------------------------- Pallas kernels ------------------------------

def _xpath_kernel(xp_ref, w_ref, b_ref, gx_ref):
    # gx = wx @ im2col(x) + (bx + bh [+ wcc_o folded into the o rows]);
    # time is batched into the lane axis: (4ch, 9cin) @ (9cin, tile).
    gx_ref[...] = (jnp.dot(w_ref[...], xp_ref[...],
                           preferred_element_type=jnp.float32) + b_ref[...])


def _fused_lstm_kernel(*refs, chans, shifts):
    """One timestep of the fused multi-layer recurrence (grid axis 0 = time).

    Per layer the 3x3 convs collapse into a single MXU dot against a
    (9*ch, N) tap stack held in VMEM scratch (taps built with pltpu.roll and
    precomputed border masks).  For layers >= 2 the x-side stack (previous
    layer's fresh h) and the recurrent stack are contiguous rows of the same
    scratch, so conv_x + conv_h is one fat-K matmul.  The final 1x1 conv over
    cat(h_L, c_L) runs only at the last step into a resident output block.
    """
    L = len(chans)
    it = iter(refs)
    gx_ref = next(it)                               # (4*ch0, N) f32, per-t block
    mask_ref = next(it)                             # (9, chmax, N) f32, resident
    w_refs = [next(it) for _ in range(L)]           # bf16 fused conv weights
    wcc_refs = [next(it) for _ in range(L)]         # (2, ch, N) f32 peepholes
    bias_refs = [next(it) for _ in range(L - 1)]    # (4ch, N) f32, layers >= 2
    outw_ref = next(it)                             # (3, 2*ch_last) bf16
    outb_ref = next(it)                             # (3, 1) f32
    out_ref = next(it)                              # (3, N) f32 output, resident
    stack_ref = next(it)                            # (9*sum(ch), N) f32 scratch
    c_ref = next(it)                                # (sum(ch), N) f32 scratch

    t = pl.program_id(0)

    @pl.when(t == 0)
    def _init():
        stack_ref[...] = jnp.zeros_like(stack_ref)
        c_ref[...] = jnp.zeros_like(c_ref)

    soff = [9 * sum(chans[:l]) for l in range(L + 1)]
    coff = [sum(chans[:l]) for l in range(L + 1)]

    h_last = None
    c_last = None
    for l, ch in enumerate(chans):
        # Gate pre-activations: one fused bf16 MXU dot per layer per step.
        if l == 0:
            operand = stack_ref[soff[0]:soff[1], :]           # taps(h1_{t-1})
            g = gx_ref[...] + jnp.dot(w_refs[0][...],
                                      operand.astype(jnp.bfloat16),
                                      preferred_element_type=jnp.float32)
        else:
            # [taps(h_{l-1,t}) ; taps(h_{l,t-1})] -- contiguous scratch rows.
            operand = stack_ref[soff[l - 1]:soff[l + 1], :]
            g = bias_refs[l - 1][...] + jnp.dot(w_refs[l][...],
                                                operand.astype(jnp.bfloat16),
                                                preferred_element_type=jnp.float32)

        c_prev = c_ref[coff[l]:coff[l + 1], :]
        gi = g[0 * ch:1 * ch]                  # sublane-aligned gate slices
        gf = g[1 * ch:2 * ch]
        gc = g[2 * ch:3 * ch]
        go = g[3 * ch:4 * ch]
        i = jax.nn.sigmoid(gi + wcc_refs[l][0] * c_prev)
        f = jax.nn.sigmoid(gf + wcc_refs[l][1] * c_prev)
        c_new = f * c_prev + i * jnp.tanh(gc)
        o = jax.nn.sigmoid(go)                 # wcc[2] already folded into gx/bias
        h_new = o * jnp.tanh(c_new)
        c_ref[coff[l]:coff[l + 1], :] = c_new

        # Refresh this layer's tap stack with the new h (consumed by the next
        # layer's x-side conv this step and by this layer at the next step).
        base = soff[l]
        for tap, shift in enumerate(shifts):
            r0 = base + tap * ch
            if shift == 0:                     # center tap: no roll, no mask
                stack_ref[r0:r0 + ch, :] = h_new
            else:
                stack_ref[r0:r0 + ch, :] = (pltpu.roll(h_new, shift, axis=1)
                                            * mask_ref[tap, :ch, :])
        h_last = h_new
        c_last = c_new

    @pl.when(t == pl.num_programs(0) - 1)
    def _final():
        hc = jnp.concatenate([h_last.astype(jnp.bfloat16),
                              c_last.astype(jnp.bfloat16)], axis=0)
        out_ref[...] = (jnp.dot(outw_ref[...], hc,
                                preferred_element_type=jnp.float32)
                        + outb_ref[...])


# ------------------------------ Pallas wrappers -----------------------------

def _xpath(patches, wx, bias_big):
    k, tn = patches.shape
    co = wx.shape[0]
    tile = tn // 2 if (tn % 256 == 0 and tn >= 512) else tn   # >=2 parallel steps
    return pl.pallas_call(
        _xpath_kernel,
        out_shape=jax.ShapeDtypeStruct((co, tn), jnp.float32),
        grid_spec=pl.GridSpec(
            grid=(tn // tile,),
            in_specs=[
                pl.BlockSpec((k, tile), lambda i: (0, i)),
                pl.BlockSpec((co, k), lambda i: (0, 0)),
                pl.BlockSpec((co, tile), lambda i: (0, i)),
            ],
            out_specs=pl.BlockSpec((co, tile), lambda i: (0, i)),
        ),
        compiler_params=pltpu.CompilerParams(dimension_semantics=("parallel",)),
    )(patches, wx, bias_big)


def _fused_recurrence(gx, masks, ws, wccs, biases, out_w, out_b,
                      *, chans, W, n, T):
    # lane shift of each 3x3 tap: y[:, p] = h[:, (p + (dh-1)*W + (dw-1)) mod n]
    shifts = tuple((-((dh - 1) * W + (dw - 1))) % n
                   for dh in range(3) for dw in range(3))
    kernel = functools.partial(_fused_lstm_kernel, chans=chans, shifts=shifts)
    ksum = 9 * sum(chans)
    csum = sum(chans)
    ch0 = chans[0]

    in_specs = [pl.BlockSpec((4 * ch0, n), lambda t: (0, t)),     # gx_t per step
                pl.BlockSpec(masks.shape, lambda t: (0, 0, 0))]   # masks resident
    in_specs += [pl.BlockSpec(w.shape, lambda t: (0, 0)) for w in ws]
    in_specs += [pl.BlockSpec(wc.shape, lambda t: (0, 0, 0)) for wc in wccs]
    in_specs += [pl.BlockSpec(b.shape, lambda t: (0, 0)) for b in biases]
    in_specs += [pl.BlockSpec(out_w.shape, lambda t: (0, 0)),
                 pl.BlockSpec(out_b.shape, lambda t: (0, 0))]

    return pl.pallas_call(
        kernel,
        out_shape=jax.ShapeDtypeStruct((3, n), jnp.float32),
        grid_spec=pltpu.PrefetchScalarGridSpec(
            num_scalar_prefetch=0,
            grid=(T,),
            in_specs=in_specs,
            out_specs=pl.BlockSpec((3, n), lambda t: (0, 0)),
            scratch_shapes=[pltpu.VMEM((ksum, n), jnp.float32),   # tap stacks
                            pltpu.VMEM((csum, n), jnp.float32)],  # c state
        ),
        compiler_params=pltpu.CompilerParams(
            dimension_semantics=("arbitrary",)),   # sequential time recurrence
    )(gx, masks, *ws, *wccs, *biases, out_w, out_b)


# -------------------------------- JAX glue ----------------------------------

def _im2col_taps(seq):
    """(T, C, B, H, W) zero-padded 3x3 patches -> (T, 9*C, B*H*W), tap-major."""
    t, c, b, h, w = seq.shape
    xp = jnp.pad(seq, ((0, 0), (0, 0), (0, 0), (1, 1), (1, 1)))
    taps = [xp[:, :, :, dh:dh + h, dw:dw + w]
            for dh in range(3) for dw in range(3)]
    return jnp.concatenate(taps, axis=1).reshape(t, 9 * c, b * h * w)


def _border_masks(B, H, W, chmax):
    """(9, chmax, B*H*W) f32: 1 where the tap's source pixel is inside the image."""
    p = np.arange(H * W)
    y, x = p // W, p % W
    rows = []
    for dh in range(3):
        for dw in range(3):
            yy, xx = y + dh - 1, x + dw - 1
            m = ((yy >= 0) & (yy < H) & (xx >= 0) & (xx < W)).astype(np.float32)
            rows.append(np.tile(m, B))
    m9 = np.broadcast_to(np.stack(rows)[:, None, :], (9, chmax, B * H * W))
    return jnp.asarray(np.ascontiguousarray(m9), dtype=jnp.float32)


def _gate_bias(p, ch, wcc_o, n):
    """(4ch, n) f32: (bx + bh) broadcast over pixels, wcc[2] folded into o rows."""
    b = (p["bx"] + p["bh"]).reshape(-1, 1).astype(jnp.float32)
    return jnp.concatenate([jnp.broadcast_to(b[:3 * ch], (3 * ch, n)),
                            b[3 * ch:] + wcc_o], axis=0)


@functools.partial(jax.jit, static_argnames=("hidden_channels",))
def conv_lstm_forward(x, cells, out_w, out_b, *, hidden_channels):
    """x: (B, T, Cin, H, W).  Returns (3, H, W) when B == 1 (torch squeeze(0))."""
    B, T, Cin, H, W = x.shape
    n = B * H * W
    chans = tuple(hidden_channels)
    chmax = max(chans)

    # ---- layer-1 x path: one matmul with time batched into the lane axis ----
    seq = jnp.transpose(x.astype(jnp.float32), (1, 2, 0, 3, 4))    # (T, Cin, B, H, W)
    patches = _im2col_taps(seq)                                    # (T, 9Cin, N)
    patches = (jnp.transpose(patches, (1, 0, 2))
               .reshape(9 * Cin, T * n).astype(jnp.bfloat16))      # (9Cin, T*N)

    p0 = cells[0]
    ch0 = chans[0]
    wcc0_o = jnp.tile(p0["wcc"][2].reshape(ch0, H * W), (1, B))    # (ch0, N)
    bias_big = jnp.tile(_gate_bias(p0, ch0, wcc0_o, n), (1, T))    # (4ch0, T*N)
    gx = _xpath(patches, p0["wx"].astype(jnp.bfloat16), bias_big)  # (4ch0, T*N) f32

    # ---- per-layer resident params for the fused recurrence ----
    masks = _border_masks(B, H, W, chmax)                          # (9, chmax, N)
    ws, wccs, biases = [], [], []
    for li, ch in enumerate(chans):
        p = cells[li]
        w = p["wh"] if li == 0 else jnp.concatenate([p["wx"], p["wh"]], axis=1)
        ws.append(w.astype(jnp.bfloat16))
        wccs.append(jnp.tile(p["wcc"][:2].reshape(2, ch, H * W),
                             (1, 1, B)).astype(jnp.float32))
        if li > 0:
            wcc_o = jnp.tile(p["wcc"][2].reshape(ch, H * W), (1, B))
            biases.append(_gate_bias(p, ch, wcc_o, n))

    out = _fused_recurrence(gx, masks, ws, wccs, biases,
                            out_w.astype(jnp.bfloat16),
                            out_b.reshape(-1, 1).astype(jnp.float32),
                            chans=chans, W=W, n=n, T=T)            # (3, N)
    out = out.reshape(-1, B, H, W).transpose(1, 0, 2, 3)           # (B, 3, H, W)
    return out[0] if B == 1 else out


# ------------------------ deterministic parameter init ----------------------

def init_params(key, in_channel, hidden_channels, H, W):
    """uniform(-1/sqrt(ch), 1/sqrt(ch)), like ConvLSTMCell.reset_parameters()."""
    cells = []
    cin = in_channel
    for ch in hidden_channels:
        stdv = 1.0 / math.sqrt(ch)
        key, k1, k2, k3, k4, k5 = jax.random.split(key, 6)
        u = lambda k, shape: jax.random.uniform(k, shape, jnp.float32, -stdv, stdv)
        cells.append(dict(
            wx=u(k1, (4 * ch, 9 * cin)),    # conv_x weight, [cout, tap*cin + ci]
            bx=u(k2, (4 * ch,)),
            wh=u(k3, (4 * ch, 9 * ch)),     # conv_h weight
            bh=u(k4, (4 * ch,)),
            wcc=u(k5, (3, ch, H, W)),       # peephole w_cc
        ))
        cin = ch
    fan_in = 2 * hidden_channels[-1]        # top-level Conv2d(64, 3, kernel_size=1)
    stdv_o = 1.0 / math.sqrt(fan_in)
    key, k1, k2 = jax.random.split(key, 3)
    out_w = jax.random.uniform(k1, (3, fan_in), jnp.float32, -stdv_o, stdv_o)
    out_b = jax.random.uniform(k2, (3,), jnp.float32, -stdv_o, stdv_o)
    return cells, out_w, out_b


# --------------------------- pure-JAX reference ------------------------------

def _ref_conv(x, w_flat, b, cin, cout):
    w = w_flat.reshape(cout, 3, 3, cin).transpose(0, 3, 1, 2)      # OIHW
    y = lax.conv_general_dilated(x, w, (1, 1), "SAME",
                                 dimension_numbers=("NCHW", "OIHW", "NCHW"))
    return y + b.reshape(1, -1, 1, 1)


def ref_forward(x, cells, out_w, out_b, hidden_channels):
    B, T, Cin, H, W = x.shape
    seq = [x[:, t].astype(jnp.float32) for t in range(T)]
    cin = Cin
    h = c = None
    for li, ch in enumerate(hidden_channels):
        p = cells[li]
        h = jnp.zeros((B, ch, H, W), jnp.float32)
        c = jnp.zeros((B, ch, H, W), jnp.float32)
        outs = []
        for t in range(T):
            g = (_ref_conv(seq[t], p["wx"], p["bx"], cin, 4 * ch)
                 + _ref_conv(h, p["wh"], p["bh"], ch, 4 * ch))
            gi, gf, gc, go = jnp.split(g, 4, axis=1)
            i = jax.nn.sigmoid(gi + p["wcc"][0] * c)
            f = jax.nn.sigmoid(gf + p["wcc"][1] * c)
            c = f * c + i * jnp.tanh(gc)
            o = jax.nn.sigmoid(go + p["wcc"][2])
            h = o * jnp.tanh(c)
            outs.append(h)
        seq = outs
        cin = ch
    hc = jnp.concatenate([h, c], axis=1)                           # (B, 2*ch, H, W)
    out = jnp.einsum("oc,bchw->bohw", out_w, hc) + out_b.reshape(1, -1, 1, 1)
    return out[0] if B == 1 else out


# ----------------------------------- main ------------------------------------

if __name__ == "__main__":
    B, T, CIN, H, W = 1, 4, 4, 16, 16
    HIDDEN = (8, 32)   # last hidden must be 32 so cat([h, c]) has 64 chans for the 1x1 conv

    key = jax.random.PRNGKey(0)
    key, kx, kp = jax.random.split(key, 3)
    x = jax.random.normal(kx, (B, T, CIN, H, W), jnp.float32)
    cells, out_w, out_b = init_params(kp, CIN, HIDDEN, H, W)

    out = conv_lstm_forward(x, cells, out_w, out_b, hidden_channels=HIDDEN)
    out = jax.block_until_ready(out)

    ref = jax.block_until_ready(ref_forward(x, cells, out_w, out_b, HIDDEN))
    assert out.shape == (3, H, W), out.shape
    # bf16 MXU operands vs an all-f32 reference -> modest tolerance.
    err = float(jnp.max(jnp.abs(out - ref)))
    assert jnp.allclose(out, ref, rtol=2e-2, atol=2e-2), err

    print("KERNEL_OK")
</pallas_src>

<mosaic_0001>
module attributes {stable_mosaic.version = 11 : i64} {
  func.func @_xpath_kernel(%arg0: i32, %arg1: memref<36x512xbf16, #tpu.memory_space<vmem>>, %arg2: memref<32x36xbf16, #tpu.memory_space<vmem>>, %arg3: memref<32x512xf32, #tpu.memory_space<vmem>>, %arg4: memref<32x512xf32, #tpu.memory_space<vmem>>) attributes {dimension_semantics = [#tpu.dimension_semantics<parallel>], iteration_bounds = array<i64: 2>, scalar_prefetch = 0 : i64, scratch_operands = 0 : i64, tpu.core_type = #tpu.core_type<tc>, window_params = [{transform_indices = @transform_0, window_bounds = array<i64: 36, 512>}, {pipeline_mode = #tpu.pipeline_mode<synchronous>, transform_indices = @transform_1, window_bounds = array<i64: 32, 36>}, {transform_indices = @transform_2, window_bounds = array<i64: 32, 512>}, {transform_indices = @transform_3, window_bounds = array<i64: 32, 512>}]} {
    %c0 = arith.constant 0 : index
    %c0_0 = arith.constant 0 : index
    %0 = vector.load %arg2[%c0, %c0_0] : memref<32x36xbf16, #tpu.memory_space<vmem>>, vector<32x36xbf16>
    %c0_1 = arith.constant 0 : index
    %c0_2 = arith.constant 0 : index
    %1 = vector.load %arg1[%c0_1, %c0_2] : memref<36x512xbf16, #tpu.memory_space<vmem>>, vector<36x512xbf16>
    %cst = arith.constant dense<0.000000e+00> : vector<32x512xf32>
    %2 = tpu.matmul %0, %1, %cst {dimension_numbers = #tpu.dot_dimension_numbers<[1], [0], [0], [1], [0, 0, 1, 1], [], []>} : vector<32x36xbf16>, vector<36x512xbf16>, vector<32x512xf32> -> vector<32x512xf32>
    %c0_3 = arith.constant 0 : index
    %c0_4 = arith.constant 0 : index
    %3 = vector.load %arg3[%c0_3, %c0_4] : memref<32x512xf32, #tpu.memory_space<vmem>>, vector<32x512xf32>
    %4 = arith.addf %2, %3 : vector<32x512xf32>
    %c0_5 = arith.constant 0 : index
    %c0_6 = arith.constant 0 : index
    %5 = vector.load %arg4[%c0_5, %c0_6] : memref<32x512xf32, #tpu.memory_space<vmem>>, vector<32x512xf32>
    tpu.vector_store %arg4[%c0_5, %c0_6], %4 {strides = array<i32>} : memref<32x512xf32, #tpu.memory_space<vmem>>, vector<32x512xf32>,
    return
  }
  func.func @transform_0(%arg0: i32) -> (i32, i32) {
    %c0_i32 = arith.constant 0 : i32
    %c0_i32_0 = arith.constant 0 : i32
    return %c0_i32, %arg0 : i32, i32
  }
  func.func @transform_1(%arg0: i32) -> (i32, i32) {
    %c0_i32 = arith.constant 0 : i32
    %c0_i32_0 = arith.constant 0 : i32
    %c0_i32_1 = arith.constant 0 : i32
    return %c0_i32, %c0_i32_0 : i32, i32
  }
  func.func @transform_2(%arg0: i32) -> (i32, i32) {
    %c0_i32 = arith.constant 0 : i32
    %c0_i32_0 = arith.constant 0 : i32
    return %c0_i32, %arg0 : i32, i32
  }
  func.func @transform_3(%arg0: i32) -> (i32, i32) {
    %c0_i32 = arith.constant 0 : i32
    %c0_i32_0 = arith.constant 0 : i32
    return %c0_i32, %arg0 : i32, i32
  }
}

module attributes {stable_mosaic.version = 11 : i64} {
  func.func @_fused_lstm_kernel(%arg0: i32, %arg1: memref<32x256xf32, #tpu.memory_space<vmem>>, %arg2: memref<9x32x256xf32, #tpu.memory_space<vmem>>, %arg3: memref<32x72xbf16, #tpu.memory_space<vmem>>, %arg4: memref<128x360xbf16, #tpu.memory_space<vmem>>, %arg5: memref<2x8x256xf32, #tpu.memory_space<vmem>>, %arg6: memref<2x32x256xf32, #tpu.memory_space<vmem>>, %arg7: memref<128x256xf32, #tpu.memory_space<vmem>>, %arg8: memref<3x64xbf16, #tpu.memory_space<vmem>>, %arg9: memref<3x1xf32, #tpu.memory_space<vmem>>, %arg10: memref<3x256xf32, #tpu.memory_space<vmem>>, %arg11: memref<360x256xf32, #tpu.memory_space<vmem>>, %arg12: memref<40x256xf32, #tpu.memory_space<vmem>>) attributes {dimension_semantics = [#tpu.dimension_semantics<arbitrary>], iteration_bounds = array<i64: 4>, scalar_prefetch = 0 : i64, scratch_operands = 2 : i64, tpu.core_type = #tpu.core_type<tc>, window_params = [{transform_indices = @transform_0, window_bounds = array<i64: 32, 256>}, {pipeline_mode = #tpu.pipeline_mode<synchronous>, transform_indices = @transform_1, window_bounds = array<i64: 9, 32, 256>}, {pipeline_mode = #tpu.pipeline_mode<synchronous>, transform_indices = @transform_2, window_bounds = array<i64: 32, 72>}, {pipeline_mode = #tpu.pipeline_mode<synchronous>, transform_indices = @transform_3, window_bounds = array<i64: 128, 360>}, {pipeline_mode = #tpu.pipeline_mode<synchronous>, transform_indices = @transform_4, window_bounds = array<i64: 2, 8, 256>}, {pipeline_mode = #tpu.pipeline_mode<synchronous>, transform_indices = @transform_5, window_bounds = array<i64: 2, 32, 256>}, {pipeline_mode = #tpu.pipeline_mode<synchronous>, transform_indices = @transform_6, window_bounds = array<i64: 128, 256>}, {pipeline_mode = #tpu.pipeline_mode<synchronous>, transform_indices = @transform_7, window_bounds = array<i64: 3, 64>}, {pipeline_mode = #tpu.pipeline_mode<synchronous>, transform_indices = @transform_8, window_bounds = array<i64: 3, 1>}, {pipeline_mode = #tpu.pipeline_mode<synchronous>, transform_indices = @transform_9, window_bounds = array<i64: 3, 256>}]} {
    %c0_i32 = arith.constant 0 : i32
    %0 = arith.cmpi eq, %arg0, %c0_i32 : i32
    %1 = arith.extui %0 : i1 to i32
    %c0_i32_0 = arith.constant 0 : i32
    %2 = arith.cmpi ne, %1, %c0_i32_0 : i32
    scf.if %2 {
      %cst_109 = arith.constant 0.000000e+00 : f32
      %170 = vector.broadcast %cst_109 : f32 to vector<360x256xf32>
      %c0_110 = arith.constant 0 : index
      %c0_111 = arith.constant 0 : index
      %171 = vector.load %arg11[%c0_110, %c0_111] : memref<360x256xf32, #tpu.memory_space<vmem>>, vector<360x256xf32>
      tpu.vector_store %arg11[%c0_110, %c0_111], %170 {strides = array<i32>} : memref<360x256xf32, #tpu.memory_space<vmem>>, vector<360x256xf32>,
      %cst_112 = arith.constant 0.000000e+00 : f32
      %172 = vector.broadcast %cst_112 : f32 to vector<40x256xf32>
      %c0_113 = arith.constant 0 : index
      %c0_114 = arith.constant 0 : index
      %173 = vector.load %arg12[%c0_113, %c0_114] : memref<40x256xf32, #tpu.memory_space<vmem>>, vector<40x256xf32>
      tpu.vector_store %arg12[%c0_113, %c0_114], %172 {strides = array<i32>} : memref<40x256xf32, #tpu.memory_space<vmem>>, vector<40x256xf32>,
    } else {
    }
    %c0 = arith.constant 0 : index
    %c0_1 = arith.constant 0 : index
    %3 = vector.load %arg11[%c0, %c0_1] : memref<360x256xf32, #tpu.memory_space<vmem>>, vector<72x256xf32>
    %c0_2 = arith.constant 0 : index
    %c0_3 = arith.constant 0 : index
    %4 = vector.load %arg1[%c0_2, %c0_3] : memref<32x256xf32, #tpu.memory_space<vmem>>, vector<32x256xf32>
    %c0_4 = arith.constant 0 : index
    %c0_5 = arith.constant 0 : index
    %5 = vector.load %arg3[%c0_4, %c0_5] : memref<32x72xbf16, #tpu.memory_space<vmem>>, vector<32x72xbf16>
    %6 = arith.truncf %3 : vector<72x256xf32> to vector<72x256xbf16>
    %cst = arith.constant dense<0.000000e+00> : vector<32x256xf32>
    %7 = tpu.matmul %5, %6, %cst {dimension_numbers = #tpu.dot_dimension_numbers<[1], [0], [0], [1], [0, 0, 1, 1], [], []>} : vector<32x72xbf16>, vector<72x256xbf16>, vector<32x256xf32> -> vector<32x256xf32>
    %8 = arith.addf %4, %7 : vector<32x256xf32>
    %c0_6 = arith.constant 0 : index
    %c0_7 = arith.constant 0 : index
    %9 = vector.load %arg12[%c0_6, %c0_7] : memref<40x256xf32, #tpu.memory_space<vmem>>, vector<8x256xf32>
    %10 = vector.extract_strided_slice %8 {offsets = [0, 0], sizes = [8, 256], strides = [1, 1]} : vector<32x256xf32> to vector<8x256xf32>
    %11 = vector.extract_strided_slice %8 {offsets = [8, 0], sizes = [8, 256], strides = [1, 1]} : vector<32x256xf32> to vector<8x256xf32>
    %12 = vector.extract_strided_slice %8 {offsets = [16, 0], sizes = [8, 256], strides = [1, 1]} : vector<32x256xf32> to vector<8x256xf32>
    %13 = vector.extract_strided_slice %8 {offsets = [24, 0], sizes = [8, 256], strides = [1, 1]} : vector<32x256xf32> to vector<8x256xf32>
    %c0_8 = arith.constant 0 : index
    %c0_9 = arith.constant 0 : index
    %c0_10 = arith.constant 0 : index
    %14 = vector.load %arg5[%c0_8, %c0_9, %c0_10] : memref<2x8x256xf32, #tpu.memory_space<vmem>>, vector<1x8x256xf32>
    %15 = vector.shape_cast %14 : vector<1x8x256xf32> to vector<8x256xf32>
    %16 = arith.mulf %15, %9 : vector<8x256xf32>
    %17 = arith.addf %10, %16 : vector<8x256xf32>
    %18 = arith.negf %17 : vector<8x256xf32>
    %19 = math.exp %18 : vector<8x256xf32>
    %cst_11 = arith.constant 1.000000e+00 : f32
    %20 = vector.broadcast %cst_11 : f32 to vector<8x256xf32>
    %21 = arith.addf %20, %19 : vector<8x256xf32>
    %22 = arith.divf %20, %21 : vector<8x256xf32>
    %c1 = arith.constant 1 : index
    %c0_12 = arith.constant 0 : index
    %c0_13 = arith.constant 0 : index
    %23 = vector.load %arg5[%c1, %c0_12, %c0_13] : memref<2x8x256xf32, #tpu.memory_space<vmem>>, vector<1x8x256xf32>
    %24 = vector.shape_cast %23 : vector<1x8x256xf32> to vector<8x256xf32>
    %25 = arith.mulf %24, %9 : vector<8x256xf32>
    %26 = arith.addf %11, %25 : vector<8x256xf32>
    %27 = arith.negf %26 : vector<8x256xf32>
    %28 = math.exp %27 : vector<8x256xf32>
    %cst_14 = arith.constant 1.000000e+00 : f32
    %29 = vector.broadcast %cst_14 : f32 to vector<8x256xf32>
    %30 = arith.addf %29, %28 : vector<8x256xf32>
    %31 = arith.divf %29, %30 : vector<8x256xf32>
    %32 = arith.mulf %31, %9 : vector<8x256xf32>
    %33 = math.tanh %12 : vector<8x256xf32>
    %34 = arith.mulf %22, %33 : vector<8x256xf32>
    %35 = arith.addf %32, %34 : vector<8x256xf32>
    %36 = arith.negf %13 : vector<8x256xf32>
    %37 = math.exp %36 : vector<8x256xf32>
    %cst_15 = arith.constant 1.000000e+00 : f32
    %38 = vector.broadcast %cst_15 : f32 to vector<8x256xf32>
    %39 = arith.addf %38, %37 : vector<8x256xf32>
    %40 = arith.divf %38, %39 : vector<8x256xf32>
    %41 = math.tanh %35 : vector<8x256xf32>
    %42 = arith.mulf %40, %41 : vector<8x256xf32>
    %c0_16 = arith.constant 0 : index
    %c0_17 = arith.constant 0 : index
    %43 = vector.load %arg12[%c0_16, %c0_17] : memref<40x256xf32, #tpu.memory_space<vmem>>, vector<8x256xf32>
    tpu.vector_store %arg12[%c0_16, %c0_17], %35 {strides = array<i32>} : memref<40x256xf32, #tpu.memory_space<vmem>>, vector<8x256xf32>,
    %c17_i32 = arith.constant 17 : i32
    %44 = tpu.dynamic_rotate %42 by %c17_i32 dim 1 : vector<8x256xf32>, i32 -> vector<8x256xf32>
    %c0_18 = arith.constant 0 : index
    %c0_19 = arith.constant 0 : index
    %c0_20 = arith.constant 0 : index
    %45 = vector.load %arg2[%c0_18, %c0_19, %c0_20] : memref<9x32x256xf32, #tpu.memory_space<vmem>>, vector<1x8x256xf32>
    %46 = vector.shape_cast %45 : vector<1x8x256xf32> to vector<8x256xf32>
    %47 = arith.mulf %44, %46 : vector<8x256xf32>
    %c0_21 = arith.constant 0 : index
    %c0_22 = arith.constant 0 : index
    %48 = vector.load %arg11[%c0_21, %c0_22] : memref<360x256xf32, #tpu.memory_space<vmem>>, vector<8x256xf32>
    tpu.vector_store %arg11[%c0_21, %c0_22], %47 {strides = array<i32>} : memref<360x256xf32, #tpu.memory_space<vmem>>, vector<8x256xf32>,
    %c16_i32 = arith.constant 16 : i32
    %49 = tpu.dynamic_rotate %42 by %c16_i32 dim 1 : vector<8x256xf32>, i32 -> vector<8x256xf32>
    %c1_23 = arith.constant 1 : index
    %c0_24 = arith.constant 0 : index
    %c0_25 = arith.constant 0 : index
    %50 = vector.load %arg2[%c1_23, %c0_24, %c0_25] : memref<9x32x256xf32, #tpu.memory_space<vmem>>, vector<1x8x256xf32>
    %51 = vector.shape_cast %50 : vector<1x8x256xf32> to vector<8x256xf32>
    %52 = arith.mulf %49, %51 : vector<8x256xf32>
    %c8 = arith.constant 8 : index
    %c0_26 = arith.constant 0 : index
    %53 = vector.load %arg11[%c8, %c0_26] : memref<360x256xf32, #tpu.memory_space<vmem>>, vector<8x256xf32>
    tpu.vector_store %arg11[%c8, %c0_26], %52 {strides = array<i32>} : memref<360x256xf32, #tpu.memory_space<vmem>>, vector<8x256xf32>,
    %c15_i32 = arith.constant 15 : i32
    %54 = tpu.dynamic_rotate %42 by %c15_i32 dim 1 : vector<8x256xf32>, i32 -> vector<8x256xf32>
    %c2 = arith.constant 2 : index
    %c0_27 = arith.constant 0 : index
    %c0_28 = arith.constant 0 : index
    %55 = vector.load %arg2[%c2, %c0_27, %c0_28] : memref<9x32x256xf32, #tpu.memory_space<vmem>>, vector<1x8x256xf32>
    %56 = vector.shape_cast %55 : vector<1x8x256xf32> to vector<8x256xf32>
    %57 = arith.mulf %54, %56 : vector<8x256xf32>
    %c16 = arith.constant 16 : index
    %c0_29 = arith.constant 0 : index
    %58 = vector.load %arg11[%c16, %c0_29] : memref<360x256xf32, #tpu.memory_space<vmem>>, vector<8x256xf32>
    tpu.vector_store %arg11[%c16, %c0_29], %57 {strides = array<i32>} : memref<360x256xf32, #tpu.memory_space<vmem>>, vector<8x256xf32>,
    %c1_i32 = arith.constant 1 : i32
    %59 = tpu.dynamic_rotate %42 by %c1_i32 dim 1 : vector<8x256xf32>, i32 -> vector<8x256xf32>
    %c3 = arith.constant 3 : index
    %c0_30 = arith.constant 0 : index
    %c0_31 = arith.constant 0 : index
    %60 = vector.load %arg2[%c3, %c0_30, %c0_31] : memref<9x32x256xf32, #tpu.memory_space<vmem>>, vector<1x8x256xf32>
    %61 = vector.shape_cast %60 : vector<1x8x256xf32> to vector<8x256xf32>
    %62 = arith.mulf %59, %61 : vector<8x256xf32>
    %c24 = arith.constant 24 : index
    %c0_32 = arith.constant 0 : index
    %63 = vector.load %arg11[%c24, %c0_32] : memref<360x256xf32, #tpu.memory_space<vmem>>, vector<8x256xf32>
    tpu.vector_store %arg11[%c24, %c0_32], %62 {strides = array<i32>} : memref<360x256xf32, #tpu.memory_space<vmem>>, vector<8x256xf32>,
    %c32 = arith.constant 32 : index
    %c0_33 = arith.constant 0 : index
    %64 = vector.load %arg11[%c32, %c0_33] : memref<360x256xf32, #tpu.memory_space<vmem>>, vector<8x256xf32>
    tpu.vector_store %arg11[%c32, %c0_33], %42 {strides = array<i32>} : memref<360x256xf32, #tpu.memory_space<vmem>>, vector<8x256xf32>,
    %c255_i32 = arith.constant 255 : i32
    %65 = tpu.dynamic_rotate %42 by %c255_i32 dim 1 : vector<8x256xf32>, i32 -> vector<8x256xf32>
    %c5 = arith.constant 5 : index
    %c0_34 = arith.constant 0 : index
    %c0_35 = arith.constant 0 : index
    %66 = vector.load %arg2[%c5, %c0_34, %c0_35] : memref<9x32x256xf32, #tpu.memory_space<vmem>>, vector<1x8x256xf32>
    %67 = vector.shape_cast %66 : vector<1x8x256xf32> to vector<8x256xf32>
    %68 = arith.mulf %65, %67 : vector<8x256xf32>
    %c40 = arith.constant 40 : index
    %c0_36 = arith.constant 0 : index
    %69 = vector.load %arg11[%c40, %c0_36] : memref<360x256xf32, #tpu.memory_space<vmem>>, vector<8x256xf32>
    tpu.vector_store %arg11[%c40, %c0_36], %68 {strides = array<i32>} : memref<360x256xf32, #tpu.memory_space<vmem>>, vector<8x256xf32>,
    %c241_i32 = arith.constant 241 : i32
    %70 = tpu.dynamic_rotate %42 by %c241_i32 dim 1 : vector<8x256xf32>, i32 -> vector<8x256xf32>
    %c6 = arith.constant 6 : index
    %c0_37 = arith.constant 0 : index
    %c0_38 = arith.constant 0 : index
    %71 = vector.load %arg2[%c6, %c0_37, %c0_38] : memref<9x32x256xf32, #tpu.memory_space<vmem>>, vector<1x8x256xf32>
    %72 = vector.shape_cast %71 : vector<1x8x256xf32> to vector<8x256xf32>
    %73 = arith.mulf %70, %72 : vector<8x256xf32>
    %c48 = arith.constant 48 : index
    %c0_39 = arith.constant 0 : index
    %74 = vector.load %arg11[%c48, %c0_39] : memref<360x256xf32, #tpu.memory_space<vmem>>, vector<8x256xf32>
    tpu.vector_store %arg11[%c48, %c0_39], %73 {strides = array<i32>} : memref<360x256xf32, #tpu.memory_space<vmem>>, vector<8x256xf32>,
    %c240_i32 = arith.constant 240 : i32
    %75 = tpu.dynamic_rotate %42 by %c240_i32 dim 1 : vector<8x256xf32>, i32 -> vector<8x256xf32>
    %c7 = arith.constant 7 : index
    %c0_40 = arith.constant 0 : index
    %c0_41 = arith.constant 0 : index
    %76 = vector.load %arg2[%c7, %c0_40, %c0_41] : memref<9x32x256xf32, #tpu.memory_space<vmem>>, vector<1x8x256xf32>
    %77 = vector.shape_cast %76 : vector<1x8x256xf32> to vector<8x256xf32>
    %78 = arith.mulf %75, %77 : vector<8x256xf32>
    %c56 = arith.constant 56 : index
    %c0_42 = arith.constant 0 : index
    %79 = vector.load %arg11[%c56, %c0_42] : memref<360x256xf32, #tpu.memory_space<vmem>>, vector<8x256xf32>
    tpu.vector_store %arg11[%c56, %c0_42], %78 {strides = array<i32>} : memref<360x256xf32, #tpu.memory_space<vmem>>, vector<8x256xf32>,
    %c239_i32 = arith.constant 239 : i32
    %80 = tpu.dynamic_rotate %42 by %c239_i32 dim 1 : vector<8x256xf32>, i32 -> vector<8x256xf32>
    %c8_43 = arith.constant 8 : index
    %c0_44 = arith.constant 0 : index
    %c0_45 = arith.constant 0 : index
    %81 = vector.load %arg2[%c8_43, %c0_44, %c0_45] : memref<9x32x256xf32, #tpu.memory_space<vmem>>, vector<1x8x256xf32>
    %82 = vector.shape_cast %81 : vector<1x8x256xf32> to vector<8x256xf32>
    %83 = arith.mulf %80, %82 : vector<8x256xf32>
    %c64 = arith.constant 64 : index
    %c0_46 = arith.constant 0 : index
    %84 = vector.load %arg11[%c64, %c0_46] : memref<360x256xf32, #tpu.memory_space<vmem>>, vector<8x256xf32>
    tpu.vector_store %arg11[%c64, %c0_46], %83 {strides = array<i32>} : memref<360x256xf32, #tpu.memory_space<vmem>>, vector<8x256xf32>,
    %c0_47 = arith.constant 0 : index
    %c0_48 = arith.constant 0 : index
    %85 = vector.load %arg11[%c0_47, %c0_48] : memref<360x256xf32, #tpu.memory_space<vmem>>, vector<360x256xf32>
    %c0_49 = arith.constant 0 : index
    %c0_50 = arith.constant 0 : index
    %86 = vector.load %arg7[%c0_49, %c0_50] : memref<128x256xf32, #tpu.memory_space<vmem>>, vector<128x256xf32>
    %c0_51 = arith.constant 0 : index
    %c0_52 = arith.constant 0 : index
    %87 = vector.load %arg4[%c0_51, %c0_52] : memref<128x360xbf16, #tpu.memory_space<vmem>>, vector<128x360xbf16>
    %88 = arith.truncf %85 : vector<360x256xf32> to vector<360x256xbf16>
    %cst_53 = arith.constant dense<0.000000e+00> : vector<128x256xf32>
    %89 = tpu.matmul %87, %88, %cst_53 {dimension_numbers = #tpu.dot_dimension_numbers<[1], [0], [0], [1], [0, 0, 1, 1], [], []>} : vector<128x360xbf16>, vector<360x256xbf16>, vector<128x256xf32> -> vector<128x256xf32>
    %90 = arith.addf %86, %89 : vector<128x256xf32>
    %c8_54 = arith.constant 8 : index
    %c0_55 = arith.constant 0 : index
    %91 = vector.load %arg12[%c8_54, %c0_55] : memref<40x256xf32, #tpu.memory_space<vmem>>, vector<32x256xf32>
    %92 = vector.extract_strided_slice %90 {offsets = [0, 0], sizes = [32, 256], strides = [1, 1]} : vector<128x256xf32> to vector<32x256xf32>
    %93 = vector.extract_strided_slice %90 {offsets = [32, 0], sizes = [32, 256], strides = [1, 1]} : vector<128x256xf32> to vector<32x256xf32>
    %94 = vector.extract_strided_slice %90 {offsets = [64, 0], sizes = [32, 256], strides = [1, 1]} : vector<128x256xf32> to vector<32x256xf32>
    %95 = vector.extract_strided_slice %90 {offsets = [96, 0], sizes = [32, 256], strides = [1, 1]} : vector<128x256xf32> to vector<32x256xf32>
    %c0_56 = arith.constant 0 : index
    %c0_57 = arith.constant 0 : index
    %c0_58 = arith.constant 0 : index
    %96 = vector.load %arg6[%c0_56, %c0_57, %c0_58] : memref<2x32x256xf32, #tpu.memory_space<vmem>>, vector<1x32x256xf32>
    %97 = vector.shape_cast %96 : vector<1x32x256xf32> to vector<32x256xf32>
    %98 = arith.mulf %97, %91 : vector<32x256xf32>
    %99 = arith.addf %92, %98 : vector<32x256xf32>
    %100 = arith.negf %99 : vector<32x256xf32>
    %101 = math.exp %100 : vector<32x256xf32>
    %cst_59 = arith.constant 1.000000e+00 : f32
    %102 = vector.broadcast %cst_59 : f32 to vector<32x256xf32>
    %103 = arith.addf %102, %101 : vector<32x256xf32>
    %104 = arith.divf %102, %103 : vector<32x256xf32>
    %c1_60 = arith.constant 1 : index
    %c0_61 = arith.constant 0 : index
    %c0_62 = arith.constant 0 : index
    %105 = vector.load %arg6[%c1_60, %c0_61, %c0_62] : memref<2x32x256xf32, #tpu.memory_space<vmem>>, vector<1x32x256xf32>
    %106 = vector.shape_cast %105 : vector<1x32x256xf32> to vector<32x256xf32>
    %107 = arith.mulf %106, %91 : vector<32x256xf32>
    %108 = arith.addf %93, %107 : vector<32x256xf32>
    %109 = arith.negf %108 : vector<32x256xf32>
    %110 = math.exp %109 : vector<32x256xf32>
    %cst_63 = arith.constant 1.000000e+00 : f32
    %111 = vector.broadcast %cst_63 : f32 to vector<32x256xf32>
    %112 = arith.addf %111, %110 : vector<32x256xf32>
    %113 = arith.divf %111, %112 : vector<32x256xf32>
    %114 = arith.mulf %113, %91 : vector<32x256xf32>
    %115 = math.tanh %94 : vector<32x256xf32>
    %116 = arith.mulf %104, %115 : vector<32x256xf32>
    %117 = arith.addf %114, %116 : vector<32x256xf32>
    %118 = arith.negf %95 : vector<32x256xf32>
    %119 = math.exp %118 : vector<32x256xf32>
    %cst_64 = arith.constant 1.000000e+00 : f32
    %120 = vector.broadcast %cst_64 : f32 to vector<32x256xf32>
    %121 = arith.addf %120, %119 : vector<32x256xf32>
    %122 = arith.divf %120, %121 : vector<32x256xf32>
    %123 = math.tanh %117 : vector<32x256xf32>
    %124 = arith.mulf %122, %123 : vector<32x256xf32>
    %c8_65 = arith.constant 8 : index
    %c0_66 = arith.constant 0 : index
    %125 = vector.load %arg12[%c8_65, %c0_66] : memref<40x256xf32, #tpu.memory_space<vmem>>, vector<32x256xf32>
    tpu.vector_store %arg12[%c8_65, %c0_66], %117 {strides = array<i32>} : memref<40x256xf32, #tpu.memory_space<vmem>>, vector<32x256xf32>,
    %c17_i32_67 = arith.constant 17 : i32
    %126 = tpu.dynamic_rotate %124 by %c17_i32_67 dim 1 : vector<32x256xf32>, i32 -> vector<32x256xf32>
    %c0_68 = arith.constant 0 : index
    %c0_69 = arith.constant 0 : index
    %c0_70 = arith.constant 0 : index
    %127 = vector.load %arg2[%c0_68, %c0_69, %c0_70] : memref<9x32x256xf32, #tpu.memory_space<vmem>>, vector<1x32x256xf32>
    %128 = vector.shape_cast %127 : vector<1x32x256xf32> to vector<32x256xf32>
    %129 = arith.mulf %126, %128 : vector<32x256xf32>
    %c72 = arith.constant 72 : index
    %c0_71 = arith.constant 0 : index
    %130 = vector.load %arg11[%c72, %c0_71] : memref<360x256xf32, #tpu.memory_space<vmem>>, vector<32x256xf32>
    tpu.vector_store %arg11[%c72, %c0_71], %129 {strides = array<i32>} : memref<360x256xf32, #tpu.memory_space<vmem>>, vector<32x256xf32>,
    %c16_i32_72 = arith.constant 16 : i32
    %131 = tpu.dynamic_rotate %124 by %c16_i32_72 dim 1 : vector<32x256xf32>, i32 -> vector<32x256xf32>
    %c1_73 = arith.constant 1 : index
    %c0_74 = arith.constant 0 : index
    %c0_75 = arith.constant 0 : index
    %132 = vector.load %arg2[%c1_73, %c0_74, %c0_75] : memref<9x32x256xf32, #tpu.memory_space<vmem>>, vector<1x32x256xf32>
    %133 = vector.shape_cast %132 : vector<1x32x256xf32> to vector<32x256xf32>
    %134 = arith.mulf %131, %133 : vector<32x256xf32>
    %c104 = arith.constant 104 : index
    %c0_76 = arith.constant 0 : index
    %135 = vector.load %arg11[%c104, %c0_76] : memref<360x256xf32, #tpu.memory_space<vmem>>, vector<32x256xf32>
    tpu.vector_store %arg11[%c104, %c0_76], %134 {strides = array<i32>} : memref<360x256xf32, #tpu.memory_space<vmem>>, vector<32x256xf32>,
    %c15_i32_77 = arith.constant 15 : i32
    %136 = tpu.dynamic_rotate %124 by %c15_i32_77 dim 1 : vector<32x256xf32>, i32 -> vector<32x256xf32>
    %c2_78 = arith.constant 2 : index
    %c0_79 = arith.constant 0 : index
    %c0_80 = arith.constant 0 : index
    %137 = vector.load %arg2[%c2_78, %c0_79, %c0_80] : memref<9x32x256xf32, #tpu.memory_space<vmem>>, vector<1x32x256xf32>
    %138 = vector.shape_cast %137 : vector<1x32x256xf32> to vector<32x256xf32>
    %139 = arith.mulf %136, %138 : vector<32x256xf32>
    %c136 = arith.constant 136 : index
    %c0_81 = arith.constant 0 : index
    %140 = vector.load %arg11[%c136, %c0_81] : memref<360x256xf32, #tpu.memory_space<vmem>>, vector<32x256xf32>
    tpu.vector_store %arg11[%c136, %c0_81], %139 {strides = array<i32>} : memref<360x256xf32, #tpu.memory_space<vmem>>, vector<32x256xf32>,
    %c1_i32_82 = arith.constant 1 : i32
    %141 = tpu.dynamic_rotate %124 by %c1_i32_82 dim 1 : vector<32x256xf32>, i32 -> vector<32x256xf32>
    %c3_83 = arith.constant 3 : index
    %c0_84 = arith.constant 0 : index
    %c0_85 = arith.constant 0 : index
    %142 = vector.load %arg2[%c3_83, %c0_84, %c0_85] : memref<9x32x256xf32, #tpu.memory_space<vmem>>, vector<1x32x256xf32>
    %143 = vector.shape_cast %142 : vector<1x32x256xf32> to vector<32x256xf32>
    %144 = arith.mulf %141, %143 : vector<32x256xf32>
    %c168 = arith.constant 168 : index
    %c0_86 = arith.constant 0 : index
    %145 = vector.load %arg11[%c168, %c0_86] : memref<360x256xf32, #tpu.memory_space<vmem>>, vector<32x256xf32>
    tpu.vector_store %arg11[%c168, %c0_86], %144 {strides = array<i32>} : memref<360x256xf32, #tpu.memory_space<vmem>>, vector<32x256xf32>,
    %c200 = arith.constant 200 : index
    %c0_87 = arith.constant 0 : index
    %146 = vector.load %arg11[%c200, %c0_87] : memref<360x256xf32, #tpu.memory_space<vmem>>, vector<32x256xf32>
    tpu.vector_store %arg11[%c200, %c0_87], %124 {strides = array<i32>} : memref<360x256xf32, #tpu.memory_space<vmem>>, vector<32x256xf32>,
    %c255_i32_88 = arith.constant 255 : i32
    %147 = tpu.dynamic_rotate %124 by %c255_i32_88 dim 1 : vector<32x256xf32>, i32 -> vector<32x256xf32>
    %c5_89 = arith.constant 5 : index
    %c0_90 = arith.constant 0 : index
    %c0_91 = arith.constant 0 : index
    %148 = vector.load %arg2[%c5_89, %c0_90, %c0_91] : memref<9x32x256xf32, #tpu.memory_space<vmem>>, vector<1x32x256xf32>
    %149 = vector.shape_cast %148 : vector<1x32x256xf32> to vector<32x256xf32>
    %150 = arith.mulf %147, %149 : vector<32x256xf32>
    %c232 = arith.constant 232 : index
    %c0_92 = arith.constant 0 : index
    %151 = vector.load %arg11[%c232, %c0_92] : memref<360x256xf32, #tpu.memory_space<vmem>>, vector<32x256xf32>
    tpu.vector_store %arg11[%c232, %c0_92], %150 {strides = array<i32>} : memref<360x256xf32, #tpu.memory_space<vmem>>, vector<32x256xf32>,
    %c241_i32_93 = arith.constant 241 : i32
    %152 = tpu.dynamic_rotate %124 by %c241_i32_93 dim 1 : vector<32x256xf32>, i32 -> vector<32x256xf32>
    %c6_94 = arith.constant 6 : index
    %c0_95 = arith.constant 0 : index
    %c0_96 = arith.constant 0 : index
    %153 = vector.load %arg2[%c6_94, %c0_95, %c0_96] : memref<9x32x256xf32, #tpu.memory_space<vmem>>, vector<1x32x256xf32>
    %154 = vector.shape_cast %153 : vector<1x32x256xf32> to vector<32x256xf32>
    %155 = arith.mulf %152, %154 : vector<32x256xf32>
    %c264 = arith.constant 264 : index
    %c0_97 = arith.constant 0 : index
    %156 = vector.load %arg11[%c264, %c0_97] : memref<360x256xf32, #tpu.memory_space<vmem>>, vector<32x256xf32>
    tpu.vector_store %arg11[%c264, %c0_97], %155 {strides = array<i32>} : memref<360x256xf32, #tpu.memory_space<vmem>>, vector<32x256xf32>,
    %c240_i32_98 = arith.constant 240 : i32
    %157 = tpu.dynamic_rotate %124 by %c240_i32_98 dim 1 : vector<32x256xf32>, i32 -> vector<32x256xf32>
    %c7_99 = arith.constant 7 : index
    %c0_100 = arith.constant 0 : index
    %c0_101 = arith.constant 0 : index
    %158 = vector.load %arg2[%c7_99, %c0_100, %c0_101] : memref<9x32x256xf32, #tpu.memory_space<vmem>>, vector<1x32x256xf32>
    %159 = vector.shape_cast %158 : vector<1x32x256xf32> to vector<32x256xf32>
    %160 = arith.mulf %157, %159 : vector<32x256xf32>
    %c296 = arith.constant 296 : index
    %c0_102 = arith.constant 0 : index
    %161 = vector.load %arg11[%c296, %c0_102] : memref<360x256xf32, #tpu.memory_space<vmem>>, vector<32x256xf32>
    tpu.vector_store %arg11[%c296, %c0_102], %160 {strides = array<i32>} : memref<360x256xf32, #tpu.memory_space<vmem>>, vector<32x256xf32>,
    %c239_i32_103 = arith.constant 239 : i32
    %162 = tpu.dynamic_rotate %124 by %c239_i32_103 dim 1 : vector<32x256xf32>, i32 -> vector<32x256xf32>
    %c8_104 = arith.constant 8 : index
    %c0_105 = arith.constant 0 : index
    %c0_106 = arith.constant 0 : index
    %163 = vector.load %arg2[%c8_104, %c0_105, %c0_106] : memref<9x32x256xf32, #tpu.memory_space<vmem>>, vector<1x32x256xf32>
    %164 = vector.shape_cast %163 : vector<1x32x256xf32> to vector<32x256xf32>
    %165 = arith.mulf %162, %164 : vector<32x256xf32>
    %c328 = arith.constant 328 : index
    %c0_107 = arith.constant 0 : index
    %166 = vector.load %arg11[%c328, %c0_107] : memref<360x256xf32, #tpu.memory_space<vmem>>, vector<32x256xf32>
    tpu.vector_store %arg11[%c328, %c0_107], %165 {strides = array<i32>} : memref<360x256xf32, #tpu.memory_space<vmem>>, vector<32x256xf32>,
    %c3_i32 = arith.constant 3 : i32
    %167 = arith.cmpi eq, %arg0, %c3_i32 : i32
    %168 = arith.extui %167 : i1 to i32
    %c0_i32_108 = arith.constant 0 : i32
    %169 = arith.cmpi ne, %168, %c0_i32_108 : i32
    scf.if %169 {
      %170 = arith.truncf %124 : vector<32x256xf32> to vector<32x256xbf16>
      %171 = arith.truncf %117 : vector<32x256xf32> to vector<32x256xbf16>
      %172 = tpu.concatenate %170, %171 in 0 : vector<32x256xbf16>, vector<32x256xbf16> -> vector<64x256xbf16>
      %c0_109 = arith.constant 0 : index
      %c0_110 = arith.constant 0 : index
      %173 = vector.load %arg8[%c0_109, %c0_110] : memref<3x64xbf16, #tpu.memory_space<vmem>>, vector<3x64xbf16>
      %cst_111 = arith.constant dense<0.000000e+00> : vector<3x256xf32>
      %174 = tpu.matmul %173, %172, %cst_111 {dimension_numbers = #tpu.dot_dimension_numbers<[1], [0], [0], [1], [0, 0, 1, 1], [], []>} : vector<3x64xbf16>, vector<64x256xbf16>, vector<3x256xf32> -> vector<3x256xf32>
      %c0_112 = arith.constant 0 : index
      %c0_113 = arith.constant 0 : index
      %175 = vector.load %arg9[%c0_112, %c0_113] : memref<3x1xf32, #tpu.memory_space<vmem>>, vector<3x1xf32>
      %176 = vector.broadcast %175 : vector<3x1xf32> to vector<3x256xf32>
      %177 = arith.addf %174, %176 : vector<3x256xf32>
      %c0_114 = arith.constant 0 : index
      %c0_115 = arith.constant 0 : index
      %178 = vector.load %arg10[%c0_114, %c0_115] : memref<3x256xf32, #tpu.memory_space<vmem>>, vector<3x256xf32>
      tpu.vector_store %arg10[%c0_114, %c0_115], %177 {strides = array<i32>} : memref<3x256xf32, #tpu.memory_space<vmem>>, vector<3x256xf32>,
    } else {
    }
    return
  }
  func.func @transform_0(%arg0: i32) -> (i32, i32) {
    %c0_i32 = arith.constant 0 : i32
    %c0_i32_0 = arith.constant 0 : i32
    return %c0_i32, %arg0 : i32, i32
  }
  func.func @transform_1(%arg0: i32) -> (i32, i32, i32) {
    %c0_i32 = arith.constant 0 : i32
    %c0_i32_0 = arith.constant 0 : i32
    %c0_i32_1 = arith.constant 0 : i32
    %c0_i32_2 = arith.constant 0 : i32
    return %c0_i32, %c0_i32_0, %c0_i32_1 : i32, i32, i32
  }
  func.func @transform_2(%arg0: i32) -> (i32, i32) {
    %c0_i32 = arith.constant 0 : i32
    %c0_i32_0 = arith.constant 0 : i32
    %c0_i32_1 = arith.constant 0 : i32
    return %c0_i32, %c0_i32_0 : i32, i32
  }
  func.func @transform_3(%arg0: i32) -> (i32, i32) {
    %c0_i32 = arith.constant 0 : i32
    %c0_i32_0 = arith.constant 0 : i32
    %c0_i32_1 = arith.constant 0 : i32
    return %c0_i32, %c0_i32_0 : i32, i32
  }
  func.func @transform_4(%arg0: i32) -> (i32, i32, i32) {
    %c0_i32 = arith.constant 0 : i32
    %c0_i32_0 = arith.constant 0 : i32
    %c0_i32_1 = arith.constant 0 : i32
    %c0_i32_2 = arith.constant 0 : i32
    return %c0_i32, %c0_i32_0, %c0_i32_1 : i32, i32, i32
  }
  func.func @transform_5(%arg0: i32) -> (i32, i32, i32) {
    %c0_i32 = arith.constant 0 : i32
    %c0_i32_0 = arith.constant 0 : i32
    %c0_i32_1 = arith.constant 0 : i32
    %c0_i32_2 = arith.constant 0 : i32
    return %c0_i32, %c0_i32_0, %c0_i32_1 : i32, i32, i32
  }
  func.func @transform_6(%arg0: i32) -> (i32, i32) {
    %c0_i32 = arith.constant 0 : i32
    %c0_i32_0 = arith.constant 0 : i32
    %c0_i32_1 = arith.constant 0 : i32
    return %c0_i32, %c0_i32_0 : i32, i32
  }
  func.func @transform_7(%arg0: i32) -> (i32, i32) {
    %c0_i32 = arith.constant 0 : i32
    %c0_i32_0 = arith.constant 0 : i32
    %c0_i32_1 = arith.constant 0 : i32
    return %c0_i32, %c0_i32_0 : i32, i32
  }
  func.func @transform_8(%arg0: i32) -> (i32, i32) {
    %c0_i32 = arith.constant 0 : i32
    %c0_i32_0 = arith.constant 0 : i32
    %c0_i32_1 = arith.constant 0 : i32
    return %c0_i32, %c0_i32_0 : i32, i32
  }
  func.func @transform_9(%arg0: i32) -> (i32, i32) {
    %c0_i32 = arith.constant 0 : i32
    %c0_i32_0 = arith.constant 0 : i32
    %c0_i32_1 = arith.constant 0 : i32
    return %c0_i32, %c0_i32_0 : i32, i32
  }
}

</mosaic_0001>

<llo_original>
// kernel: squeeze.2
$region0: #{squeeze.2}
  %s0 = inlined_call_operand.vmem [shape: f32[1,8,16,16], index: 0, kind: input, shape index: {}]
  %s1 = inlined_call_operand.vmem [shape: f32[8,256], index: 1, kind: output, shape index: {}]
  %v2 = vld [vmem:[%s0] ss:$8 sm:$0xf]
  %v3 = vld [vmem:[%s0] ss:$8 sm:$0xf0]
  %vm4 = vcmask 1047556
  %v5 = vsel %vm4, %v3, %v2
  %vm6 = vcmask 130048
  %7 = vst.msk [vmem:[%s1] ss:$8 sm:$0x3] %vm6, %v5
  %s8 = scalar_lea.vmem %s1, 4294967281
  %9 = vst.msk [vmem:[%s8] ss:$8 sm:$0xc] %vm6, %v5
  %s10 = scalar_lea.vmem %s1, 4294967266
  %11 = vst.msk [vmem:[%s10] ss:$8 sm:$0x30] %vm6, %v5
  %s12 = scalar_lea.vmem %s1, 4294967251
  %13 = vst.msk [vmem:[%s12] ss:$8 sm:$0xc0] %vm6, %v5
  %s14 = scalar_lea.vmem %s0, 64
  %v15 = vld [vmem:[%s14] ss:$8 sm:$0xf]
  %s16 = scalar_lea.vmem %s0, 64
  %v17 = vld [vmem:[%s16] ss:$8 sm:$0xf0]
  %vm18 = vcmask 1047556
  %v19 = vsel %vm18, %v17, %v15
  %vm20 = vcmask 130048
  %s21 = scalar_lea.vmem %s1, 4
  %22 = vst.msk [vmem:[%s21] ss:$8 sm:$0x3] %vm20, %v19
  %s23 = scalar_lea.vmem %s1, 4294967285
  %24 = vst.msk [vmem:[%s23] ss:$8 sm:$0xc] %vm20, %v19
  %s25 = scalar_lea.vmem %s1, 4294967270
  %26 = vst.msk [vmem:[%s25] ss:$8 sm:$0x30] %vm20, %v19
  %s27 = scalar_lea.vmem %s1, 4294967255
  %28 = vst.msk [vmem:[%s27] ss:$8 sm:$0xc0] %vm20, %v19
  %s29 = scalar_lea.vmem %s0, 7
  %s30 = smov 3
  %v31 = vld [vmem:[%s29] ss:$16 sm:%s30]
  %s32 = scalar_lea.vmem %s0, 7
  %s33 = smov 12
  %v34 = vld [vmem:[%s32] ss:$16 sm:%s33]
  %vm35 = vcmask 1043458
  %v36 = vsel %vm35, %v34, %v31
  %s37 = scalar_lea.vmem %s0, 7
  %s38 = smov 48
  %v39 = vld [vmem:[%s37] ss:$16 sm:%s38]
  %vm40 = vcmask 1045508
  %v41 = vsel %vm40, %v39, %v36
  %s42 = scalar_lea.vmem %s0, 7
  %s43 = smov 192
  %v44 = vld [vmem:[%s42] ss:$16 sm:%s43]
  %vm45 = vcmask 1047558
  %v46 = vsel %vm45, %v44, %v41
  %47 = vrot.lane.b32.xlu0 %v46, 112
  %v48 = vpop.permute.xlu0 %47
  %vm49 = vcmask 1048448
  %50 = vst.msk [vmem:[%s1] sm:$0xff] %vm49, %v48
  %s51 = scalar_lea.vmem %s0, 15
  %s52 = smov 3
  %v53 = vld [vmem:[%s51] ss:$16 sm:%s52]
  %s54 = scalar_lea.vmem %s0, 15
  %s55 = smov 12
  %v56 = vld [vmem:[%s54] ss:$16 sm:%s55]
  %vm57 = vcmask 1043458
  %v58 = vsel %vm57, %v56, %v53
  %s59 = scalar_lea.vmem %s0, 15
  %s60 = smov 48
  %v61 = vld [vmem:[%s59] ss:$16 sm:%s60]
  %vm62 = vcmask 1045508
  %v63 = vsel %vm62, %v61, %v58
  %s64 = scalar_lea.vmem %s0, 15
  %s65 = smov 192
  %v66 = vld [vmem:[%s64] ss:$16 sm:%s65]
  %vm67 = vcmask 1047558
  %v68 = vsel %vm67, %v66, %v63
  %69 = vrot.lane.b32.xlu0 %v68, 112
  %v70 = vpop.permute.xlu0 %69
  %vm71 = vcmask 1048448
  %s72 = scalar_lea.vmem %s1, 8
  %73 = vst.msk [vmem:[%s72] sm:$0xff] %vm71, %v70
  %s74 = scalar_lea.vmem %s0, 6
  %s75 = smov 3
  %v76 = vld [vmem:[%s74] ss:$16 sm:%s75]
  %s77 = scalar_lea.vmem %s0, 6
  %s78 = smov 12
  %v79 = vld [vmem:[%s77] ss:$16 sm:%s78]
  %vm80 = vcmask 1043458
  %v81 = vsel %vm80, %v79, %v76
  %s82 = scalar_lea.vmem %s0, 6
  %s83 = smov 48
  %v84 = vld [vmem:[%s82] ss:$16 sm:%s83]
  %vm85 = vcmask 1045508
  %v86 = vsel %vm85, %v84, %v81
  %s87 = scalar_lea.vmem %s0, 6
  %s88 = smov 192
  %v89 = vld [vmem:[%s87] ss:$16 sm:%s88]
  %vm90 = vcmask 1047558
  %v91 = vsel %vm90, %v89, %v86
  %92 = vrot.lane.b32.xlu0 %v91, 96
  %v93 = vpop.permute.xlu0 %92
  %vm94 = vcmask 917248
  %95 = vst.msk [vmem:[%s1] sm:$0xff] %vm94, %v93
  %s96 = scalar_lea.vmem %s0, 14
  %s97 = smov 3
  %v98 = vld [vmem:[%s96] ss:$16 sm:%s97]
  %s99 = scalar_lea.vmem %s0, 14
  %s100 = smov 12
  %v101 = vld [vmem:[%s99] ss:$16 sm:%s100]
  %vm102 = vcmask 1043458
  %v103 = vsel %vm102, %v101, %v98
  %s104 = scalar_lea.vmem %s0, 14
  %s105 = smov 48
  %v106 = vld [vmem:[%s104] ss:$16 sm:%s105]
  %vm107 = vcmask 1045508
  %v108 = vsel %vm107, %v106, %v103
  %s109 = scalar_lea.vmem %s0, 14
  %s110 = smov 192
  %v111 = vld [vmem:[%s109] ss:$16 sm:%s110]
  %vm112 = vcmask 1047558
  %v113 = vsel %vm112, %v111, %v108
  %114 = vrot.lane.b32.xlu0 %v113, 96
  %v115 = vpop.permute.xlu0 %114
  %vm116 = vcmask 917248
  %s117 = scalar_lea.vmem %s1, 8
  %118 = vst.msk [vmem:[%s117] sm:$0xff] %vm116, %v115
  %s119 = scalar_lea.vmem %s0, 5
  %s120 = smov 3
  %v121 = vld [vmem:[%s119] ss:$16 sm:%s120]
  %s122 = scalar_lea.vmem %s0, 5
  %s123 = smov 12
  %v124 = vld [vmem:[%s122] ss:$16 sm:%s123]
  %vm125 = vcmask 1043458
  %v126 = vsel %vm125, %v124, %v121
  %s127 = scalar_lea.vmem %s0, 5
  %s128 = smov 48
  %v129 = vld [vmem:[%s127] ss:$16 sm:%s128]
  %vm130 = vcmask 1045508
  %v131 = vsel %vm130, %v129, %v126
  %s132 = scalar_lea.vmem %s0, 5
  %s133 = smov 192
  %v134 = vld [vmem:[%s132] ss:$16 sm:%s133]
  %vm135 = vcmask 1047558
  %v136 = vsel %vm135, %v134, %v131
  %137 = vrot.lane.b32.xlu0 %v136, 80
  %v138 = vpop.permute.xlu0 %137
  %vm139 = vcmask 786048
  %140 = vst.msk [vmem:[%s1] sm:$0xff] %vm139, %v138
  %s141 = scalar_lea.vmem %s0, 13
  %s142 = smov 3
  %v143 = vld [vmem:[%s141] ss:$16 sm:%s142]
  %s144 = scalar_lea.vmem %s0, 13
  %s145 = smov 12
  %v146 = vld [vmem:[%s144] ss:$16 sm:%s145]
  %vm147 = vcmask 1043458
  %v148 = vsel %vm147, %v146, %v143
  %s149 = scalar_lea.vmem %s0, 13
  %s150 = smov 48
  %v151 = vld [vmem:[%s149] ss:$16 sm:%s150]
  %vm152 = vcmask 1045508
  %v153 = vsel %vm152, %v151, %v148
  %s154 = scalar_lea.vmem %s0, 13
  %s155 = smov 192
  %v156 = vld [vmem:[%s154] ss:$16 sm:%s155]
  %vm157 = vcmask 1047558
  %v158 = vsel %vm157, %v156, %v153
  %159 = vrot.lane.b32.xlu0 %v158, 80
  %v160 = vpop.permute.xlu0 %159
  %vm161 = vcmask 786048
  %s162 = scalar_lea.vmem %s1, 8
  %163 = vst.msk [vmem:[%s162] sm:$0xff] %vm161, %v160
  %s164 = scalar_lea.vmem %s0, 4
  %s165 = smov 3
  %v166 = vld [vmem:[%s164] ss:$16 sm:%s165]
  %s167 = scalar_lea.vmem %s0, 4
  %s168 = smov 12
  %v169 = vld [vmem:[%s167] ss:$16 sm:%s168]
  %vm170 = vcmask 1043458
  %v171 = vsel %vm170, %v169, %v166
  %s172 = scalar_lea.vmem %s0, 4
  %s173 = smov 48
  %v174 = vld [vmem:[%s172] ss:$16 sm:%s173]
  %vm175 = vcmask 1045508
  %v176 = vsel %vm175, %v174, %v171
  %s177 = scalar_lea.vmem %s0, 4
  %s178 = smov 192
  %v179 = vld [vmem:[%s177] ss:$16 sm:%s178]
  %vm180 = vcmask 1047558
  %v181 = vsel %vm180, %v179, %v176
  %182 = vrot.lane.b32.xlu0 %v181, 64
  %v183 = vpop.permute.xlu0 %182
  %vm184 = vcmask 654848
  %185 = vst.msk [vmem:[%s1] sm:$0xff] %vm184, %v183
  %s186 = scalar_lea.vmem %s0, 12
  %s187 = smov 3
  %v188 = vld [vmem:[%s186] ss:$16 sm:%s187]
  %s189 = scalar_lea.vmem %s0, 12
  %s190 = smov 12
  %v191 = vld [vmem:[%s189] ss:$16 sm:%s190]
  %vm192 = vcmask 1043458
  %v193 = vsel %vm192, %v191, %v188
  %s194 = scalar_lea.vmem %s0, 12
  %s195 = smov 48
  %v196 = vld [vmem:[%s194] ss:$16 sm:%s195]
  %vm197 = vcmask 1045508
  %v198 = vsel %vm197, %v196, %v193
  %s199 = scalar_lea.vmem %s0, 12
  %s200 = smov 192
  %v201 = vld [vmem:[%s199] ss:$16 sm:%s200]
  %vm202 = vcmask 1047558
  %v203 = vsel %vm202, %v201, %v198
  %204 = vrot.lane.b32.xlu0 %v203, 64
  %v205 = vpop.permute.xlu0 %204
  %vm206 = vcmask 654848
  %s207 = scalar_lea.vmem %s1, 8
  %208 = vst.msk [vmem:[%s207] sm:$0xff] %vm206, %v205
  %s209 = scalar_lea.vmem %s0, 3
  %s210 = smov 3
  %v211 = vld [vmem:[%s209] ss:$16 sm:%s210]
  %s212 = scalar_lea.vmem %s0, 3
  %s213 = smov 12
  %v214 = vld [vmem:[%s212] ss:$16 sm:%s213]
  %vm215 = vcmask 1043458
  %v216 = vsel %vm215, %v214, %v211
  %s217 = scalar_lea.vmem %s0, 3
  %s218 = smov 48
  %v219 = vld [vmem:[%s217] ss:$16 sm:%s218]
  %vm220 = vcmask 1045508
  %v221 = vsel %vm220, %v219, %v216
  %s222 = scalar_lea.vmem %s0, 3
  %s223 = smov 192
  %v224 = vld [vmem:[%s222] ss:$16 sm:%s223]
  %vm225 = vcmask 1047558
  %v226 = vsel %vm225, %v224, %v221
  %227 = vrot.lane.b32.xlu0 %v226, 48
  %v228 = vpop.permute.xlu0 %227
  %vm229 = vcmask 523648
  %230 = vst.msk [vmem:[%s1] sm:$0xff] %vm229, %v228
  %s231 = scalar_lea.vmem %s0, 11
  %s232 = smov 3
  %v233 = vld [vmem:[%s231] ss:$16 sm:%s232]
  %s234 = scalar_lea.vmem %s0, 11
  %s235 = smov 12
  %v236 = vld [vmem:[%s234] ss:$16 sm:%s235]
  %vm237 = vcmask 1043458
  %v238 = vsel %vm237, %v236, %v233
  %s239 = scalar_lea.vmem %s0, 11
  %s240 = smov 48
  %v241 = vld [vmem:[%s239] ss:$16 sm:%s240]
  %vm242 = vcmask 1045508
  %v243 = vsel %vm242, %v241, %v238
  %s244 = scalar_lea.vmem %s0, 11
  %s245 = smov 192
  %v246 = vld [vmem:[%s244] ss:$16 sm:%s245]
  %vm247 = vcmask 1047558
  %v248 = vsel %vm247, %v246, %v243
  %249 = vrot.lane.b32.xlu0 %v248, 48
  %v250 = vpop.permute.xlu0 %249
  %vm251 = vcmask 523648
  %s252 = scalar_lea.vmem %s1, 8
  %253 = vst.msk [vmem:[%s252] sm:$0xff] %vm251, %v250
  %s254 = scalar_lea.vmem %s0, 2
  %s255 = smov 3
  %v256 = vld [vmem:[%s254] ss:$16 sm:%s255]
  %s257 = scalar_lea.vmem %s0, 2
  %s258 = smov 12
  %v259 = vld [vmem:[%s257] ss:$16 sm:%s258]
  %vm260 = vcmask 1043458
  %v261 = vsel %vm260, %v259, %v256
  %s262 = scalar_lea.vmem %s0, 2
  %s263 = smov 48
  %v264 = vld [vmem:[%s262] ss:$16 sm:%s263]
  %vm265 = vcmask 1045508
  %v266 = vsel %vm265, %v264, %v261
  %s267 = scalar_lea.vmem %s0, 2
  %s268 = smov 192
  %v269 = vld [vmem:[%s267] ss:$16 sm:%s268]
  %vm270 = vcmask 1047558
  %v271 = vsel %vm270, %v269, %v266
  %272 = vrot.lane.b32.xlu0 %v271, 32
  %v273 = vpop.permute.xlu0 %272
  %vm274 = vcmask 392448
  %275 = vst.msk [vmem:[%s1] sm:$0xff] %vm274, %v273
  %s276 = scalar_lea.vmem %s0, 10
  %s277 = smov 3
  %v278 = vld [vmem:[%s276] ss:$16 sm:%s277]
  %s279 = scalar_lea.vmem %s0, 10
  %s280 = smov 12
  %v281 = vld [vmem:[%s279] ss:$16 sm:%s280]
  %vm282 = vcmask 1043458
  %v283 = vsel %vm282, %v281, %v278
  %s284 = scalar_lea.vmem %s0, 10
  %s285 = smov 48
  %v286 = vld [vmem:[%s284] ss:$16 sm:%s285]
  %vm287 = vcmask 1045508
  %v288 = vsel %vm287, %v286, %v283
  %s289 = scalar_lea.vmem %s0, 10
  %s290 = smov 192
  %v291 = vld [vmem:[%s289] ss:$16 sm:%s290]
  %vm292 = vcmask 1047558
  %v293 = vsel %vm292, %v291, %v288
  %294 = vrot.lane.b32.xlu0 %v293, 32
  %v295 = vpop.permute.xlu0 %294
  %vm296 = vcmask 392448
  %s297 = scalar_lea.vmem %s1, 8
  %298 = vst.msk [vmem:[%s297] sm:$0xff] %vm296, %v295
  %s299 = scalar_lea.vmem %s0, 1
  %s300 = smov 3
  %v301 = vld [vmem:[%s299] ss:$16 sm:%s300]
  %s302 = scalar_lea.vmem %s0, 1
  %s303 = smov 12
  %v304 = vld [vmem:[%s302] ss:$16 sm:%s303]
  %vm305 = vcmask 1043458
  %v306 = vsel %vm305, %v304, %v301
  %s307 = scalar_lea.vmem %s0, 1
  %s308 = smov 48
  %v309 = vld [vmem:[%s307] ss:$16 sm:%s308]
  %vm310 = vcmask 1045508
  %v311 = vsel %vm310, %v309, %v306
  %s312 = scalar_lea.vmem %s0, 1
  %s313 = smov 192
  %v314 = vld [vmem:[%s312] ss:$16 sm:%s313]
  %vm315 = vcmask 1047558
  %v316 = vsel %vm315, %v314, %v311
  %317 = vrot.lane.b32.xlu0 %v316, 16
  %v318 = vpop.permute.xlu0 %317
  %vm319 = vcmask 261248
  %320 = vst.msk [vmem:[%s1] sm:$0xff] %vm319, %v318
  %s321 = scalar_lea.vmem %s0, 9
  %s322 = smov 3
  %v323 = vld [vmem:[%s321] ss:$16 sm:%s322]
  %s324 = scalar_lea.vmem %s0, 9
  %s325 = smov 12
  %v326 = vld [vmem:[%s324] ss:$16 sm:%s325]
  %vm327 = vcmask 1043458
  %v328 = vsel %vm327, %v326, %v323
  %s329 = scalar_lea.vmem %s0, 9
  %s330 = smov 48
  %v331 = vld [vmem:[%s329] ss:$16 sm:%s330]
  %vm332 = vcmask 1045508
  %v333 = vsel %vm332, %v331, %v328
  %s334 = scalar_lea.vmem %s0, 9
  %s335 = smov 192
  %v336 = vld [vmem:[%s334] ss:$16 sm:%s335]
  %vm337 = vcmask 1047558
  %v338 = vsel %vm337, %v336, %v333
  %339 = vrot.lane.b32.xlu0 %v338, 16
  %v340 = vpop.permute.xlu0 %339
  %vm341 = vcmask 261248
  %s342 = scalar_lea.vmem %s1, 8
  %343 = vst.msk [vmem:[%s342] sm:$0xff] %vm341, %v340

// kernel: conv_lstm_forward.2
$region0: #{conv_lstm_forward.2}
  #allocation0 [shape = 'u32[]', space=smem, size = 0x4, offset = 0x4, fixed_abs, tag = 'smem constant byte address 0x4 - core index']
  #allocation1 [shape = 'u32[144,128]{1,0:T(1,128)}', space=vmem, size = 0x12000, scoped, tag = 'internal scratch']
  %s0 = inlined_call_operand.vmem [shape: bf16[36,1024], index: 0, kind: input, shape index: {}]
  %s1 = inlined_call_operand.vmem [shape: bf16[32,36], index: 1, kind: input, shape index: {}]
  %s2 = inlined_call_operand.vmem [shape: f32[32,1024], index: 2, kind: input, shape index: {}]
  %s3 = inlined_call_operand.vmem [shape: f32[32,1024], index: 3, kind: output, shape index: {}]
  %s4 = sld [smem:[#allocation0]]
  $region110: #{conv_lstm_forward.2} parent=0
    _
  %s6 = ssub.s32 1, %s4
  %s7 = scalar_select 0, %s6, %s4
  $region1: #{conv_lstm_forward.2} parent=0
    #allocation2 [shape = 'u8[81920]{0}', space=vmem, size = 0x14000, scoped, tag = 'input window, operand 0']
    #allocation3 [shape = 'u8[131072]{0}', space=vmem, size = 0x20000, scoped, tag = 'input window, operand 2']
    #allocation4 [shape = 'u8[131072]{0}', space=vmem, size = 0x20000, scoped, tag = 'output window, operand 0']
    loop: start=0, step=1, limit=4
    $region2: #{conv_lstm_forward.2} parent=1 // loop_pre_header
      _
    $region3: #{conv_lstm_forward.2} parent=1 // loop_header
      %s9 = sphi 0, %s13
      %p10 = scmp.ge.s32.totalorder %s9, 4
      %s19 = sphi 0, %s21
      %s22 = sphi 0, %s19
      %s23 = sphi 0, %s22
      %s39 = sphi 0, %s23
      %s43 = sphi 0, %s43
      %s45 = sphi 0, %s43
      %s46 = sphi 0, %s45
      %s60 = sphi 0, %s46
      %s66 = sphi 0, %s68
      %s69 = sphi 0, %s66
      %s70 = sphi 0, %s69
      %s86 = sphi 0, %s70
      %s92 = sphi 0, %s94
      %s95 = sphi 0, %s92
      %s96 = sphi 0, %s95
      %s112 = sphi 0, %s96
    $region4: #{conv_lstm_forward.2} parent=1 // loop_header_branch
      %12 = sbr.rel (%p10) target = $region8
    $region5: #{conv_lstm_forward.2} parent=1 // loop_body
      %s14 = ssub.s32 %s9, 1
      %s15 = ssub.s32 %s9, 2
      %s16 = sadd.s32 %s9, 1
      %s17 = ssub.s32 %s9, %s16
      %p18 = scmp.eq.s32.totalorder %s17, 0
      %s20 = sadd.s32 %s19, 1
      %s21 = scalar_select %p18, %s19, %s20
      %p24 = pneg %p18
      %p25 = scmp.eq.s32.totalorder %s9, 1
      %p26 = por %p24, %p25
      %p27 = scmp.ne.s32.totalorder %s19, %s22
      %p28 = scmp.eq.s32.totalorder %s9, 0
      %p29 = por %p27, %p28
      %p30 = scmp.ne.s32.totalorder %s19, %s22
      %p31 = scmp.eq.s32.totalorder %s14, 1
      %p32 = por %p30, %p31
      %p33 = scmp.ne.s32.totalorder %s22, %s23
      %p34 = scmp.eq.s32.totalorder %s14, 0
      %p35 = por %p33, %p34
      %p36 = scmp.ne.s32.totalorder %s22, %s23
      %p37 = scmp.eq.s32.totalorder %s15, 1
      %p38 = por %p36, %p37
      %p40 = scmp.ne.s32.totalorder %s23, %s39
      %p41 = scmp.eq.s32.totalorder %s15, 0
      %p42 = por %p40, %p41
      %s44 = sadd.s32 %s43, 1
      %p47 = scmp.eq.s32.totalorder %s9, 1
      %p48 = scmp.ne.s32.totalorder %s43, %s45
      %p49 = scmp.eq.s32.totalorder %s9, 0
      %p50 = por %p48, %p49
      %p51 = scmp.ne.s32.totalorder %s43, %s45
      %p52 = scmp.eq.s32.totalorder %s14, 1
      %p53 = por %p51, %p52
      %p54 = scmp.ne.s32.totalorder %s45, %s46
      %p55 = scmp.eq.s32.totalorder %s14, 0
      %p56 = por %p54, %p55
      %p57 = scmp.ne.s32.totalorder %s45, %s46
      %p58 = scmp.eq.s32.totalorder %s15, 1
      %p59 = por %p57, %p58
      %p61 = scmp.ne.s32.totalorder %s46, %s60
      %p62 = scmp.eq.s32.totalorder %s15, 0
      %p63 = por %p61, %p62
      %s64 = ssub.s32 %s9, %s16
      %p65 = scmp.eq.s32.totalorder %s64, 0
      %s67 = sadd.s32 %s66, 1
      %s68 = scalar_select %p65, %s66, %s67
      %p71 = pneg %p65
      %p72 = scmp.eq.s32.totalorder %s9, 1
      %p73 = por %p71, %p72
      %p74 = scmp.ne.s32.totalorder %s66, %s69
      %p75 = scmp.eq.s32.totalorder %s9, 0
      %p76 = por %p74, %p75
      %p77 = scmp.ne.s32.totalorder %s66, %s69
      %p78 = scmp.eq.s32.totalorder %s14, 1
      %p79 = por %p77, %p78
      %p80 = scmp.ne.s32.totalorder %s69, %s70
      %p81 = scmp.eq.s32.totalorder %s14, 0
      %p82 = por %p80, %p81
      %p83 = scmp.ne.s32.totalorder %s69, %s70
      %p84 = scmp.eq.s32.totalorder %s15, 1
      %p85 = por %p83, %p84
      %p87 = scmp.ne.s32.totalorder %s70, %s86
      %p88 = scmp.eq.s32.totalorder %s15, 0
      %p89 = por %p87, %p88
      %s90 = ssub.s32 %s9, %s16
      %p91 = scmp.eq.s32.totalorder %s90, 0
      %s93 = sadd.s32 %s92, 1
      %s94 = scalar_select %p91, %s92, %s93
      %p97 = pneg %p91
      %p98 = scmp.eq.s32.totalorder %s9, 1
      %p99 = por %p97, %p98
      %p100 = scmp.ne.s32.totalorder %s92, %s95
      %p101 = scmp.eq.s32.totalorder %s9, 0
      %p102 = por %p100, %p101
      %p103 = scmp.ne.s32.totalorder %s92, %s95
      %p104 = scmp.eq.s32.totalorder %s14, 1
      %p105 = por %p103, %p104
      %p106 = scmp.ne.s32.totalorder %s95, %s96
      %p107 = scmp.eq.s32.totalorder %s14, 0
      %p108 = por %p106, %p107
      %p109 = scmp.ne.s32.totalorder %s95, %s96
      %p110 = scmp.eq.s32.totalorder %s15, 1
      %p111 = por %p109, %p110
      %p113 = scmp.ne.s32.totalorder %s96, %s112
      %p114 = scmp.eq.s32.totalorder %s15, 0
      %p115 = por %p113, %p114
      %p116 = scmp.le.s32.totalorder 1, %s9
      %p117 = scmp.lt.s32.totalorder %s9, 3
      %p118 = pnand %p116, %p117
      %p119 = pneg %p118
      // Predicated region
      $region9: #{conv_lstm_forward.2} parent=5 // pred_check
        _
      $region10: #{conv_lstm_forward.2} parent=5 // pred_check_branch
        %121 = sbr.rel (%p118) target = $region12
      $region11: #{conv_lstm_forward.2} parent=5 // pred_region
        %s122 = ssub.s32 %s9, 1
        // Predicated region
        $region13: #{conv_lstm_forward.2} parent=11 // pred_check
          %p123 = pneg %p56
        $region14: #{conv_lstm_forward.2} parent=11 // pred_check_branch
          %125 = sbr.rel (%p123) target = $region16
        $region15: #{conv_lstm_forward.2} parent=11 // pred_region
          _
        $region16: #{conv_lstm_forward.2} parent=11 // pred_fallthru
          _
      $region12: #{conv_lstm_forward.2} parent=5 // pred_fallthru
        _
      %p126 = scmp.lt.s32.totalorder %s9, 2
      // Predicated region
      $region17: #{conv_lstm_forward.2} parent=5 // pred_check
        %p127 = pneg %p126
      $region18: #{conv_lstm_forward.2} parent=5 // pred_check_branch
        %129 = sbr.rel (%p127) target = $region20
      $region19: #{conv_lstm_forward.2} parent=5 // pred_region
        // Predicated region
        $region21: #{conv_lstm_forward.2} parent=19 // pred_check
          %p130 = pneg %p29
        $region22: #{conv_lstm_forward.2} parent=19 // pred_check_branch
          %132 = sbr.rel (%p130) target = $region24
        $region23: #{conv_lstm_forward.2} parent=19 // pred_region
          %s133 = sand.u32 %s19, 1
          %s134 = sand.u32 %s19, 1
          %s135 = smul.addr %s134, 80
          %s136 = scalar_lea.vmem [#allocation2], %s135
          %s137 = smul.u32 4, %s9
          %s138 = smul.addr %s137, 4
          %s139 = scalar_lea.vmem %s0, %s138
          // Predicated region
          $region25: #{conv_lstm_forward.2} parent=23 // pred_check
            _
          $region26: #{conv_lstm_forward.2} parent=23 // pred_check_branch
            %141 = sbr.rel (0) target = $region28
          $region27: #{conv_lstm_forward.2} parent=23 // pred_region
            // Predicated region
            $region29: #{conv_lstm_forward.2} parent=27 // pred_check
              _
            $region30: #{conv_lstm_forward.2} parent=27 // pred_check_branch
              %143 = sbr.rel (0) target = $region32
            $region31: #{conv_lstm_forward.2} parent=27 // pred_region
              loop: start=0, step=1, limit=1
              $region33: #{conv_lstm_forward.2} parent=31 // loop_pre_header
                _
              $region34: #{conv_lstm_forward.2} parent=31 // loop_header
                %s145 = sphi 0, %s149
                %p146 = scmp.ge.s32.totalorder %s145, 1
                %s150 = sphi %s139, %s139
                %s151 = sphi %s136, %s136
              $region35: #{conv_lstm_forward.2} parent=31 // loop_header_branch
                %148 = sbr.rel (%p146) target = $region39
              $region36: #{conv_lstm_forward.2} parent=31 // loop_body
                %v152 = vld [vmem:[%s150] sm:$0xff]
                %153 = vst [vmem:[%s151] sm:$0xff] %v152
                %v154 = vld [vmem:[%s150 + $0x8] sm:$0xff]
                %155 = vst [vmem:[%s151 + $0x8] sm:$0xff] %v154
                %v156 = vld [vmem:[%s150 + $0x20] sm:$0xff]
                %157 = vst [vmem:[%s151 + $0x10] sm:$0xff] %v156
                %v158 = vld [vmem:[%s150 + $0x28] sm:$0xff]
                %159 = vst [vmem:[%s151 + $0x18] sm:$0xff] %v158
                %v160 = vld [vmem:[%s150 + $0x40] sm:$0xff]
                %161 = vst [vmem:[%s151 + $0x20] sm:$0xff] %v160
                %v162 = vld [vmem:[%s150 + $0x48] sm:$0xff]
                %163 = vst [vmem:[%s151 + $0x28] sm:$0xff] %v162
                %v164 = vld [vmem:[%s150 + $0x60] sm:$0xff]
                %165 = vst [vmem:[%s151 + $0x30] sm:$0xff] %v164
                %v166 = vld [vmem:[%s150 + $0x68] sm:$0xff]
                %167 = vst [vmem:[%s151 + $0x38] sm:$0xff] %v166
                %v168 = vld [vmem:[%s150 + $0x80] sm:$0xff]
                %169 = vst [vmem:[%s151 + $0x40] sm:$0xff] %v168
                %v170 = vld [vmem:[%s150 + $0x88] sm:$0xff]
                %171 = vst [vmem:[%s151 + $0x48] sm:$0xff] %v170
              $region37: #{conv_lstm_forward.2} parent=31 // loop_footer
                %s149 = sadd.s32 1, %s145
              $region38: #{conv_lstm_forward.2} parent=31 // loop_footer_branch
                %144 = sbr.rel target = $region34
              $region39: #{conv_lstm_forward.2} parent=31 // loop_exit
                _
            $region32: #{conv_lstm_forward.2} parent=27 // pred_fallthru
              _
            // Predicated region
            $region40: #{conv_lstm_forward.2} parent=27 // pred_check
              _
            $region41: #{conv_lstm_forward.2} parent=27 // pred_check_branch
              %173 = sbr.rel target = $region43
            $region42: #{conv_lstm_forward.2} parent=27 // pred_region
              _
            $region43: #{conv_lstm_forward.2} parent=27 // pred_fallthru
              _
          $region28: #{conv_lstm_forward.2} parent=23 // pred_fallthru
            _
          %174 = vnop
        $region24: #{conv_lstm_forward.2} parent=19 // pred_fallthru
          _
        // Predicated region
        $region44: #{conv_lstm_forward.2} parent=19 // pred_check
          %p175 = pneg %p76
        $region45: #{conv_lstm_forward.2} parent=19 // pred_check_branch
          %177 = sbr.rel (%p175) target = $region47
        $region46: #{conv_lstm_forward.2} parent=19 // pred_region
          %s178 = sand.u32 %s66, 1
          %s179 = sand.u32 %s66, 1
          %s180 = smul.addr %s179, 128
          %s181 = scalar_lea.vmem [#allocation3], %s180
          %s182 = smul.u32 4, %s9
          %s183 = smul.addr %s182, 8
          %s184 = scalar_lea.vmem %s2, %s183
          // Predicated region
          $region48: #{conv_lstm_forward.2} parent=46 // pred_check
            _
          $region49: #{conv_lstm_forward.2} parent=46 // pred_check_branch
            %186 = sbr.rel (0) target = $region51
          $region50: #{conv_lstm_forward.2} parent=46 // pred_region
            // Predicated region
            $region52: #{conv_lstm_forward.2} parent=50 // pred_check
              _
            $region53: #{conv_lstm_forward.2} parent=50 // pred_check_branch
              %188 = sbr.rel (0) target = $region55
            $region54: #{conv_lstm_forward.2} parent=50 // pred_region
              loop: start=0, step=1, limit=1
              $region56: #{conv_lstm_forward.2} parent=54 // loop_pre_header
                _
              $region57: #{conv_lstm_forward.2} parent=54 // loop_header
                %s190 = sphi 0, %s194
                %p191 = scmp.ge.s32.totalorder %s190, 1
                %s195 = sphi %s184, %s184
                %s196 = sphi %s181, %s181
              $region58: #{conv_lstm_forward.2} parent=54 // loop_header_branch
                %193 = sbr.rel (%p191) target = $region62
              $region59: #{conv_lstm_forward.2} parent=54 // loop_body
                %v197 = vld [vmem:[%s195] sm:$0xff]
                %198 = vst [vmem:[%s196] sm:$0xff] %v197
                %v199 = vld [vmem:[%s195 + $0x8] sm:$0xff]
                %200 = vst [vmem:[%s196 + $0x8] sm:$0xff] %v199
                %v201 = vld [vmem:[%s195 + $0x10] sm:$0xff]
                %202 = vst [vmem:[%s196 + $0x10] sm:$0xff] %v201
                %v203 = vld [vmem:[%s195 + $0x18] sm:$0xff]
                %204 = vst [vmem:[%s196 + $0x18] sm:$0xff] %v203
                %v205 = vld [vmem:[%s195 + $0x40] sm:$0xff]
                %206 = vst [vmem:[%s196 + $0x20] sm:$0xff] %v205
                %v207 = vld [vmem:[%s195 + $0x48] sm:$0xff]
                %208 = vst [vmem:[%s196 + $0x28] sm:$0xff] %v207
                %v209 = vld [vmem:[%s195 + $0x50] sm:$0xff]
                %210 = vst [vmem:[%s196 + $0x30] sm:$0xff] %v209
                %v211 = vld [vmem:[%s195 + $0x58] sm:$0xff]
                %212 = vst [vmem:[%s196 + $0x38] sm:$0xff] %v211
                %v213 = vld [vmem:[%s195 + $0x80] sm:$0xff]
                %214 = vst [vmem:[%s196 + $0x40] sm:$0xff] %v213
                %v215 = vld [vmem:[%s195 + $0x88] sm:$0xff]
                %216 = vst [vmem:[%s196 + $0x48] sm:$0xff] %v215
                %v217 = vld [vmem:[%s195 + $0x90] sm:$0xff]
                %218 = vst [vmem:[%s196 + $0x50] sm:$0xff] %v217
                %v219 = vld [vmem:[%s195 + $0x98] sm:$0xff]
                %220 = vst [vmem:[%s196 + $0x58] sm:$0xff] %v219
                %v221 = vld [vmem:[%s195 + $0xc0] sm:$0xff]
                %222 = vst [vmem:[%s196 + $0x60] sm:$0xff] %v221
                %v223 = vld [vmem:[%s195 + $0xc8] sm:$0xff]
                %224 = vst [vmem:[%s196 + $0x68] sm:$0xff] %v223
                %v225 = vld [vmem:[%s195 + $0xd0] sm:$0xff]
                %226 = vst [vmem:[%s196 + $0x70] sm:$0xff] %v225
                %v227 = vld [vmem:[%s195 + $0xd8] sm:$0xff]
                %228 = vst [vmem:[%s196 + $0x78] sm:$0xff] %v227
              $region60: #{conv_lstm_forward.2} parent=54 // loop_footer
                %s194 = sadd.s32 1, %s190
              $region61: #{conv_lstm_forward.2} parent=54 // loop_footer_branch
                %189 = sbr.rel target = $region57
              $region62: #{conv_lstm_forward.2} parent=54 // loop_exit
                _
            $region55: #{conv_lstm_forward.2} parent=50 // pred_fallthru
              _
            // Predicated region
            $region63: #{conv_lstm_forward.2} parent=50 // pred_check
              _
            $region64: #{conv_lstm_forward.2} parent=50 // pred_check_branch
              %230 = sbr.rel target = $region66
            $region65: #{conv_lstm_forward.2} parent=50 // pred_region
              _
            $region66: #{conv_lstm_forward.2} parent=50 // pred_fallthru
              _
          $region51: #{conv_lstm_forward.2} parent=46 // pred_fallthru
            _
          %231 = vnop
        $region47: #{conv_lstm_forward.2} parent=19 // pred_fallthru
          _
      $region20: #{conv_lstm_forward.2} parent=5 // pred_fallthru
        _
      %p232 = scmp.le.s32.totalorder 1, %s9
      %p233 = scmp.lt.s32.totalorder %s9, 3
      %p234 = pnand %p232, %p233
      %p235 = pneg %p234
      // Predicated region
      $region67: #{conv_lstm_forward.2} parent=5 // pred_check
        _
      $region68: #{conv_lstm_forward.2} parent=5 // pred_check_branch
        %237 = sbr.rel (%p234) target = $region70
      $region69: #{conv_lstm_forward.2} parent=5 // pred_region
        %s238 = ssub.s32 %s9, 1
        %s239 = sand.u32 %s22, 1
        %s240 = sand.u32 %s22, 1
        %s241 = smul.addr %s240, 80
        %s242 = scalar_lea.vmem [#allocation2], %s241
        // Predicated region
        $region71: #{conv_lstm_forward.2} parent=69 // pred_check
          %p243 = pneg %p35
        $region72: #{conv_lstm_forward.2} parent=69 // pred_check_branch
          %245 = sbr.rel (%p243) target = $region74
        $region73: #{conv_lstm_forward.2} parent=69 // pred_region
          _
        $region74: #{conv_lstm_forward.2} parent=69 // pred_fallthru
          _
        %s246 = sand.u32 %s69, 1
        %s247 = sand.u32 %s69, 1
        %s248 = smul.addr %s247, 128
        %s249 = scalar_lea.vmem [#allocation3], %s248
        // Predicated region
        $region75: #{conv_lstm_forward.2} parent=69 // pred_check
          %p250 = pneg %p82
        $region76: #{conv_lstm_forward.2} parent=69 // pred_check_branch
          %252 = sbr.rel (%p250) target = $region78
        $region77: #{conv_lstm_forward.2} parent=69 // pred_region
          _
        $region78: #{conv_lstm_forward.2} parent=69 // pred_fallthru
          _
        %s253 = sand.u32 %s22, 1
        %s254 = sand.u32 %s22, 1
        %s255 = smul.addr %s254, 80
        %s256 = scalar_lea.vmem [#allocation2], %s255
        %p257 = pneg %p35
        %p258 = pneg %p32
        %p259 = pneg %p56
        %p260 = pneg %p53
        %s261 = sand.u32 %s69, 1
        %s262 = sand.u32 %s69, 1
        %s263 = smul.addr %s262, 128
        %s264 = scalar_lea.vmem [#allocation3], %s263
        %p265 = pneg %p82
        %p266 = pneg %p79
        %p267 = pneg %p108
        %p268 = pneg %p105
        %s269 = sand.u32 %s95, 1
        %s270 = sand.u32 %s95, 1
        %s271 = smul.addr %s270, 128
        %s272 = scalar_lea.vmem [#allocation4], %s271
        %s273 = smul.u32 4, %s14
        %s274 = smul.u32 4, %s14
        %s275 = smul.u32 4, %s14
        %v277 = vld [vmem:[%s1] sm:$0xf]
        %v278 = vld [vmem:[%s1 + $0x4] sm:$0xf]
        %v279 = vld [vmem:[%s1 + $0x8] sm:$0xf]
        %v280 = vld [vmem:[%s1 + $0xc] sm:$0xf]
        %v281 = vld [vmem:[%s242] sm:$0xff]
        %v282 = vld [vmem:[%s242 + $0x8] sm:$0xff]
        %v283 = vld [vmem:[%s242 + $0x10] sm:$0xff]
        %v284 = vld [vmem:[%s242 + $0x18] sm:$0xff]
        %v285 = vld [vmem:[%s242 + $0x20] sm:$0xff]
        %v286 = vld [vmem:[%s242 + $0x28] sm:$0xff]
        %v287 = vld [vmem:[%s242 + $0x30] sm:$0xff]
        %v288 = vld [vmem:[%s242 + $0x38] sm:$0xff]
        %v289 = vld [vmem:[%s242 + $0x40] sm:$0x33]
        %v290 = vld [vmem:[%s242 + $0x48] sm:$0x33]
        %v291 = vld [vmem:[%s249] sm:$0xff]
        %v292 = vld [vmem:[%s249 + $0x8] sm:$0xff]
        %v293 = vld [vmem:[%s249 + $0x10] sm:$0xff]
        %v294 = vld [vmem:[%s249 + $0x18] sm:$0xff]
        %v295 = vld [vmem:[%s249 + $0x20] sm:$0xff]
        %v296 = vld [vmem:[%s249 + $0x28] sm:$0xff]
        %v297 = vld [vmem:[%s249 + $0x30] sm:$0xff]
        %v298 = vld [vmem:[%s249 + $0x38] sm:$0xff]
        %v299 = vld [vmem:[%s249 + $0x40] sm:$0xff]
        %v300 = vld [vmem:[%s249 + $0x48] sm:$0xff]
        %v301 = vld [vmem:[%s249 + $0x50] sm:$0xff]
        %v302 = vld [vmem:[%s249 + $0x58] sm:$0xff]
        %v303 = vld [vmem:[%s249 + $0x60] sm:$0xff]
        %v304 = vld [vmem:[%s249 + $0x68] sm:$0xff]
        %v305 = vld [vmem:[%s249 + $0x70] sm:$0xff]
        %v306 = vld [vmem:[%s249 + $0x78] sm:$0xff]
        %v311 = vunpack.c.l.b16 %v277
        %v312 = vunpack.c.l.b16 %v278
        %v313 = vunpack.c.l.b16 %v279
        %v314 = vunpack.c.l.b16 %v280
        %v315 = vpack.c.b16 %v312, %v311
        %v316 = vpack.c.b16 %v314, %v313
        %v327 = vunpack.c.l.b16 %v281
        %v328 = vunpack.c.h.b16 %v281
        %v329 = vunpack.c.l.b16 %v282
        %v330 = vunpack.c.h.b16 %v282
        %v331 = vunpack.c.l.b16 %v283
        %v332 = vunpack.c.h.b16 %v283
        %v333 = vunpack.c.l.b16 %v284
        %v334 = vunpack.c.h.b16 %v284
        %v335 = vunpack.c.l.b16 %v285
        %v336 = vunpack.c.h.b16 %v285
        %v337 = vunpack.c.l.b16 %v286
        %v338 = vunpack.c.h.b16 %v286
        %v339 = vunpack.c.l.b16 %v287
        %v340 = vunpack.c.h.b16 %v287
        %v341 = vunpack.c.l.b16 %v288
        %v342 = vunpack.c.h.b16 %v288
        %v343 = vunpack.c.l.b16 %v289
        %v344 = vunpack.c.h.b16 %v289
        %v345 = vunpack.c.l.b16 %v290
        %v346 = vunpack.c.h.b16 %v290
        %v347 = vpack.c.b16 %v331, %v327
        %v348 = vpack.c.b16 %v332, %v328
        %v349 = vpack.c.b16 %v333, %v329
        %v350 = vpack.c.b16 %v334, %v330
        %v351 = vpack.c.b16 %v339, %v335
        %v352 = vpack.c.b16 %v340, %v336
        %v353 = vpack.c.b16 %v341, %v337
        %v354 = vpack.c.b16 %v342, %v338
        %v355 = vpack.c.b16 %v343, %v343
        %v356 = vpack.c.b16 %v344, %v344
        %v357 = vpack.c.b16 %v345, %v345
        %v358 = vpack.c.b16 %v346, %v346
        %vm367 = vcmask 293888
        %v369 = vsel %vm367, %v315, 0
        %v372 = vsel %vm367, %v316, 0
        %vm374 = vcmask 1041408
        %v376 = vsel %vm374, %v355, 0
        %v379 = vsel %vm374, %v356, 0
        %v382 = vsel %vm374, %v357, 0
        %v385 = vsel %vm374, %v358, 0
        %387 = vmatprep.subr.bf16.mxu0 %v348
        %388 = vmatpush1.bf16.msra.mxu0 %v347
        %389 = vmatprep.subr.bf16.mxu0 %v352
        %390 = vmatpush1.bf16.msra.mxu0 %v351
        %391 = vmatprep.subr.bf16.mxu0 %v379
        %392 = vmatpush1.bf16.msra.mxu0 %v376
        %393 = vmatprep.subr.bf16.mxu0 0
        %394 = vmatpush1.bf16.msra.mxu0 0
        %395 = vmatprep.subr.bf16.mxu0 0
        %396 = vmatpush1.bf16.msra.mxu0 0
        %397 = vmatprep.subr.bf16.mxu0 0
        %398 = vmatpush1.bf16.msra.mxu0 0
        %399 = vmatprep.subr.bf16.mxu0 0
        %400 = vmatpush1.bf16.msra.mxu0 0
        %401 = vmatprep.subr.bf16.mxu0 0
        %402 = vmatpush1.bf16.msra.mxu0 0
        %403 = vmatprep.subr.bf16.mxu0 0
        %404 = vmatpush1.bf16.msra.mxu0 0
        %405 = vmatprep.subr.bf16.mxu0 0
        %406 = vmatpush1.bf16.msra.mxu0 0
        %407 = vmatprep.subr.bf16.mxu0 0
        %408 = vmatpush1.bf16.msra.mxu0 0
        %409 = vmatprep.subr.bf16.mxu0 0
        %410 = vmatpush1.bf16.msra.mxu0 0
        %411 = vmatprep.subr.bf16.mxu0 0
        %412 = vmatpush1.bf16.msra.mxu0 0
        %413 = vmatprep.subr.bf16.mxu0 0
        %414 = vmatpush1.bf16.msra.mxu0 0
        %415 = vmatprep.subr.bf16.mxu0 0
        %416 = vmatpush1.bf16.msra.mxu0 0
        %417 = vmatprep.subr.bf16.mxu0 0
        %418 = vmatpush1.bf16.msra.mxu0 0
        %419 = vmatprep.mubr.bf16.mxu0 0
        %420 = vmatmul.mubr.bf16.gmra.mrb[0].mxu0 %v369
        %v421 = vpop.f32.mrb[0].mxu0
        %v422 = vadd.f32 %v291, %v421
        %v423 = vpop.f32.mrb[0].mxu0
        %v424 = vadd.f32 %v292, %v423
        %v425 = vpop.f32.mrb[0].mxu0
        %v426 = vadd.f32 %v295, %v425
        %v427 = vpop.f32.mrb[0].mxu0
        %v428 = vadd.f32 %v296, %v427
        %429 = vmatprep.mubr.bf16.mxu0 0
        %430 = vmatmul.mubr.bf16.gmra.mrb[0].mxu0 %v372
        %v431 = vpop.f32.mrb[0].mxu0
        %v432 = vadd.f32 %v299, %v431
        %v433 = vpop.f32.mrb[0].mxu0
        %v434 = vadd.f32 %v300, %v433
        %v435 = vpop.f32.mrb[0].mxu0
        %v436 = vadd.f32 %v303, %v435
        %v437 = vpop.f32.mrb[0].mxu0
        %v438 = vadd.f32 %v304, %v437
        %439 = vdwg.mxu0
        %440 = vmatprep.subr.bf16.mxu0 %v350
        %441 = vmatpush1.bf16.msra.mxu0 %v349
        %442 = vmatprep.subr.bf16.mxu0 %v354
        %443 = vmatpush1.bf16.msra.mxu0 %v353
        %444 = vmatprep.subr.bf16.mxu0 %v385
        %445 = vmatpush1.bf16.msra.mxu0 %v382
        %446 = vmatprep.subr.bf16.mxu0 0
        %447 = vmatpush1.bf16.msra.mxu0 0
        %448 = vmatprep.subr.bf16.mxu0 0
        %449 = vmatpush1.bf16.msra.mxu0 0
        %450 = vmatprep.subr.bf16.mxu0 0
        %451 = vmatpush1.bf16.msra.mxu0 0
        %452 = vmatprep.subr.bf16.mxu0 0
        %453 = vmatpush1.bf16.msra.mxu0 0
        %454 = vmatprep.subr.bf16.mxu0 0
        %455 = vmatpush1.bf16.msra.mxu0 0
        %456 = vmatprep.subr.bf16.mxu0 0
        %457 = vmatpush1.bf16.msra.mxu0 0
        %458 = vmatprep.subr.bf16.mxu0 0
        %459 = vmatpush1.bf16.msra.mxu0 0
        %460 = vmatprep.subr.bf16.mxu0 0
        %461 = vmatpush1.bf16.msra.mxu0 0
        %462 = vmatprep.subr.bf16.mxu0 0
        %463 = vmatpush1.bf16.msra.mxu0 0
        %464 = vmatprep.subr.bf16.mxu0 0
        %465 = vmatpush1.bf16.msra.mxu0 0
        %466 = vmatprep.subr.bf16.mxu0 0
        %467 = vmatpush1.bf16.msra.mxu0 0
        %468 = vmatprep.subr.bf16.mxu0 0
        %469 = vmatpush1.bf16.msra.mxu0 0
        %470 = vmatprep.subr.bf16.mxu0 0
        %471 = vmatpush1.bf16.msra.mxu0 0
        %472 = vmatprep.mubr.bf16.mxu0 0
        %473 = vmatmul.mubr.bf16.gmra.mrb[0].mxu0 %v369
        %v474 = vpop.f32.mrb[0].mxu0
        %v475 = vadd.f32 %v293, %v474
        %v476 = vpop.f32.mrb[0].mxu0
        %v477 = vadd.f32 %v294, %v476
        %v478 = vpop.f32.mrb[0].mxu0
        %v479 = vadd.f32 %v297, %v478
        %v480 = vpop.f32.mrb[0].mxu0
        %v481 = vadd.f32 %v298, %v480
        %482 = vmatprep.mubr.bf16.mxu0 0
        %483 = vmatmul.mubr.bf16.gmra.mrb[0].mxu0 %v372
        %v484 = vpop.f32.mrb[0].mxu0
        %v485 = vadd.f32 %v301, %v484
        %v486 = vpop.f32.mrb[0].mxu0
        %v487 = vadd.f32 %v302, %v486
        %v488 = vpop.f32.mrb[0].mxu0
        %v489 = vadd.f32 %v305, %v488
        %v490 = vpop.f32.mrb[0].mxu0
        %v491 = vadd.f32 %v306, %v490
        %492 = vdwg.mxu0
        %493 = vst [vmem:[%s272] sm:$0xff] %v422
        %494 = vst [vmem:[%s272 + $0x8] sm:$0xff] %v424
        %495 = vst [vmem:[%s272 + $0x10] sm:$0xff] %v475
        %496 = vst [vmem:[%s272 + $0x18] sm:$0xff] %v477
        %497 = vst [vmem:[%s272 + $0x20] sm:$0xff] %v426
        %498 = vst [vmem:[%s272 + $0x28] sm:$0xff] %v428
        %499 = vst [vmem:[%s272 + $0x30] sm:$0xff] %v479
        %500 = vst [vmem:[%s272 + $0x38] sm:$0xff] %v481
        %501 = vst [vmem:[%s272 + $0x40] sm:$0xff] %v432
        %502 = vst [vmem:[%s272 + $0x48] sm:$0xff] %v434
        %503 = vst [vmem:[%s272 + $0x50] sm:$0xff] %v485
        %504 = vst [vmem:[%s272 + $0x58] sm:$0xff] %v487
        %505 = vst [vmem:[%s272 + $0x60] sm:$0xff] %v436
        %506 = vst [vmem:[%s272 + $0x68] sm:$0xff] %v438
        %507 = vst [vmem:[%s272 + $0x70] sm:$0xff] %v489
        %508 = vst [vmem:[%s272 + $0x78] sm:$0xff] %v491
        %s509 = sand.u32 %s95, 1
        %s510 = sand.u32 %s95, 1
        %s511 = smul.addr %s510, 128
        %s512 = scalar_lea.vmem [#allocation4], %s511
        // Predicated region
        $region79: #{conv_lstm_forward.2} parent=69 // pred_check
          %p513 = pneg %p105
        $region80: #{conv_lstm_forward.2} parent=69 // pred_check_branch
          %515 = sbr.rel (%p513) target = $region82
        $region81: #{conv_lstm_forward.2} parent=69 // pred_region
          %s516 = smul.u32 4, %s14
          %s517 = smul.addr %s516, 8
          %s518 = scalar_lea.vmem %s3, %s517
          // Predicated region
          $region83: #{conv_lstm_forward.2} parent=81 // pred_check
            _
          $region84: #{conv_lstm_forward.2} parent=81 // pred_check_branch
            %520 = sbr.rel (0) target = $region86
          $region85: #{conv_lstm_forward.2} parent=81 // pred_region
            // Predicated region
            $region87: #{conv_lstm_forward.2} parent=85 // pred_check
              _
            $region88: #{conv_lstm_forward.2} parent=85 // pred_check_branch
              %522 = sbr.rel (0) target = $region90
            $region89: #{conv_lstm_forward.2} parent=85 // pred_region
              loop: start=0, step=1, limit=1
              $region91: #{conv_lstm_forward.2} parent=89 // loop_pre_header
                _
              $region92: #{conv_lstm_forward.2} parent=89 // loop_header
                %s524 = sphi 0, %s528
                %p525 = scmp.ge.s32.totalorder %s524, 1
                %s529 = sphi %s512, %s512
                %s530 = sphi %s518, %s518
              $region93: #{conv_lstm_forward.2} parent=89 // loop_header_branch
                %527 = sbr.rel (%p525) target = $region97
              $region94: #{conv_lstm_forward.2} parent=89 // loop_body
                %v531 = vld [vmem:[%s529] sm:$0xff]
                %532 = vst [vmem:[%s530] sm:$0xff] %v531
                %v533 = vld [vmem:[%s529 + $0x8] sm:$0xff]
                %534 = vst [vmem:[%s530 + $0x8] sm:$0xff] %v533
                %v535 = vld [vmem:[%s529 + $0x10] sm:$0xff]
                %536 = vst [vmem:[%s530 + $0x10] sm:$0xff] %v535
                %v537 = vld [vmem:[%s529 + $0x18] sm:$0xff]
                %538 = vst [vmem:[%s530 + $0x18] sm:$0xff] %v537
                %v539 = vld [vmem:[%s529 + $0x20] sm:$0xff]
                %540 = vst [vmem:[%s530 + $0x40] sm:$0xff] %v539
                %v541 = vld [vmem:[%s529 + $0x28] sm:$0xff]
                %542 = vst [vmem:[%s530 + $0x48] sm:$0xff] %v541
                %v543 = vld [vmem:[%s529 + $0x30] sm:$0xff]
                %544 = vst [vmem:[%s530 + $0x50] sm:$0xff] %v543
                %v545 = vld [vmem:[%s529 + $0x38] sm:$0xff]
                %546 = vst [vmem:[%s530 + $0x58] sm:$0xff] %v545
                %v547 = vld [vmem:[%s529 + $0x40] sm:$0xff]
                %548 = vst [vmem:[%s530 + $0x80] sm:$0xff] %v547
                %v549 = vld [vmem:[%s529 + $0x48] sm:$0xff]
                %550 = vst [vmem:[%s530 + $0x88] sm:$0xff] %v549
                %v551 = vld [vmem:[%s529 + $0x50] sm:$0xff]
                %552 = vst [vmem:[%s530 + $0x90] sm:$0xff] %v551
                %v553 = vld [vmem:[%s529 + $0x58] sm:$0xff]
                %554 = vst [vmem:[%s530 + $0x98] sm:$0xff] %v553
                %v555 = vld [vmem:[%s529 + $0x60] sm:$0xff]
                %556 = vst [vmem:[%s530 + $0xc0] sm:$0xff] %v555
                %v557 = vld [vmem:[%s529 + $0x68] sm:$0xff]
                %558 = vst [vmem:[%s530 + $0xc8] sm:$0xff] %v557
                %v559 = vld [vmem:[%s529 + $0x70] sm:$0xff]
                %560 = vst [vmem:[%s530 + $0xd0] sm:$0xff] %v559
                %v561 = vld [vmem:[%s529 + $0x78] sm:$0xff]
                %562 = vst [vmem:[%s530 + $0xd8] sm:$0xff] %v561
              $region95: #{conv_lstm_forward.2} parent=89 // loop_footer
                %s528 = sadd.s32 1, %s524
              $region96: #{conv_lstm_forward.2} parent=89 // loop_footer_branch
                %523 = sbr.rel target = $region92
              $region97: #{conv_lstm_forward.2} parent=89 // loop_exit
                _
            $region90: #{conv_lstm_forward.2} parent=85 // pred_fallthru
              _
            // Predicated region
            $region98: #{conv_lstm_forward.2} parent=85 // pred_check
              _
            $region99: #{conv_lstm_forward.2} parent=85 // pred_check_branch
              %564 = sbr.rel target = $region101
            $region100: #{conv_lstm_forward.2} parent=85 // pred_region
              _
            $region101: #{conv_lstm_forward.2} parent=85 // pred_fallthru
              _
          $region86: #{conv_lstm_forward.2} parent=81 // pred_fallthru
            _
          %565 = vnop
        $region82: #{conv_lstm_forward.2} parent=69 // pred_fallthru
          _
      $region70: #{conv_lstm_forward.2} parent=5 // pred_fallthru
        _
      %p566 = scmp.le.s32.totalorder 2, %s9
      // Predicated region
      $region102: #{conv_lstm_forward.2} parent=5 // pred_check
        %p567 = pneg %p566
      $region103: #{conv_lstm_forward.2} parent=5 // pred_check_branch
        %569 = sbr.rel (%p567) target = $region105
      $region104: #{conv_lstm_forward.2} parent=5 // pred_region
        %s570 = ssub.s32 %s9, 2
        // Predicated region
        $region106: #{conv_lstm_forward.2} parent=104 // pred_check
          %p571 = pneg %p111
        $region107: #{conv_lstm_forward.2} parent=104 // pred_check_branch
          %573 = sbr.rel (%p571) target = $region109
        $region108: #{conv_lstm_forward.2} parent=104 // pred_region
          %s574 = sand.u32 %s96, 1
          %s575 = sand.u32 %s96, 1
          %s576 = smul.addr %s575, 128
          %s577 = scalar_lea.vmem [#allocation4], %s576
        $region109: #{conv_lstm_forward.2} parent=104 // pred_fallthru
          _
      $region105: #{conv_lstm_forward.2} parent=5 // pred_fallthru
        _
    $region6: #{conv_lstm_forward.2} parent=1 // loop_footer
      %s13 = sadd.s32 1, %s9
    $region7: #{conv_lstm_forward.2} parent=1 // loop_footer_branch
      %8 = sbr.rel target = $region3
    $region8: #{conv_lstm_forward.2} parent=1 // loop_exit
      _

// kernel: conv_lstm_forward.3
$region0: #{conv_lstm_forward.3}
  #allocation0 [shape = 'u32[]', space=smem, size = 0x4, offset = 0x4, fixed_abs, tag = 'smem constant byte address 0x4 - core index']
  #allocation1 [shape = 'u32[144,128]{1,0:T(1,128)}', space=vmem, size = 0x12000, scoped, tag = 'internal scratch']
  #allocation2 [shape = 'f32[360,256]{1,0:T(8,128)}', space=vmem, size = 0x5a000, scoped, tag = 'scratch operand']
  #allocation3 [shape = 'f32[40,256]{1,0:T(8,128)}', space=vmem, size = 0xa000, scoped, tag = 'scratch operand']
  %s0 = inlined_call_operand.vmem [shape: f32[32,1024], index: 0, kind: input, shape index: {}]
  %s1 = inlined_call_operand.vmem [shape: f32[9,32,256], index: 1, kind: input, shape index: {}]
  %s2 = inlined_call_operand.vmem [shape: bf16[32,72], index: 2, kind: input, shape index: {}]
  %s3 = inlined_call_operand.vmem [shape: bf16[128,360], index: 3, kind: input, shape index: {}]
  %s4 = inlined_call_operand.vmem [shape: f32[2,8,256], index: 4, kind: input, shape index: {}]
  %s5 = inlined_call_operand.vmem [shape: f32[2,32,256], index: 5, kind: input, shape index: {}]
  %s6 = inlined_call_operand.vmem [shape: f32[128,256], index: 6, kind: input, shape index: {}]
  %s7 = inlined_call_operand.vmem [shape: bf16[3,64], index: 7, kind: input, shape index: {}]
  %s8 = inlined_call_operand.vmem [shape: f32[3,1], index: 8, kind: input, shape index: {}]
  %s9 = inlined_call_operand.vmem [shape: f32[3,256], index: 9, kind: output, shape index: {}]
  %s10 = sld [smem:[#allocation0]]
  $region100: #{conv_lstm_forward.3} parent=0
    _
  %s12 = ssub.s32 1, %s10
  %s13 = scalar_select 0, %s12, %s10
  $region1: #{conv_lstm_forward.3} parent=0
    #allocation4 [shape = 'u8[65536]{0}', space=vmem, size = 0x10000, scoped, tag = 'input window, operand 0']
    loop: start=0, step=1, limit=6
    $region2: #{conv_lstm_forward.3} parent=1 // loop_pre_header
      _
    $region3: #{conv_lstm_forward.3} parent=1 // loop_header
      %s15 = sphi 0, %s19
      %p16 = scmp.ge.s32.totalorder %s15, 6
      %s25 = sphi 0, %s27
      %s28 = sphi 0, %s25
      %s29 = sphi 0, %s28
      %s45 = sphi 0, %s29
      %s49 = sphi 0, %s49
      %s51 = sphi 0, %s49
      %s52 = sphi 0, %s51
      %s66 = sphi 0, %s52
      %s70 = sphi 0, %s70
      %s72 = sphi 0, %s70
      %s73 = sphi 0, %s72
      %s87 = sphi 0, %s73
      %s91 = sphi 0, %s91
      %s93 = sphi 0, %s91
      %s94 = sphi 0, %s93
      %s108 = sphi 0, %s94
      %s112 = sphi 0, %s112
      %s114 = sphi 0, %s112
      %s115 = sphi 0, %s114
      %s129 = sphi 0, %s115
      %s133 = sphi 0, %s133
      %s135 = sphi 0, %s133
      %s136 = sphi 0, %s135
      %s150 = sphi 0, %s136
      %s154 = sphi 0, %s154
      %s156 = sphi 0, %s154
      %s157 = sphi 0, %s156
      %s171 = sphi 0, %s157
      %s175 = sphi 0, %s175
      %s177 = sphi 0, %s175
      %s178 = sphi 0, %s177
      %s192 = sphi 0, %s178
      %s196 = sphi 0, %s196
      %s198 = sphi 0, %s196
      %s199 = sphi 0, %s198
      %s213 = sphi 0, %s199
      %s217 = sphi 0, %s217
      %s219 = sphi 0, %s217
      %s220 = sphi 0, %s219
      %s234 = sphi 0, %s220
    $region4: #{conv_lstm_forward.3} parent=1 // loop_header_branch
      %18 = sbr.rel (%p16) target = $region8
    $region5: #{conv_lstm_forward.3} parent=1 // loop_body
      %s20 = ssub.s32 %s15, 1
      %s21 = ssub.s32 %s15, 2
      %s22 = sadd.s32 %s15, 1
      %s23 = ssub.s32 %s15, %s22
      %p24 = scmp.eq.s32.totalorder %s23, 0
      %s26 = sadd.s32 %s25, 1
      %s27 = scalar_select %p24, %s25, %s26
      %p30 = pneg %p24
      %p31 = scmp.eq.s32.totalorder %s15, 3
      %p32 = por %p30, %p31
      %p33 = scmp.ne.s32.totalorder %s25, %s28
      %p34 = scmp.eq.s32.totalorder %s15, 0
      %p35 = por %p33, %p34
      %p36 = scmp.ne.s32.totalorder %s25, %s28
      %p37 = scmp.eq.s32.totalorder %s20, 3
      %p38 = por %p36, %p37
      %p39 = scmp.ne.s32.totalorder %s28, %s29
      %p40 = scmp.eq.s32.totalorder %s20, 0
      %p41 = por %p39, %p40
      %p42 = scmp.ne.s32.totalorder %s28, %s29
      %p43 = scmp.eq.s32.totalorder %s21, 3
      %p44 = por %p42, %p43
      %p46 = scmp.ne.s32.totalorder %s29, %s45
      %p47 = scmp.eq.s32.totalorder %s21, 0
      %p48 = por %p46, %p47
      %s50 = sadd.s32 %s49, 1
      %p53 = scmp.eq.s32.totalorder %s15, 3
      %p54 = scmp.ne.s32.totalorder %s49, %s51
      %p55 = scmp.eq.s32.totalorder %s15, 0
      %p56 = por %p54, %p55
      %p57 = scmp.ne.s32.totalorder %s49, %s51
      %p58 = scmp.eq.s32.totalorder %s20, 3
      %p59 = por %p57, %p58
      %p60 = scmp.ne.s32.totalorder %s51, %s52
      %p61 = scmp.eq.s32.totalorder %s20, 0
      %p62 = por %p60, %p61
      %p63 = scmp.ne.s32.totalorder %s51, %s52
      %p64 = scmp.eq.s32.totalorder %s21, 3
      %p65 = por %p63, %p64
      %p67 = scmp.ne.s32.totalorder %s52, %s66
      %p68 = scmp.eq.s32.totalorder %s21, 0
      %p69 = por %p67, %p68
      %s71 = sadd.s32 %s70, 1
      %p74 = scmp.eq.s32.totalorder %s15, 3
      %p75 = scmp.ne.s32.totalorder %s70, %s72
      %p76 = scmp.eq.s32.totalorder %s15, 0
      %p77 = por %p75, %p76
      %p78 = scmp.ne.s32.totalorder %s70, %s72
      %p79 = scmp.eq.s32.totalorder %s20, 3
      %p80 = por %p78, %p79
      %p81 = scmp.ne.s32.totalorder %s72, %s73
      %p82 = scmp.eq.s32.totalorder %s20, 0
      %p83 = por %p81, %p82
      %p84 = scmp.ne.s32.totalorder %s72, %s73
      %p85 = scmp.eq.s32.totalorder %s21, 3
      %p86 = por %p84, %p85
      %p88 = scmp.ne.s32.totalorder %s73, %s87
      %p89 = scmp.eq.s32.totalorder %s21, 0
      %p90 = por %p88, %p89
      %s92 = sadd.s32 %s91, 1
      %p95 = scmp.eq.s32.totalorder %s15, 3
      %p96 = scmp.ne.s32.totalorder %s91, %s93
      %p97 = scmp.eq.s32.totalorder %s15, 0
      %p98 = por %p96, %p97
      %p99 = scmp.ne.s32.totalorder %s91, %s93
      %p100 = scmp.eq.s32.totalorder %s20, 3
      %p101 = por %p99, %p100
      %p102 = scmp.ne.s32.totalorder %s93, %s94
      %p103 = scmp.eq.s32.totalorder %s20, 0
      %p104 = por %p102, %p103
      %p105 = scmp.ne.s32.totalorder %s93, %s94
      %p106 = scmp.eq.s32.totalorder %s21, 3
      %p107 = por %p105, %p106
      %p109 = scmp.ne.s32.totalorder %s94, %s108
      %p110 = scmp.eq.s32.totalorder %s21, 0
      %p111 = por %p109, %p110
      %s113 = sadd.s32 %s112, 1
      %p116 = scmp.eq.s32.totalorder %s15, 3
      %p117 = scmp.ne.s32.totalorder %s112, %s114
      %p118 = scmp.eq.s32.totalorder %s15, 0
      %p119 = por %p117, %p118
      %p120 = scmp.ne.s32.totalorder %s112, %s114
      %p121 = scmp.eq.s32.totalorder %s20, 3
      %p122 = por %p120, %p121
      %p123 = scmp.ne.s32.totalorder %s114, %s115
      %p124 = scmp.eq.s32.totalorder %s20, 0
      %p125 = por %p123, %p124
      %p126 = scmp.ne.s32.totalorder %s114, %s115
      %p127 = scmp.eq.s32.totalorder %s21, 3
      %p128 = por %p126, %p127
      %p130 = scmp.ne.s32.totalorder %s115, %s129
      %p131 = scmp.eq.s32.totalorder %s21, 0
      %p132 = por %p130, %p131
      %s134 = sadd.s32 %s133, 1
      %p137 = scmp.eq.s32.totalorder %s15, 3
      %p138 = scmp.ne.s32.totalorder %s133, %s135
      %p139 = scmp.eq.s32.totalorder %s15, 0
      %p140 = por %p138, %p139
      %p141 = scmp.ne.s32.totalorder %s133, %s135
      %p142 = scmp.eq.s32.totalorder %s20, 3
      %p143 = por %p141, %p142
      %p144 = scmp.ne.s32.totalorder %s135, %s136
      %p145 = scmp.eq.s32.totalorder %s20, 0
      %p146 = por %p144, %p145
      %p147 = scmp.ne.s32.totalorder %s135, %s136
      %p148 = scmp.eq.s32.totalorder %s21, 3
      %p149 = por %p147, %p148
      %p151 = scmp.ne.s32.totalorder %s136, %s150
      %p152 = scmp.eq.s32.totalorder %s21, 0
      %p153 = por %p151, %p152
      %s155 = sadd.s32 %s154, 1
      %p158 = scmp.eq.s32.totalorder %s15, 3
      %p159 = scmp.ne.s32.totalorder %s154, %s156
      %p160 = scmp.eq.s32.totalorder %s15, 0
      %p161 = por %p159, %p160
      %p162 = scmp.ne.s32.totalorder %s154, %s156
      %p163 = scmp.eq.s32.totalorder %s20, 3
      %p164 = por %p162, %p163
      %p165 = scmp.ne.s32.totalorder %s156, %s157
      %p166 = scmp.eq.s32.totalorder %s20, 0
      %p167 = por %p165, %p166
      %p168 = scmp.ne.s32.totalorder %s156, %s157
      %p169 = scmp.eq.s32.totalorder %s21, 3
      %p170 = por %p168, %p169
      %p172 = scmp.ne.s32.totalorder %s157, %s171
      %p173 = scmp.eq.s32.totalorder %s21, 0
      %p174 = por %p172, %p173
      %s176 = sadd.s32 %s175, 1
      %p179 = scmp.eq.s32.totalorder %s15, 3
      %p180 = scmp.ne.s32.totalorder %s175, %s177
      %p181 = scmp.eq.s32.totalorder %s15, 0
      %p182 = por %p180, %p181
      %p183 = scmp.ne.s32.totalorder %s175, %s177
      %p184 = scmp.eq.s32.totalorder %s20, 3
      %p185 = por %p183, %p184
      %p186 = scmp.ne.s32.totalorder %s177, %s178
      %p187 = scmp.eq.s32.totalorder %s20, 0
      %p188 = por %p186, %p187
      %p189 = scmp.ne.s32.totalorder %s177, %s178
      %p190 = scmp.eq.s32.totalorder %s21, 3
      %p191 = por %p189, %p190
      %p193 = scmp.ne.s32.totalorder %s178, %s192
      %p194 = scmp.eq.s32.totalorder %s21, 0
      %p195 = por %p193, %p194
      %s197 = sadd.s32 %s196, 1
      %p200 = scmp.eq.s32.totalorder %s15, 3
      %p201 = scmp.ne.s32.totalorder %s196, %s198
      %p202 = scmp.eq.s32.totalorder %s15, 0
      %p203 = por %p201, %p202
      %p204 = scmp.ne.s32.totalorder %s196, %s198
      %p205 = scmp.eq.s32.totalorder %s20, 3
      %p206 = por %p204, %p205
      %p207 = scmp.ne.s32.totalorder %s198, %s199
      %p208 = scmp.eq.s32.totalorder %s20, 0
      %p209 = por %p207, %p208
      %p210 = scmp.ne.s32.totalorder %s198, %s199
      %p211 = scmp.eq.s32.totalorder %s21, 3
      %p212 = por %p210, %p211
      %p214 = scmp.ne.s32.totalorder %s199, %s213
      %p215 = scmp.eq.s32.totalorder %s21, 0
      %p216 = por %p214, %p215
      %s218 = sadd.s32 %s217, 1
      %p221 = scmp.eq.s32.totalorder %s15, 3
      %p222 = scmp.ne.s32.totalorder %s217, %s219
      %p223 = scmp.eq.s32.totalorder %s15, 0
      %p224 = por %p222, %p223
      %p225 = scmp.ne.s32.totalorder %s217, %s219
      %p226 = scmp.eq.s32.totalorder %s20, 3
      %p227 = por %p225, %p226
      %p228 = scmp.ne.s32.totalorder %s219, %s220
      %p229 = scmp.eq.s32.totalorder %s20, 0
      %p230 = por %p228, %p229
      %p231 = scmp.ne.s32.totalorder %s219, %s220
      %p232 = scmp.eq.s32.totalorder %s21, 3
      %p233 = por %p231, %p232
      %p235 = scmp.ne.s32.totalorder %s220, %s234
      %p236 = scmp.eq.s32.totalorder %s21, 0
      %p237 = por %p235, %p236
      %p238 = scmp.le.s32.totalorder 1, %s15
      %p239 = scmp.lt.s32.totalorder %s15, 5
      %p240 = pnand %p238, %p239
      %p241 = pneg %p240
      // Predicated region
      $region9: #{conv_lstm_forward.3} parent=5 // pred_check
        _
      $region10: #{conv_lstm_forward.3} parent=5 // pred_check_branch
        %243 = sbr.rel (%p240) target = $region12
      $region11: #{conv_lstm_forward.3} parent=5 // pred_region
        %s244 = ssub.s32 %s15, 1
        // Predicated region
        $region13: #{conv_lstm_forward.3} parent=11 // pred_check
          %p245 = pneg %p62
        $region14: #{conv_lstm_forward.3} parent=11 // pred_check_branch
          %247 = sbr.rel (%p245) target = $region16
        $region15: #{conv_lstm_forward.3} parent=11 // pred_region
          _
        $region16: #{conv_lstm_forward.3} parent=11 // pred_fallthru
          _
        // Predicated region
        $region17: #{conv_lstm_forward.3} parent=11 // pred_check
          %p248 = pneg %p83
        $region18: #{conv_lstm_forward.3} parent=11 // pred_check_branch
          %250 = sbr.rel (%p248) target = $region20
        $region19: #{conv_lstm_forward.3} parent=11 // pred_region
          _
        $region20: #{conv_lstm_forward.3} parent=11 // pred_fallthru
          _
        // Predicated region
        $region21: #{conv_lstm_forward.3} parent=11 // pred_check
          %p251 = pneg %p104
        $region22: #{conv_lstm_forward.3} parent=11 // pred_check_branch
          %253 = sbr.rel (%p251) target = $region24
        $region23: #{conv_lstm_forward.3} parent=11 // pred_region
          _
        $region24: #{conv_lstm_forward.3} parent=11 // pred_fallthru
          _
        // Predicated region
        $region25: #{conv_lstm_forward.3} parent=11 // pred_check
          %p254 = pneg %p125
        $region26: #{conv_lstm_forward.3} parent=11 // pred_check_branch
          %256 = sbr.rel (%p254) target = $region28
        $region27: #{conv_lstm_forward.3} parent=11 // pred_region
          _
        $region28: #{conv_lstm_forward.3} parent=11 // pred_fallthru
          _
        // Predicated region
        $region29: #{conv_lstm_forward.3} parent=11 // pred_check
          %p257 = pneg %p146
        $region30: #{conv_lstm_forward.3} parent=11 // pred_check_branch
          %259 = sbr.rel (%p257) target = $region32
        $region31: #{conv_lstm_forward.3} parent=11 // pred_region
          _
        $region32: #{conv_lstm_forward.3} parent=11 // pred_fallthru
          _
        // Predicated region
        $region33: #{conv_lstm_forward.3} parent=11 // pred_check
          %p260 = pneg %p167
        $region34: #{conv_lstm_forward.3} parent=11 // pred_check_branch
          %262 = sbr.rel (%p260) target = $region36
        $region35: #{conv_lstm_forward.3} parent=11 // pred_region
          _
        $region36: #{conv_lstm_forward.3} parent=11 // pred_fallthru
          _
        // Predicated region
        $region37: #{conv_lstm_forward.3} parent=11 // pred_check
          %p263 = pneg %p188
        $region38: #{conv_lstm_forward.3} parent=11 // pred_check_branch
          %265 = sbr.rel (%p263) target = $region40
        $region39: #{conv_lstm_forward.3} parent=11 // pred_region
          _
        $region40: #{conv_lstm_forward.3} parent=11 // pred_fallthru
          _
        // Predicated region
        $region41: #{conv_lstm_forward.3} parent=11 // pred_check
          %p266 = pneg %p209
        $region42: #{conv_lstm_forward.3} parent=11 // pred_check_branch
          %268 = sbr.rel (%p266) target = $region44
        $region43: #{conv_lstm_forward.3} parent=11 // pred_region
          _
        $region44: #{conv_lstm_forward.3} parent=11 // pred_fallthru
          _
      $region12: #{conv_lstm_forward.3} parent=5 // pred_fallthru
        _
      %p269 = scmp.lt.s32.totalorder %s15, 4
      // Predicated region
      $region45: #{conv_lstm_forward.3} parent=5 // pred_check
        %p270 = pneg %p269
      $region46: #{conv_lstm_forward.3} parent=5 // pred_check_branch
        %272 = sbr.rel (%p270) target = $region48
      $region47: #{conv_lstm_forward.3} parent=5 // pred_region
        // Predicated region
        $region49: #{conv_lstm_forward.3} parent=47 // pred_check
          %p273 = pneg %p35
        $region50: #{conv_lstm_forward.3} parent=47 // pred_check_branch
          %275 = sbr.rel (%p273) target = $region52
        $region51: #{conv_lstm_forward.3} parent=47 // pred_region
          %s276 = sand.u32 %s25, 1
          %s277 = sand.u32 %s25, 1
          %s278 = smul.addr %s277, 64
          %s279 = scalar_lea.vmem [#allocation4], %s278
          %s280 = smul.u32 2, %s15
          %s281 = smul.addr %s280, 8
          %s282 = scalar_lea.vmem %s0, %s281
          // Predicated region
          $region53: #{conv_lstm_forward.3} parent=51 // pred_check
            _
          $region54: #{conv_lstm_forward.3} parent=51 // pred_check_branch
            %284 = sbr.rel (0) target = $region56
          $region55: #{conv_lstm_forward.3} parent=51 // pred_region
            // Predicated region
            $region57: #{conv_lstm_forward.3} parent=55 // pred_check
              _
            $region58: #{conv_lstm_forward.3} parent=55 // pred_check_branch
              %286 = sbr.rel (0) target = $region60
            $region59: #{conv_lstm_forward.3} parent=55 // pred_region
              loop: start=0, step=1, limit=1
              $region61: #{conv_lstm_forward.3} parent=59 // loop_pre_header
                _
              $region62: #{conv_lstm_forward.3} parent=59 // loop_header
                %s288 = sphi 0, %s292
                %p289 = scmp.ge.s32.totalorder %s288, 1
                %s293 = sphi %s282, %s282
                %s294 = sphi %s279, %s279
              $region63: #{conv_lstm_forward.3} parent=59 // loop_header_branch
                %291 = sbr.rel (%p289) target = $region67
              $region64: #{conv_lstm_forward.3} parent=59 // loop_body
                %v295 = vld [vmem:[%s293] sm:$0xff]
                %296 = vst [vmem:[%s294] sm:$0xff] %v295
                %v297 = vld [vmem:[%s293 + $0x8] sm:$0xff]
                %298 = vst [vmem:[%s294 + $0x8] sm:$0xff] %v297
                %v299 = vld [vmem:[%s293 + $0x40] sm:$0xff]
                %300 = vst [vmem:[%s294 + $0x10] sm:$0xff] %v299
                %v301 = vld [vmem:[%s293 + $0x48] sm:$0xff]
                %302 = vst [vmem:[%s294 + $0x18] sm:$0xff] %v301
                %v303 = vld [vmem:[%s293 + $0x80] sm:$0xff]
                %304 = vst [vmem:[%s294 + $0x20] sm:$0xff] %v303
                %v305 = vld [vmem:[%s293 + $0x88] sm:$0xff]
                %306 = vst [vmem:[%s294 + $0x28] sm:$0xff] %v305
                %v307 = vld [vmem:[%s293 + $0xc0] sm:$0xff]
                %308 = vst [vmem:[%s294 + $0x30] sm:$0xff] %v307
                %v309 = vld [vmem:[%s293 + $0xc8] sm:$0xff]
                %310 = vst [vmem:[%s294 + $0x38] sm:$0xff] %v309
              $region65: #{conv_lstm_forward.3} parent=59 // loop_footer
                %s292 = sadd.s32 1, %s288
              $region66: #{conv_lstm_forward.3} parent=59 // loop_footer_branch
                %287 = sbr.rel target = $region62
              $region67: #{conv_lstm_forward.3} parent=59 // loop_exit
                _
            $region60: #{conv_lstm_forward.3} parent=55 // pred_fallthru
              _
            // Predicated region
            $region68: #{conv_lstm_forward.3} parent=55 // pred_check
              _
            $region69: #{conv_lstm_forward.3} parent=55 // pred_check_branch
              %312 = sbr.rel target = $region71
            $region70: #{conv_lstm_forward.3} parent=55 // pred_region
              _
            $region71: #{conv_lstm_forward.3} parent=55 // pred_fallthru
              _
          $region56: #{conv_lstm_forward.3} parent=51 // pred_fallthru
            _
          %313 = vnop
        $region52: #{conv_lstm_forward.3} parent=47 // pred_fallthru
          _
      $region48: #{conv_lstm_forward.3} parent=5 // pred_fallthru
        _
      %p314 = scmp.le.s32.totalorder 1, %s15
      %p315 = scmp.lt.s32.totalorder %s15, 5
      %p316 = pnand %p314, %p315
      %p317 = pneg %p316
      // Predicated region
      $region72: #{conv_lstm_forward.3} parent=5 // pred_check
        _
      $region73: #{conv_lstm_forward.3} parent=5 // pred_check_branch
        %319 = sbr.rel (%p316) target = $region75
      $region74: #{conv_lstm_forward.3} parent=5 // pred_region
        %s320 = ssub.s32 %s15, 1
        %s321 = sand.u32 %s28, 1
        %s322 = sand.u32 %s28, 1
        %s323 = smul.addr %s322, 64
        %s324 = scalar_lea.vmem [#allocation4], %s323
        // Predicated region
        $region76: #{conv_lstm_forward.3} parent=74 // pred_check
          %p325 = pneg %p41
        $region77: #{conv_lstm_forward.3} parent=74 // pred_check_branch
          %327 = sbr.rel (%p325) target = $region79
        $region78: #{conv_lstm_forward.3} parent=74 // pred_region
          _
        $region79: #{conv_lstm_forward.3} parent=74 // pred_fallthru
          _
        %s328 = sand.u32 %s28, 1
        %s329 = sand.u32 %s28, 1
        %s330 = smul.addr %s329, 64
        %s331 = scalar_lea.vmem [#allocation4], %s330
        %p332 = pneg %p41
        %p333 = pneg %p38
        %p334 = pneg %p62
        %p335 = pneg %p59
        %p336 = pneg %p83
        %p337 = pneg %p80
        %p338 = pneg %p104
        %p339 = pneg %p101
        %p340 = pneg %p125
        %p341 = pneg %p122
        %p342 = pneg %p146
        %p343 = pneg %p143
        %p344 = pneg %p167
        %p345 = pneg %p164
        %p346 = pneg %p188
        %p347 = pneg %p185
        %p348 = pneg %p209
        %p349 = pneg %p206
        %p350 = pneg %p230
        %p351 = pneg %p227
        %s352 = smul.u32 2, %s20
        %p354 = scmp.eq.s32.totalorder %s20, 0
        // Predicated region
        $region80: #{conv_lstm_forward.3} parent=74 // pred_check
          %p355 = pneg %p354
        $region81: #{conv_lstm_forward.3} parent=74 // pred_check_branch
          %357 = sbr.rel (%p355) target = $region83
        $region82: #{conv_lstm_forward.3} parent=74 // pred_region
          %358 = vst [vmem:[#allocation2] sm:$0xff] 0.0
          %359 = vst [vmem:[#allocation2 + $0x8] sm:$0xff] 0.0
          %360 = vst [vmem:[#allocation2 + $0x10] sm:$0xff] 0.0
          %361 = vst [vmem:[#allocation2 + $0x18] sm:$0xff] 0.0
          %362 = vst [vmem:[#allocation2 + $0x20] sm:$0xff] 0.0
          %363 = vst [vmem:[#allocation2 + $0x28] sm:$0xff] 0.0
          %364 = vst [vmem:[#allocation2 + $0x30] sm:$0xff] 0.0
          %365 = vst [vmem:[#allocation2 + $0x38] sm:$0xff] 0.0
          %366 = vst [vmem:[#allocation2 + $0x40] sm:$0xff] 0.0
          %367 = vst [vmem:[#allocation2 + $0x48] sm:$0xff] 0.0
          %368 = vst [vmem:[#allocation2 + $0x50] sm:$0xff] 0.0
          %369 = vst [vmem:[#allocation2 + $0x58] sm:$0xff] 0.0
          %370 = vst [vmem:[#allocation2 + $0x60] sm:$0xff] 0.0
          %371 = vst [vmem:[#allocation2 + $0x68] sm:$0xff] 0.0
          %372 = vst [vmem:[#allocation2 + $0x70] sm:$0xff] 0.0
          %373 = vst [vmem:[#allocation2 + $0x78] sm:$0xff] 0.0
          %374 = vst [vmem:[#allocation2 + $0x80] sm:$0xff] 0.0
          %375 = vst [vmem:[#allocation2 + $0x88] sm:$0xff] 0.0
          %376 = vst [vmem:[#allocation2 + $0x90] sm:$0xff] 0.0
          %377 = vst [vmem:[#allocation2 + $0x98] sm:$0xff] 0.0
          %378 = vst [vmem:[#allocation2 + $0xa0] sm:$0xff] 0.0
          %379 = vst [vmem:[#allocation2 + $0xa8] sm:$0xff] 0.0
          %380 = vst [vmem:[#allocation2 + $0xb0] sm:$0xff] 0.0
          %381 = vst [vmem:[#allocation2 + $0xb8] sm:$0xff] 0.0
          %382 = vst [vmem:[#allocation2 + $0xc0] sm:$0xff] 0.0
          %383 = vst [vmem:[#allocation2 + $0xc8] sm:$0xff] 0.0
          %384 = vst [vmem:[#allocation2 + $0xd0] sm:$0xff] 0.0
          %385 = vst [vmem:[#allocation2 + $0xd8] sm:$0xff] 0.0
          %386 = vst [vmem:[#allocation2 + $0xe0] sm:$0xff] 0.0
          %387 = vst [vmem:[#allocation2 + $0xe8] sm:$0xff] 0.0
          %388 = vst [vmem:[#allocation2 + $0xf0] sm:$0xff] 0.0
          %389 = vst [vmem:[#allocation2 + $0xf8] sm:$0xff] 0.0
          %390 = vst [vmem:[#allocation2 + $0x100] sm:$0xff] 0.0
          %391 = vst [vmem:[#allocation2 + $0x108] sm:$0xff] 0.0
          %392 = vst [vmem:[#allocation2 + $0x110] sm:$0xff] 0.0
          %393 = vst [vmem:[#allocation2 + $0x118] sm:$0xff] 0.0
          %394 = vst [vmem:[#allocation2 + $0x120] sm:$0xff] 0.0
          %395 = vst [vmem:[#allocation2 + $0x128] sm:$0xff] 0.0
          %396 = vst [vmem:[#allocation2 + $0x130] sm:$0xff] 0.0
          %397 = vst [vmem:[#allocation2 + $0x138] sm:$0xff] 0.0
          %398 = vst [vmem:[#allocation2 + $0x140] sm:$0xff] 0.0
          %399 = vst [vmem:[#allocation2 + $0x148] sm:$0xff] 0.0
          %400 = vst [vmem:[#allocation2 + $0x150] sm:$0xff] 0.0
          %401 = vst [vmem:[#allocation2 + $0x158] sm:$0xff] 0.0
          %402 = vst [vmem:[#allocation2 + $0x160] sm:$0xff] 0.0
          %403 = vst [vmem:[#allocation2 + $0x168] sm:$0xff] 0.0
          %404 = vst [vmem:[#allocation2 + $0x170] sm:$0xff] 0.0
          %405 = vst [vmem:[#allocation2 + $0x178] sm:$0xff] 0.0
          %406 = vst [vmem:[#allocation2 + $0x180] sm:$0xff] 0.0
          %407 = vst [vmem:[#allocation2 + $0x188] sm:$0xff] 0.0
          %408 = vst [vmem:[#allocation2 + $0x190] sm:$0xff] 0.0
          %409 = vst [vmem:[#allocation2 + $0x198] sm:$0xff] 0.0
          %410 = vst [vmem:[#allocation2 + $0x1a0] sm:$0xff] 0.0
          %411 = vst [vmem:[#allocation2 + $0x1a8] sm:$0xff] 0.0
          %412 = vst [vmem:[#allocation2 + $0x1b0] sm:$0xff] 0.0
          %413 = vst [vmem:[#allocation2 + $0x1b8] sm:$0xff] 0.0
          %414 = vst [vmem:[#allocation2 + $0x1c0] sm:$0xff] 0.0
          %415 = vst [vmem:[#allocation2 + $0x1c8] sm:$0xff] 0.0
          %416 = vst [vmem:[#allocation2 + $0x1d0] sm:$0xff] 0.0
          %417 = vst [vmem:[#allocation2 + $0x1d8] sm:$0xff] 0.0
          %418 = vst [vmem:[#allocation2 + $0x1e0] sm:$0xff] 0.0
          %419 = vst [vmem:[#allocation2 + $0x1e8] sm:$0xff] 0.0
          %420 = vst [vmem:[#allocation2 + $0x1f0] sm:$0xff] 0.0
          %421 = vst [vmem:[#allocation2 + $0x1f8] sm:$0xff] 0.0
          %422 = vst [vmem:[#allocation2 + $0x200] sm:$0xff] 0.0
          %423 = vst [vmem:[#allocation2 + $0x208] sm:$0xff] 0.0
          %424 = vst [vmem:[#allocation2 + $0x210] sm:$0xff] 0.0
          %425 = vst [vmem:[#allocation2 + $0x218] sm:$0xff] 0.0
          %426 = vst [vmem:[#allocation2 + $0x220] sm:$0xff] 0.0
          %427 = vst [vmem:[#allocation2 + $0x228] sm:$0xff] 0.0
          %428 = vst [vmem:[#allocation2 + $0x230] sm:$0xff] 0.0
          %429 = vst [vmem:[#allocation2 + $0x238] sm:$0xff] 0.0
          %430 = vst [vmem:[#allocation2 + $0x240] sm:$0xff] 0.0
          %431 = vst [vmem:[#allocation2 + $0x248] sm:$0xff] 0.0
          %432 = vst [vmem:[#allocation2 + $0x250] sm:$0xff] 0.0
          %433 = vst [vmem:[#allocation2 + $0x258] sm:$0xff] 0.0
          %434 = vst [vmem:[#allocation2 + $0x260] sm:$0xff] 0.0
          %435 = vst [vmem:[#allocation2 + $0x268] sm:$0xff] 0.0
          %436 = vst [vmem:[#allocation2 + $0x270] sm:$0xff] 0.0
          %437 = vst [vmem:[#allocation2 + $0x278] sm:$0xff] 0.0
          %438 = vst [vmem:[#allocation2 + $0x280] sm:$0xff] 0.0
          %439 = vst [vmem:[#allocation2 + $0x288] sm:$0xff] 0.0
          %440 = vst [vmem:[#allocation2 + $0x290] sm:$0xff] 0.0
          %441 = vst [vmem:[#allocation2 + $0x298] sm:$0xff] 0.0
          %442 = vst [vmem:[#allocation2 + $0x2a0] sm:$0xff] 0.0
          %443 = vst [vmem:[#allocation2 + $0x2a8] sm:$0xff] 0.0
          %444 = vst [vmem:[#allocation2 + $0x2b0] sm:$0xff] 0.0
          %445 = vst [vmem:[#allocation2 + $0x2b8] sm:$0xff] 0.0
          %446 = vst [vmem:[#allocation2 + $0x2c0] sm:$0xff] 0.0
          %447 = vst [vmem:[#allocation2 + $0x2c8] sm:$0xff] 0.0
          %448 = vst [vmem:[#allocation3] sm:$0xff] 0.0
          %449 = vst [vmem:[#allocation3 + $0x8] sm:$0xff] 0.0
          %450 = vst [vmem:[#allocation3 + $0x10] sm:$0xff] 0.0
          %451 = vst [vmem:[#allocation3 + $0x18] sm:$0xff] 0.0
          %452 = vst [vmem:[#allocation3 + $0x20] sm:$0xff] 0.0
          %453 = vst [vmem:[#allocation3 + $0x28] sm:$0xff] 0.0
          %454 = vst [vmem:[#allocation3 + $0x30] sm:$0xff] 0.0
          %455 = vst [vmem:[#allocation3 + $0x38] sm:$0xff] 0.0
          %456 = vst [vmem:[#allocation3 + $0x40] sm:$0xff] 0.0
          %457 = vst [vmem:[#allocation3 + $0x48] sm:$0xff] 0.0
        $region83: #{conv_lstm_forward.3} parent=74 // pred_fallthru
          _
        %v458 = vld [vmem:[#allocation2] sm:$0xff]
        %v459 = vld [vmem:[#allocation2 + $0x8] sm:$0xff]
        %v460 = vld [vmem:[#allocation2 + $0x10] sm:$0xff]
        %v461 = vld [vmem:[#allocation2 + $0x18] sm:$0xff]
        %v462 = vld [vmem:[#allocation2 + $0x20] sm:$0xff]
        %v463 = vld [vmem:[#allocation2 + $0x28] sm:$0xff]
        %v464 = vld [vmem:[#allocation2 + $0x30] sm:$0xff]
        %v465 = vld [vmem:[#allocation2 + $0x38] sm:$0xff]
        %v466 = vld [vmem:[#allocation2 + $0x40] sm:$0xff]
        %v467 = vld [vmem:[#allocation2 + $0x48] sm:$0xff]
        %v468 = vld [vmem:[#allocation2 + $0x50] sm:$0xff]
        %v469 = vld [vmem:[#allocation2 + $0x58] sm:$0xff]
        %v470 = vld [vmem:[#allocation2 + $0x60] sm:$0xff]
        %v471 = vld [vmem:[#allocation2 + $0x68] sm:$0xff]
        %v472 = vld [vmem:[#allocation2 + $0x70] sm:$0xff]
        %v473 = vld [vmem:[#allocation2 + $0x78] sm:$0xff]
        %v474 = vld [vmem:[#allocation2 + $0x80] sm:$0xff]
        %v475 = vld [vmem:[#allocation2 + $0x88] sm:$0xff]
        %v476 = vld [vmem:[%s324] sm:$0xff]
        %v477 = vld [vmem:[%s324 + $0x8] sm:$0xff]
        %v478 = vld [vmem:[%s324 + $0x10] sm:$0xff]
        %v479 = vld [vmem:[%s324 + $0x18] sm:$0xff]
        %v480 = vld [vmem:[%s324 + $0x20] sm:$0xff]
        %v481 = vld [vmem:[%s324 + $0x28] sm:$0xff]
        %v482 = vld [vmem:[%s324 + $0x30] sm:$0xff]
        %v483 = vld [vmem:[%s324 + $0x38] sm:$0xff]
        %v484 = vld [vmem:[%s2] sm:$0xf]
        %v485 = vld [vmem:[%s2 + $0x4] sm:$0xf]
        %v486 = vld [vmem:[%s2 + $0x8] sm:$0xf]
        %v487 = vld [vmem:[%s2 + $0xc] sm:$0xf]
        %v488 = vpack.c.bf16 %v460, %v458
        %v489 = vpack.c.bf16 %v461, %v459
        %v490 = vpack.c.bf16 %v464, %v462
        %v491 = vpack.c.bf16 %v465, %v463
        %v492 = vpack.c.bf16 %v468, %v466
        %v493 = vpack.c.bf16 %v469, %v467
        %v494 = vpack.c.bf16 %v472, %v470
        %v495 = vpack.c.bf16 %v473, %v471
        %v496 = vpack.c.bf16 %v474, %v474
        %v497 = vpack.c.bf16 %v475, %v475
        %v502 = vunpack.c.l.b16 %v484
        %v503 = vunpack.c.l.b16 %v485
        %v504 = vunpack.c.l.b16 %v486
        %v505 = vunpack.c.l.b16 %v487
        %v506 = vpack.c.b16 %v503, %v502
        %v507 = vpack.c.b16 %v505, %v504
        %vm508 = vcmask 588800
        %v510 = vsel %vm508, %v506, 0
        %v513 = vsel %vm508, %v507, 0
        %vm515 = vcmask 1043456
        %v517 = vsel %vm515, %v496, 0
        %v520 = vsel %vm515, %v497, 0
        %522 = vmatprep.subr.bf16.mxu0 %v489
        %523 = vmatpush1.bf16.msra.mxu0 %v488
        %524 = vmatprep.subr.bf16.mxu0 %v491
        %525 = vmatpush1.bf16.msra.mxu0 %v490
        %526 = vmatprep.subr.bf16.mxu0 %v493
        %527 = vmatpush1.bf16.msra.mxu0 %v492
        %528 = vmatprep.subr.bf16.mxu0 %v495
        %529 = vmatpush1.bf16.msra.mxu0 %v494
        %530 = vmatprep.subr.bf16.mxu0 %v520
        %531 = vmatpush1.bf16.msra.mxu0 %v517
        %532 = vmatprep.subr.bf16.mxu0 0
        %533 = vmatpush1.bf16.msra.mxu0 0
        %534 = vmatprep.subr.bf16.mxu0 0
        %535 = vmatpush1.bf16.msra.mxu0 0
        %536 = vmatprep.subr.bf16.mxu0 0
        %537 = vmatpush1.bf16.msra.mxu0 0
        %538 = vmatprep.subr.bf16.mxu0 0
        %539 = vmatpush1.bf16.msra.mxu0 0
        %540 = vmatprep.subr.bf16.mxu0 0
        %541 = vmatpush1.bf16.msra.mxu0 0
        %542 = vmatprep.subr.bf16.mxu0 0
        %543 = vmatpush1.bf16.msra.mxu0 0
        %544 = vmatprep.subr.bf16.mxu0 0
        %545 = vmatpush1.bf16.msra.mxu0 0
        %546 = vmatprep.subr.bf16.mxu0 0
        %547 = vmatpush1.bf16.msra.mxu0 0
        %548 = vmatprep.subr.bf16.mxu0 0
        %549 = vmatpush1.bf16.msra.mxu0 0
        %550 = vmatprep.subr.bf16.mxu0 0
        %551 = vmatpush1.bf16.msra.mxu0 0
        %552 = vmatprep.subr.bf16.mxu0 0
        %553 = vmatpush1.bf16.msra.mxu0 0
        %554 = vmatprep.mubr.bf16.mxu0 0
        %555 = vmatmul.mubr.bf16.gmra.mrb[0].mxu0 %v510
        %v556 = vpop.f32.mrb[0].mxu0
        %v557 = vadd.f32 0.0, %v556
        %v558 = vpop.f32.mrb[0].mxu0
        %v559 = vadd.f32 0.0, %v558
        %v560 = vpop.f32.mrb[0].mxu0
        %v561 = vadd.f32 0.0, %v560
        %v562 = vpop.f32.mrb[0].mxu0
        %v563 = vadd.f32 0.0, %v562
        %564 = vmatprep.mubr.bf16.mxu0 0
        %565 = vmatmul.mubr.bf16.gmra.mrb[0].mxu0 %v513
        %v566 = vpop.f32.mrb[0].mxu0
        %v567 = vadd.f32 0.0, %v566
        %v568 = vpop.f32.mrb[0].mxu0
        %v569 = vadd.f32 0.0, %v568
        %v570 = vpop.f32.mrb[0].mxu0
        %v571 = vadd.f32 0.0, %v570
        %v572 = vpop.f32.mrb[0].mxu0
        %v573 = vadd.f32 0.0, %v572
        %574 = vdwg.mxu0
        %v575 = vadd.f32 %v476, %v557
        %v576 = vadd.f32 %v477, %v559
        %v577 = vadd.f32 %v478, %v561
        %v578 = vadd.f32 %v479, %v563
        %v579 = vadd.f32 %v480, %v567
        %v580 = vadd.f32 %v481, %v569
        %v581 = vadd.f32 %v482, %v571
        %v582 = vadd.f32 %v483, %v573
        %v583 = vld [vmem:[#allocation3] sm:$0xff]
        %v584 = vld [vmem:[#allocation3 + $0x8] sm:$0xff]
        %v585 = vld [vmem:[%s4] sm:$0xff]
        %v586 = vld [vmem:[%s4 + $0x8] sm:$0xff]
        %v587 = vmul.f32 %v585, %v583
        %v588 = vmul.f32 %v586, %v584
        %v589 = vadd.f32 %v575, %v587
        %v590 = vadd.f32 %v576, %v588
        %v591 = vxor.u32 %v589, 2147483648
        %v592 = vxor.u32 %v590, 2147483648
        %v593 = vmul.f32 %v591, 1.442695
        %v594 = vpow.pop %v593
        %v595 = vmul.f32 %v592, 1.442695
        %v596 = vpow.pop %v595
        %v597 = vadd.f32 %v594, 1.0
        %v598 = vadd.f32 %v596, 1.0
        %v599 = vrcp.pop %v597
        %v600 = vmul.f32 1.0, %v599
        %v601 = vrcp.pop %v598
        %v602 = vmul.f32 1.0, %v601
        %s603 = scalar_lea.vmem %s4, 16
        %v604 = vld [vmem:[%s603] sm:$0xff]
        %v605 = vld [vmem:[%s603 + $0x8] sm:$0xff]
        %v606 = vmul.f32 %v604, %v583
        %v607 = vmul.f32 %v605, %v584
        %v608 = vadd.f32 %v577, %v606
        %v609 = vadd.f32 %v578, %v607
        %v610 = vxor.u32 %v608, 2147483648
        %v611 = vxor.u32 %v609, 2147483648
        %v612 = vmul.f32 %v610, 1.442695
        %v613 = vpow.pop %v612
        %v614 = vmul.f32 %v611, 1.442695
        %v615 = vpow.pop %v614
        %v616 = vadd.f32 %v613, 1.0
        %v617 = vadd.f32 %v615, 1.0
        %v618 = vrcp.pop %v616
        %v619 = vmul.f32 1.0, %v618
        %v620 = vrcp.pop %v617
        %v621 = vmul.f32 1.0, %v620
        %v622 = vmul.f32 %v619, %v583
        %v623 = vmul.f32 %v621, %v584
        %v624 = vtanh.pop %v579
        %v625 = vtanh.pop %v580
        %v626 = vmul.f32 %v600, %v624
        %v627 = vmul.f32 %v602, %v625
        %v628 = vadd.f32 %v622, %v626
        %v629 = vadd.f32 %v623, %v627
        %v630 = vxor.u32 %v581, 2147483648
        %v631 = vxor.u32 %v582, 2147483648
        %v632 = vmul.f32 %v630, 1.442695
        %v633 = vpow.pop %v632
        %v634 = vmul.f32 %v631, 1.442695
        %v635 = vpow.pop %v634
        %v636 = vadd.f32 %v633, 1.0
        %v637 = vadd.f32 %v635, 1.0
        %v638 = vrcp.pop %v636
        %v639 = vmul.f32 1.0, %v638
        %v640 = vrcp.pop %v637
        %v641 = vmul.f32 1.0, %v640
        %v642 = vtanh.pop %v628
        %v643 = vtanh.pop %v629
        %v644 = vmul.f32 %v639, %v642
        %v645 = vmul.f32 %v641, %v643
        %646 = vst [vmem:[#allocation3] sm:$0xff] %v628
        %647 = vst [vmem:[#allocation3 + $0x8] sm:$0xff] %v629
        %648 = vrot.lane.b32.xlu0 %v644, 17
        %v649 = vpop.permute.xlu0 %648
        %650 = vrot.lane.b32.xlu0 %v645, 17
        %v651 = vpop.permute.xlu0 %650
        %v652 = vlaneseq
        %v653 = vand.u32 %v652, 127
        %vm654 = vcmp.lt.s32.totalorder %v653, 17
        %v655 = vsel %vm654, %v649, %v651
        %v656 = vsel %vm654, %v651, %v649
        %v657 = vld [vmem:[%s1] sm:$0xff]
        %v658 = vld [vmem:[%s1 + $0x8] sm:$0xff]
        %v659 = vmul.f32 %v656, %v657
        %v660 = vmul.f32 %v655, %v658
        %661 = vst [vmem:[#allocation2] sm:$0xff] %v659
        %662 = vst [vmem:[#allocation2 + $0x8] sm:$0xff] %v660
        %663 = vrot.lane.b32.xlu0 %v644, 16
        %v664 = vpop.permute.xlu0 %663
        %665 = vrot.lane.b32.xlu0 %v645, 16
        %v666 = vpop.permute.xlu0 %665
        %vm667 = vcmp.lt.s32.totalorder %v653, 16
        %v668 = vsel %vm667, %v664, %v666
        %v669 = vsel %vm667, %v666, %v664
        %s670 = scalar_lea.vmem %s1, 64
        %v671 = vld [vmem:[%s670] sm:$0xff]
        %v672 = vld [vmem:[%s670 + $0x8] sm:$0xff]
        %v673 = vmul.f32 %v669, %v671
        %v674 = vmul.f32 %v668, %v672
        %675 = vst [vmem:[#allocation2 + $0x10] sm:$0xff] %v673
        %676 = vst [vmem:[#allocation2 + $0x18] sm:$0xff] %v674
        %677 = vrot.lane.b32.xlu0 %v644, 15
        %v678 = vpop.permute.xlu0 %677
        %679 = vrot.lane.b32.xlu0 %v645, 15
        %v680 = vpop.permute.xlu0 %679
        %vm681 = vcmp.lt.s32.totalorder %v653, 15
        %v682 = vsel %vm681, %v678, %v680
        %v683 = vsel %vm681, %v680, %v678
        %s684 = scalar_lea.vmem %s1, 128
        %v685 = vld [vmem:[%s684] sm:$0xff]
        %v686 = vld [vmem:[%s684 + $0x8] sm:$0xff]
        %v687 = vmul.f32 %v683, %v685
        %v688 = vmul.f32 %v682, %v686
        %689 = vst [vmem:[#allocation2 + $0x20] sm:$0xff] %v687
        %690 = vst [vmem:[#allocation2 + $0x28] sm:$0xff] %v688
        %691 = vrot.lane.b32.xlu0 %v644, 1
        %v692 = vpop.permute.xlu0 %691
        %693 = vrot.lane.b32.xlu0 %v645, 1
        %v694 = vpop.permute.xlu0 %693
        %vm695 = vcmp.lt.s32.totalorder %v653, 1
        %v696 = vsel %vm695, %v692, %v694
        %v697 = vsel %vm695, %v694, %v692
        %s698 = scalar_lea.vmem %s1, 192
        %v699 = vld [vmem:[%s698] sm:$0xff]
        %v700 = vld [vmem:[%s698 + $0x8] sm:$0xff]
        %v701 = vmul.f32 %v697, %v699
        %v702 = vmul.f32 %v696, %v700
        %703 = vst [vmem:[#allocation2 + $0x30] sm:$0xff] %v701
        %704 = vst [vmem:[#allocation2 + $0x38] sm:$0xff] %v702
        %705 = vst [vmem:[#allocation2 + $0x40] sm:$0xff] %v644
        %706 = vst [vmem:[#allocation2 + $0x48] sm:$0xff] %v645
        %707 = vrot.lane.b32.xlu0 %v644, 127
        %v708 = vpop.permute.xlu0 %707
        %709 = vrot.lane.b32.xlu0 %v645, 127
        %v710 = vpop.permute.xlu0 %709
        %vm711 = vcmp.lt.s32.totalorder %v653, 127
        %v712 = vsel %vm711, %v708, %v710
        %v713 = vsel %vm711, %v710, %v708
        %s714 = scalar_lea.vmem %s1, 320
        %v715 = vld [vmem:[%s714] sm:$0xff]
        %v716 = vld [vmem:[%s714 + $0x8] sm:$0xff]
        %v717 = vmul.f32 %v712, %v715
        %v718 = vmul.f32 %v713, %v716
        %719 = vst [vmem:[#allocation2 + $0x50] sm:$0xff] %v717
        %720 = vst [vmem:[#allocation2 + $0x58] sm:$0xff] %v718
        %721 = vrot.lane.b32.xlu0 %v644, 113
        %v722 = vpop.permute.xlu0 %721
        %723 = vrot.lane.b32.xlu0 %v645, 113
        %v724 = vpop.permute.xlu0 %723
        %vm725 = vcmp.lt.s32.totalorder %v653, 113
        %v726 = vsel %vm725, %v722, %v724
        %v727 = vsel %vm725, %v724, %v722
        %s728 = scalar_lea.vmem %s1, 384
        %v729 = vld [vmem:[%s728] sm:$0xff]
        %v730 = vld [vmem:[%s728 + $0x8] sm:$0xff]
        %v731 = vmul.f32 %v726, %v729
        %v732 = vmul.f32 %v727, %v730
        %733 = vst [vmem:[#allocation2 + $0x60] sm:$0xff] %v731
        %734 = vst [vmem:[#allocation2 + $0x68] sm:$0xff] %v732
        %735 = vrot.lane.b32.xlu0 %v644, 112
        %v736 = vpop.permute.xlu0 %735
        %737 = vrot.lane.b32.xlu0 %v645, 112
        %v738 = vpop.permute.xlu0 %737
        %vm739 = vcmp.lt.s32.totalorder %v653, 112
        %v740 = vsel %vm739, %v736, %v738
        %v741 = vsel %vm739, %v738, %v736
        %s742 = scalar_lea.vmem %s1, 448
        %v743 = vld [vmem:[%s742] sm:$0xff]
        %v744 = vld [vmem:[%s742 + $0x8] sm:$0xff]
        %v745 = vmul.f32 %v740, %v743
        %v746 = vmul.f32 %v741, %v744
        %747 = vst [vmem:[#allocation2 + $0x70] sm:$0xff] %v745
        %748 = vst [vmem:[#allocation2 + $0x78] sm:$0xff] %v746
        %749 = vrot.lane.b32.xlu0 %v644, 111
        %v750 = vpop.permute.xlu0 %749
        %751 = vrot.lane.b32.xlu0 %v645, 111
        %v752 = vpop.permute.xlu0 %751
        %vm753 = vcmp.lt.s32.totalorder %v653, 111
        %v754 = vsel %vm753, %v750, %v752
        %v755 = vsel %vm753, %v752, %v750
        %s756 = scalar_lea.vmem %s1, 512
        %v757 = vld [vmem:[%s756] sm:$0xff]
        %v758 = vld [vmem:[%s756 + $0x8] sm:$0xff]
        %v759 = vmul.f32 %v754, %v757
        %v760 = vmul.f32 %v755, %v758
        %761 = vst [vmem:[#allocation2 + $0x80] sm:$0xff] %v759
        %762 = vst [vmem:[#allocation2 + $0x88] sm:$0xff] %v760
        %v763 = vld [vmem:[#allocation2] sm:$0xff]
        %v764 = vld [vmem:[#allocation2 + $0x8] sm:$0xff]
        %v765 = vld [vmem:[#allocation2 + $0x10] sm:$0xff]
        %v766 = vld [vmem:[#allocation2 + $0x18] sm:$0xff]
        %v767 = vld [vmem:[#allocation2 + $0x20] sm:$0xff]
        %v768 = vld [vmem:[#allocation2 + $0x28] sm:$0xff]
        %v769 = vld [vmem:[#allocation2 + $0x30] sm:$0xff]
        %v770 = vld [vmem:[#allocation2 + $0x38] sm:$0xff]
        %v771 = vld [vmem:[#allocation2 + $0x40] sm:$0xff]
        %v772 = vld [vmem:[#allocation2 + $0x48] sm:$0xff]
        %v773 = vld [vmem:[#allocation2 + $0x50] sm:$0xff]
        %v774 = vld [vmem:[#allocation2 + $0x58] sm:$0xff]
        %v775 = vld [vmem:[#allocation2 + $0x60] sm:$0xff]
        %v776 = vld [vmem:[#allocation2 + $0x68] sm:$0xff]
        %v777 = vld [vmem:[#allocation2 + $0x70] sm:$0xff]
        %v778 = vld [vmem:[#allocation2 + $0x78] sm:$0xff]
        %v779 = vld [vmem:[#allocation2 + $0x80] sm:$0xff]
        %v780 = vld [vmem:[#allocation2 + $0x88] sm:$0xff]
        %v781 = vld [vmem:[#allocation2 + $0x90] sm:$0xff]
        %v782 = vld [vmem:[#allocation2 + $0x98] sm:$0xff]
        %v783 = vld [vmem:[#allocation2 + $0xa0] sm:$0xff]
        %v784 = vld [vmem:[#allocation2 + $0xa8] sm:$0xff]
        %v785 = vld [vmem:[#allocation2 + $0xb0] sm:$0xff]
        %v786 = vld [vmem:[#allocation2 + $0xb8] sm:$0xff]
        %v787 = vld [vmem:[#allocation2 + $0xc0] sm:$0xff]
        %v788 = vld [vmem:[#allocation2 + $0xc8] sm:$0xff]
        %v789 = vld [vmem:[#allocation2 + $0xd0] sm:$0xff]
        %v790 = vld [vmem:[#allocation2 + $0xd8] sm:$0xff]
        %v791 = vld [vmem:[#allocation2 + $0xe0] sm:$0xff]
        %v792 = vld [vmem:[#allocation2 + $0xe8] sm:$0xff]
        %v793 = vld [vmem:[#allocation2 + $0xf0] sm:$0xff]
        %v794 = vld [vmem:[#allocation2 + $0xf8] sm:$0xff]
        %v795 = vld [vmem:[#allocation2 + $0x100] sm:$0xff]
        %v796 = vld [vmem:[#allocation2 + $0x108] sm:$0xff]
        %v797 = vld [vmem:[#allocation2 + $0x110] sm:$0xff]
        %v798 = vld [vmem:[#allocation2 + $0x118] sm:$0xff]
        %v799 = vld [vmem:[#allocation2 + $0x120] sm:$0xff]
        %v800 = vld [vmem:[#allocation2 + $0x128] sm:$0xff]
        %v801 = vld [vmem:[#allocation2 + $0x130] sm:$0xff]
        %v802 = vld [vmem:[#allocation2 + $0x138] sm:$0xff]
        %v803 = vld [vmem:[#allocation2 + $0x140] sm:$0xff]
        %v804 = vld [vmem:[#allocation2 + $0x148] sm:$0xff]
        %v805 = vld [vmem:[#allocation2 + $0x150] sm:$0xff]
        %v806 = vld [vmem:[#allocation2 + $0x158] sm:$0xff]
        %v807 = vld [vmem:[#allocation2 + $0x160] sm:$0xff]
        %v808 = vld [vmem:[#allocation2 + $0x168] sm:$0xff]
        %v809 = vld [vmem:[#allocation2 + $0x170] sm:$0xff]
        %v810 = vld [vmem:[#allocation2 + $0x178] sm:$0xff]
        %v811 = vld [vmem:[#allocation2 + $0x180] sm:$0xff]
        %v812 = vld [vmem:[#allocation2 + $0x188] sm:$0xff]
        %v813 = vld [vmem:[#allocation2 + $0x190] sm:$0xff]
        %v814 = vld [vmem:[#allocation2 + $0x198] sm:$0xff]
        %v815 = vld [vmem:[#allocation2 + $0x1a0] sm:$0xff]
        %v816 = vld [vmem:[#allocation2 + $0x1a8] sm:$0xff]
        %v817 = vld [vmem:[#allocation2 + $0x1b0] sm:$0xff]
        %v818 = vld [vmem:[#allocation2 + $0x1b8] sm:$0xff]
        %v819 = vld [vmem:[#allocation2 + $0x1c0] sm:$0xff]
        %v820 = vld [vmem:[#allocation2 + $0x1c8] sm:$0xff]
        %v821 = vld [vmem:[#allocation2 + $0x1d0] sm:$0xff]
        %v822 = vld [vmem:[#allocation2 + $0x1d8] sm:$0xff]
        %v823 = vld [vmem:[#allocation2 + $0x1e0] sm:$0xff]
        %v824 = vld [vmem:[#allocation2 + $0x1e8] sm:$0xff]
        %v825 = vld [vmem:[#allocation2 + $0x1f0] sm:$0xff]
        %v826 = vld [vmem:[#allocation2 + $0x1f8] sm:$0xff]
        %v827 = vld [vmem:[#allocation2 + $0x200] sm:$0xff]
        %v828 = vld [vmem:[#allocation2 + $0x208] sm:$0xff]
        %v829 = vld [vmem:[#allocation2 + $0x210] sm:$0xff]
        %v830 = vld [vmem:[#allocation2 + $0x218] sm:$0xff]
        %v831 = vld [vmem:[#allocation2 + $0x220] sm:$0xff]
        %v832 = vld [vmem:[#allocation2 + $0x228] sm:$0xff]
        %v833 = vld [vmem:[#allocation2 + $0x230] sm:$0xff]
        %v834 = vld [vmem:[#allocation2 + $0x238] sm:$0xff]
        %v835 = vld [vmem:[#allocation2 + $0x240] sm:$0xff]
        %v836 = vld [vmem:[#allocation2 + $0x248] sm:$0xff]
        %v837 = vld [vmem:[#allocation2 + $0x250] sm:$0xff]
        %v838 = vld [vmem:[#allocation2 + $0x258] sm:$0xff]
        %v839 = vld [vmem:[#allocation2 + $0x260] sm:$0xff]
        %v840 = vld [vmem:[#allocation2 + $0x268] sm:$0xff]
        %v841 = vld [vmem:[#allocation2 + $0x270] sm:$0xff]
        %v842 = vld [vmem:[#allocation2 + $0x278] sm:$0xff]
        %v843 = vld [vmem:[#allocation2 + $0x280] sm:$0xff]
        %v844 = vld [vmem:[#allocation2 + $0x288] sm:$0xff]
        %v845 = vld [vmem:[#allocation2 + $0x290] sm:$0xff]
        %v846 = vld [vmem:[#allocation2 + $0x298] sm:$0xff]
        %v847 = vld [vmem:[#allocation2 + $0x2a0] sm:$0xff]
        %v848 = vld [vmem:[#allocation2 + $0x2a8] sm:$0xff]
        %v849 = vld [vmem:[#allocation2 + $0x2b0] sm:$0xff]
        %v850 = vld [vmem:[#allocation2 + $0x2b8] sm:$0xff]
        %v851 = vld [vmem:[#allocation2 + $0x2c0] sm:$0xff]
        %v852 = vld [vmem:[#allocation2 + $0x2c8] sm:$0xff]
        %v853 = vld [vmem:[%s6] sm:$0xff]
        %v854 = vld [vmem:[%s6 + $0x8] sm:$0xff]
        %v855 = vld [vmem:[%s6 + $0x10] sm:$0xff]
        %v856 = vld [vmem:[%s6 + $0x18] sm:$0xff]
        %v857 = vld [vmem:[%s6 + $0x20] sm:$0xff]
        %v858 = vld [vmem:[%s6 + $0x28] sm:$0xff]
        %v859 = vld [vmem:[%s6 + $0x30] sm:$0xff]
        %v860 = vld [vmem:[%s6 + $0x38] sm:$0xff]
        %v861 = vld [vmem:[%s6 + $0x40] sm:$0xff]
        %v862 = vld [vmem:[%s6 + $0x48] sm:$0xff]
        %v863 = vld [vmem:[%s6 + $0x50] sm:$0xff]
        %v864 = vld [vmem:[%s6 + $0x58] sm:$0xff]
        %v865 = vld [vmem:[%s6 + $0x60] sm:$0xff]
        %v866 = vld [vmem:[%s6 + $0x68] sm:$0xff]
        %v867 = vld [vmem:[%s6 + $0x70] sm:$0xff]
        %v868 = vld [vmem:[%s6 + $0x78] sm:$0xff]
        %v869 = vld [vmem:[%s6 + $0x80] sm:$0xff]
        %v870 = vld [vmem:[%s6 + $0x88] sm:$0xff]
        %v871 = vld [vmem:[%s6 + $0x90] sm:$0xff]
        %v872 = vld [vmem:[%s6 + $0x98] sm:$0xff]
        %v873 = vld [vmem:[%s6 + $0xa0] sm:$0xff]
        %v874 = vld [vmem:[%s6 + $0xa8] sm:$0xff]
        %v875 = vld [vmem:[%s6 + $0xb0] sm:$0xff]
        %v876 = vld [vmem:[%s6 + $0xb8] sm:$0xff]
        %v877 = vld [vmem:[%s6 + $0xc0] sm:$0xff]
        %v878 = vld [vmem:[%s6 + $0xc8] sm:$0xff]
        %v879 = vld [vmem:[%s6 + $0xd0] sm:$0xff]
        %v880 = vld [vmem:[%s6 + $0xd8] sm:$0xff]
        %v881 = vld [vmem:[%s6 + $0xe0] sm:$0xff]
        %v882 = vld [vmem:[%s6 + $0xe8] sm:$0xff]
        %v883 = vld [vmem:[%s6 + $0xf0] sm:$0xff]
        %v884 = vld [vmem:[%s6 + $0xf8] sm:$0xff]
        %v885 = vld [vmem:[%s3] sm:$0xff]
        %v886 = vld [vmem:[%s3 + $0x8] sm:$0xf]
        %v887 = vld [vmem:[%s3 + $0xc] sm:$0xff]
        %v888 = vld [vmem:[%s3 + $0x14] sm:$0xf]
        %v889 = vld [vmem:[%s3 + $0x18] sm:$0xff]
        %v890 = vld [vmem:[%s3 + $0x20] sm:$0xf]
        %v891 = vld [vmem:[%s3 + $0x24] sm:$0xff]
        %v892 = vld [vmem:[%s3 + $0x2c] sm:$0xf]
        %v893 = vld [vmem:[%s3 + $0x30] sm:$0xff]
        %v894 = vld [vmem:[%s3 + $0x38] sm:$0xf]
        %v895 = vld [vmem:[%s3 + $0x3c] sm:$0xff]
        %v896 = vld [vmem:[%s3 + $0x44] sm:$0xf]
        %v897 = vld [vmem:[%s3 + $0x48] sm:$0xff]
        %v898 = vld [vmem:[%s3 + $0x50] sm:$0xf]
        %v899 = vld [vmem:[%s3 + $0x54] sm:$0xff]
        %v900 = vld [vmem:[%s3 + $0x5c] sm:$0xf]
        %v901 = vld [vmem:[%s3 + $0x60] sm:$0xff]
        %v902 = vld [vmem:[%s3 + $0x68] sm:$0xf]
        %v903 = vld [vmem:[%s3 + $0x6c] sm:$0xff]
        %v904 = vld [vmem:[%s3 + $0x74] sm:$0xf]
        %v905 = vld [vmem:[%s3 + $0x78] sm:$0xff]
        %v906 = vld [vmem:[%s3 + $0x80] sm:$0xf]
        %v907 = vld [vmem:[%s3 + $0x84] sm:$0xff]
        %v908 = vld [vmem:[%s3 + $0x8c] sm:$0xf]
        %v909 = vld [vmem:[%s3 + $0x90] sm:$0xff]
        %v910 = vld [vmem:[%s3 + $0x98] sm:$0xf]
        %v911 = vld [vmem:[%s3 + $0x9c] sm:$0xff]
        %v912 = vld [vmem:[%s3 + $0xa4] sm:$0xf]
        %v913 = vld [vmem:[%s3 + $0xa8] sm:$0xff]
        %v914 = vld [vmem:[%s3 + $0xb0] sm:$0xf]
        %v915 = vld [vmem:[%s3 + $0xb4] sm:$0xff]
        %v916 = vld [vmem:[%s3 + $0xbc] sm:$0xf]
        %v917 = vpack.c.bf16 %v765, %v763
        %v918 = vpack.c.bf16 %v766, %v764
        %v919 = vpack.c.bf16 %v769, %v767
        %v920 = vpack.c.bf16 %v770, %v768
        %v921 = vpack.c.bf16 %v773, %v771
        %v922 = vpack.c.bf16 %v774, %v772
        %v923 = vpack.c.bf16 %v777, %v775
        %v924 = vpack.c.bf16 %v778, %v776
        %v925 = vpack.c.bf16 %v781, %v779
        %v926 = vpack.c.bf16 %v782, %v780
        %v927 = vpack.c.bf16 %v785, %v783
        %v928 = vpack.c.bf16 %v786, %v784
        %v929 = vpack.c.bf16 %v789, %v787
        %v930 = vpack.c.bf16 %v790, %v788
        %v931 = vpack.c.bf16 %v793, %v791
        %v932 = vpack.c.bf16 %v794, %v792
        %v933 = vpack.c.bf16 %v797, %v795
        %v934 = vpack.c.bf16 %v798, %v796
        %v935 = vpack.c.bf16 %v801, %v799
        %v936 = vpack.c.bf16 %v802, %v800
        %v937 = vpack.c.bf16 %v805, %v803
        %v938 = vpack.c.bf16 %v806, %v804
        %v939 = vpack.c.bf16 %v809, %v807
        %v940 = vpack.c.bf16 %v810, %v808
        %v941 = vpack.c.bf16 %v813, %v811
        %v942 = vpack.c.bf16 %v814, %v812
        %v943 = vpack.c.bf16 %v817, %v815
        %v944 = vpack.c.bf16 %v818, %v816
        %v945 = vpack.c.bf16 %v821, %v819
        %v946 = vpack.c.bf16 %v822, %v820
        %v947 = vpack.c.bf16 %v825, %v823
        %v948 = vpack.c.bf16 %v826, %v824
        %v949 = vpack.c.bf16 %v829, %v827
        %v950 = vpack.c.bf16 %v830, %v828
        %v951 = vpack.c.bf16 %v833, %v831
        %v952 = vpack.c.bf16 %v834, %v832
        %v953 = vpack.c.bf16 %v837, %v835
        %v954 = vpack.c.bf16 %v838, %v836
        %v955 = vpack.c.bf16 %v841, %v839
        %v956 = vpack.c.bf16 %v842, %v840
        %v957 = vpack.c.bf16 %v845, %v843
        %v958 = vpack.c.bf16 %v846, %v844
        %v959 = vpack.c.bf16 %v849, %v847
        %v960 = vpack.c.bf16 %v850, %v848
        %v961 = vpack.c.bf16 %v851, %v851
        %v962 = vpack.c.bf16 %v852, %v852
        %v995 = vunpack.c.l.b16 %v885
        %v996 = vunpack.c.h.b16 %v885
        %v997 = vunpack.c.l.b16 %v886
        %v998 = vunpack.c.l.b16 %v887
        %v999 = vunpack.c.h.b16 %v887
        %v1000 = vunpack.c.l.b16 %v888
        %v1001 = vunpack.c.l.b16 %v889
        %v1002 = vunpack.c.h.b16 %v889
        %v1003 = vunpack.c.l.b16 %v890
        %v1004 = vunpack.c.l.b16 %v891
        %v1005 = vunpack.c.h.b16 %v891
        %v1006 = vunpack.c.l.b16 %v892
        %v1007 = vunpack.c.l.b16 %v893
        %v1008 = vunpack.c.h.b16 %v893
        %v1009 = vunpack.c.l.b16 %v894
        %v1010 = vunpack.c.l.b16 %v895
        %v1011 = vunpack.c.h.b16 %v895
        %v1012 = vunpack.c.l.b16 %v896
        %v1013 = vunpack.c.l.b16 %v897
        %v1014 = vunpack.c.h.b16 %v897
        %v1015 = vunpack.c.l.b16 %v898
        %v1016 = vunpack.c.l.b16 %v899
        %v1017 = vunpack.c.h.b16 %v899
        %v1018 = vunpack.c.l.b16 %v900
        %v1019 = vunpack.c.l.b16 %v901
        %v1020 = vunpack.c.h.b16 %v901
        %v1021 = vunpack.c.l.b16 %v902
        %v1022 = vunpack.c.l.b16 %v903
        %v1023 = vunpack.c.h.b16 %v903
        %v1024 = vunpack.c.l.b16 %v904
        %v1025 = vunpack.c.l.b16 %v905
        %v1026 = vunpack.c.h.b16 %v905
        %v1027 = vunpack.c.l.b16 %v906
        %v1028 = vunpack.c.l.b16 %v907
        %v1029 = vunpack.c.h.b16 %v907
        %v1030 = vunpack.c.l.b16 %v908
        %v1031 = vunpack.c.l.b16 %v909
        %v1032 = vunpack.c.h.b16 %v909
        %v1033 = vunpack.c.l.b16 %v910
        %v1034 = vunpack.c.l.b16 %v911
        %v1035 = vunpack.c.h.b16 %v911
        %v1036 = vunpack.c.l.b16 %v912
        %v1037 = vunpack.c.l.b16 %v913
        %v1038 = vunpack.c.h.b16 %v913
        %v1039 = vunpack.c.l.b16 %v914
        %v1040 = vunpack.c.l.b16 %v915
        %v1041 = vunpack.c.h.b16 %v915
        %v1042 = vunpack.c.l.b16 %v916
        %v1043 = vpack.c.b16 %v998, %v995
        %v1044 = vpack.c.b16 %v999, %v996
        %v1045 = vpack.c.b16 %v1000, %v997
        %v1046 = vpack.c.b16 %v1004, %v1001
        %v1047 = vpack.c.b16 %v1005, %v1002
        %v1048 = vpack.c.b16 %v1006, %v1003
        %v1049 = vpack.c.b16 %v1010, %v1007
        %v1050 = vpack.c.b16 %v1011, %v1008
        %v1051 = vpack.c.b16 %v1012, %v1009
        %v1052 = vpack.c.b16 %v1016, %v1013
        %v1053 = vpack.c.b16 %v1017, %v1014
        %v1054 = vpack.c.b16 %v1018, %v1015
        %v1055 = vpack.c.b16 %v1022, %v1019
        %v1056 = vpack.c.b16 %v1023, %v1020
        %v1057 = vpack.c.b16 %v1024, %v1021
        %v1058 = vpack.c.b16 %v1028, %v1025
        %v1059 = vpack.c.b16 %v1029, %v1026
        %v1060 = vpack.c.b16 %v1030, %v1027
        %v1061 = vpack.c.b16 %v1034, %v1031
        %v1062 = vpack.c.b16 %v1035, %v1032
        %v1063 = vpack.c.b16 %v1036, %v1033
        %v1064 = vpack.c.b16 %v1040, %v1037
        %v1065 = vpack.c.b16 %v1041, %v1038
        %v1066 = vpack.c.b16 %v1042, %v1039
        %vm1083 = vcmask 850944
        %v1085 = vsel %vm1083, %v1045, 0
        %v1088 = vsel %vm1083, %v1048, 0
        %v1091 = vsel %vm1083, %v1051, 0
        %v1094 = vsel %vm1083, %v1054, 0
        %v1097 = vsel %vm1083, %v1057, 0
        %v1100 = vsel %vm1083, %v1060, 0
        %v1103 = vsel %vm1083, %v1063, 0
        %v1106 = vsel %vm1083, %v1066, 0
        %v1109 = vsel %vm515, %v961, 0
        %v1112 = vsel %vm515, %v962, 0
        %1114 = vmatprep.subr.bf16.mxu0 %v918
        %1115 = vmatpush1.bf16.msra.mxu0 %v917
        %1116 = vmatprep.subr.bf16.mxu0 %v920
        %1117 = vmatpush1.bf16.msra.mxu0 %v919
        %1118 = vmatprep.subr.bf16.mxu0 %v922
        %1119 = vmatpush1.bf16.msra.mxu0 %v921
        %1120 = vmatprep.subr.bf16.mxu0 %v924
        %1121 = vmatpush1.bf16.msra.mxu0 %v923
        %1122 = vmatprep.subr.bf16.mxu0 %v926
        %1123 = vmatpush1.bf16.msra.mxu0 %v925
        %1124 = vmatprep.subr.bf16.mxu0 %v928
        %1125 = vmatpush1.bf16.msra.mxu0 %v927
        %1126 = vmatprep.subr.bf16.mxu0 %v930
        %1127 = vmatpush1.bf16.msra.mxu0 %v929
        %1128 = vmatprep.subr.bf16.mxu0 %v932
        %1129 = vmatpush1.bf16.msra.mxu0 %v931
        %1130 = vmatprep.subr.bf16.mxu0 %v934
        %1131 = vmatpush1.bf16.msra.mxu0 %v933
        %1132 = vmatprep.subr.bf16.mxu0 %v936
        %1133 = vmatpush1.bf16.msra.mxu0 %v935
        %1134 = vmatprep.subr.bf16.mxu0 %v938
        %1135 = vmatpush1.bf16.msra.mxu0 %v937
        %1136 = vmatprep.subr.bf16.mxu0 %v940
        %1137 = vmatpush1.bf16.msra.mxu0 %v939
        %1138 = vmatprep.subr.bf16.mxu0 %v942
        %1139 = vmatpush1.bf16.msra.mxu0 %v941
        %1140 = vmatprep.subr.bf16.mxu0 %v944
        %1141 = vmatpush1.bf16.msra.mxu0 %v943
        %1142 = vmatprep.subr.bf16.mxu0 %v946
        %1143 = vmatpush1.bf16.msra.mxu0 %v945
        %1144 = vmatprep.subr.bf16.mxu0 %v948
        %1145 = vmatpush1.bf16.msra.mxu0 %v947
        %1146 = vmatprep.mubr.bf16.mxu0 %v1044
        %1147 = vmatmul.mubr.bf16.gmra.mrb[0].mxu0 %v1043
        %v1148 = vpop.f32.mrb[0].mxu0
        %v1149 = vadd.f32 0.0, %v1148
        %v1150 = vpop.f32.mrb[0].mxu0
        %v1151 = vadd.f32 0.0, %v1150
        %v1152 = vpop.f32.mrb[0].mxu0
        %v1153 = vadd.f32 0.0, %v1152
        %v1154 = vpop.f32.mrb[0].mxu0
        %v1155 = vadd.f32 0.0, %v1154
        %1156 = vmatprep.mubr.bf16.mxu0 %v1047
        %1157 = vmatmul.mubr.bf16.gmra.mrb[0].mxu0 %v1046
        %v1158 = vpop.f32.mrb[0].mxu0
        %v1159 = vadd.f32 0.0, %v1158
        %v1160 = vpop.f32.mrb[0].mxu0
        %v1161 = vadd.f32 0.0, %v1160
        %v1162 = vpop.f32.mrb[0].mxu0
        %v1163 = vadd.f32 0.0, %v1162
        %v1164 = vpop.f32.mrb[0].mxu0
        %v1165 = vadd.f32 0.0, %v1164
        %1166 = vmatprep.mubr.bf16.mxu0 %v1050
        %1167 = vmatmul.mubr.bf16.gmra.mrb[0].mxu0 %v1049
        %v1168 = vpop.f32.mrb[0].mxu0
        %v1169 = vadd.f32 0.0, %v1168
        %v1170 = vpop.f32.mrb[0].mxu0
        %v1171 = vadd.f32 0.0, %v1170
        %v1172 = vpop.f32.mrb[0].mxu0
        %v1173 = vadd.f32 0.0, %v1172
        %v1174 = vpop.f32.mrb[0].mxu0
        %v1175 = vadd.f32 0.0, %v1174
        %1176 = vmatprep.mubr.bf16.mxu0 %v1053
        %1177 = vmatmul.mubr.bf16.gmra.mrb[0].mxu0 %v1052
        %v1178 = vpop.f32.mrb[0].mxu0
        %v1179 = vadd.f32 0.0, %v1178
        %v1180 = vpop.f32.mrb[0].mxu0
        %v1181 = vadd.f32 0.0, %v1180
        %v1182 = vpop.f32.mrb[0].mxu0
        %v1183 = vadd.f32 0.0, %v1182
        %v1184 = vpop.f32.mrb[0].mxu0
        %v1185 = vadd.f32 0.0, %v1184
        %1186 = vmatprep.mubr.bf16.mxu0 %v1056
        %1187 = vmatmul.mubr.bf16.gmra.mrb[0].mxu0 %v1055
        %v1188 = vpop.f32.mrb[0].mxu0
        %v1189 = vadd.f32 0.0, %v1188
        %v1190 = vpop.f32.mrb[0].mxu0
        %v1191 = vadd.f32 0.0, %v1190
        %v1192 = vpop.f32.mrb[0].mxu0
        %v1193 = vadd.f32 0.0, %v1192
        %v1194 = vpop.f32.mrb[0].mxu0
        %v1195 = vadd.f32 0.0, %v1194
        %1196 = vmatprep.mubr.bf16.mxu0 %v1059
        %1197 = vmatmul.mubr.bf16.gmra.mrb[0].mxu0 %v1058
        %v1198 = vpop.f32.mrb[0].mxu0
        %v1199 = vadd.f32 0.0, %v1198
        %v1200 = vpop.f32.mrb[0].mxu0
        %v1201 = vadd.f32 0.0, %v1200
        %v1202 = vpop.f32.mrb[0].mxu0
        %v1203 = vadd.f32 0.0, %v1202
        %v1204 = vpop.f32.mrb[0].mxu0
        %v1205 = vadd.f32 0.0, %v1204
        %1206 = vmatprep.mubr.bf16.mxu0 %v1062
        %1207 = vmatmul.mubr.bf16.gmra.mrb[0].mxu0 %v1061
        %v1208 = vpop.f32.mrb[0].mxu0
        %v1209 = vadd.f32 0.0, %v1208
        %v1210 = vpop.f32.mrb[0].mxu0
        %v1211 = vadd.f32 0.0, %v1210
        %v1212 = vpop.f32.mrb[0].mxu0
        %v1213 = vadd.f32 0.0, %v1212
        %v1214 = vpop.f32.mrb[0].mxu0
        %v1215 = vadd.f32 0.0, %v1214
        %1216 = vmatprep.mubr.bf16.mxu0 %v1065
        %1217 = vmatmul.mubr.bf16.gmra.mrb[0].mxu0 %v1064
        %v1218 = vpop.f32.mrb[0].mxu0
        %v1219 = vadd.f32 0.0, %v1218
        %v1220 = vpop.f32.mrb[0].mxu0
        %v1221 = vadd.f32 0.0, %v1220
        %v1222 = vpop.f32.mrb[0].mxu0
        %v1223 = vadd.f32 0.0, %v1222
        %v1224 = vpop.f32.mrb[0].mxu0
        %v1225 = vadd.f32 0.0, %v1224
        %1226 = vdwg.mxu0
        %1227 = vmatprep.subr.bf16.mxu0 %v950
        %1228 = vmatpush1.bf16.msra.mxu0 %v949
        %1229 = vmatprep.subr.bf16.mxu0 %v952
        %1230 = vmatpush1.bf16.msra.mxu0 %v951
        %1231 = vmatprep.subr.bf16.mxu0 %v954
        %1232 = vmatpush1.bf16.msra.mxu0 %v953
        %1233 = vmatprep.subr.bf16.mxu0 %v956
        %1234 = vmatpush1.bf16.msra.mxu0 %v955
        %1235 = vmatprep.subr.bf16.mxu0 %v958
        %1236 = vmatpush1.bf16.msra.mxu0 %v957
        %1237 = vmatprep.subr.bf16.mxu0 %v960
        %1238 = vmatpush1.bf16.msra.mxu0 %v959
        %1239 = vmatprep.subr.bf16.mxu0 %v1112
        %1240 = vmatpush1.bf16.msra.mxu0 %v1109
        %1241 = vmatprep.subr.bf16.mxu0 0
        %1242 = vmatpush1.bf16.msra.mxu0 0
        %1243 = vmatprep.subr.bf16.mxu0 0
        %1244 = vmatpush1.bf16.msra.mxu0 0
        %1245 = vmatprep.subr.bf16.mxu0 0
        %1246 = vmatpush1.bf16.msra.mxu0 0
        %1247 = vmatprep.subr.bf16.mxu0 0
        %1248 = vmatpush1.bf16.msra.mxu0 0
        %1249 = vmatprep.subr.bf16.mxu0 0
        %1250 = vmatpush1.bf16.msra.mxu0 0
        %1251 = vmatprep.subr.bf16.mxu0 0
        %1252 = vmatpush1.bf16.msra.mxu0 0
        %1253 = vmatprep.subr.bf16.mxu0 0
        %1254 = vmatpush1.bf16.msra.mxu0 0
        %1255 = vmatprep.subr.bf16.mxu0 0
        %1256 = vmatpush1.bf16.msra.mxu0 0
        %1257 = vmatprep.subr.bf16.mxu0 0
        %1258 = vmatpush1.bf16.msra.mxu0 0
        %1259 = vmatprep.mubr.bf16.mxu0 0
        %1260 = vmatmul.mubr.bf16.gmra.mrb[0].mxu0 %v1085
        %v1261 = vpop.f32.mrb[0].mxu0
        %v1262 = vadd.f32 %v1149, %v1261
        %v1263 = vpop.f32.mrb[0].mxu0
        %v1264 = vadd.f32 %v1151, %v1263
        %v1265 = vpop.f32.mrb[0].mxu0
        %v1266 = vadd.f32 %v1153, %v1265
        %v1267 = vpop.f32.mrb[0].mxu0
        %v1268 = vadd.f32 %v1155, %v1267
        %1269 = vmatprep.mubr.bf16.mxu0 0
        %1270 = vmatmul.mubr.bf16.gmra.mrb[0].mxu0 %v1088
        %v1271 = vpop.f32.mrb[0].mxu0
        %v1272 = vadd.f32 %v1159, %v1271
        %v1273 = vpop.f32.mrb[0].mxu0
        %v1274 = vadd.f32 %v1161, %v1273
        %v1275 = vpop.f32.mrb[0].mxu0
        %v1276 = vadd.f32 %v1163, %v1275
        %v1277 = vpop.f32.mrb[0].mxu0
        %v1278 = vadd.f32 %v1165, %v1277
        %1279 = vmatprep.mubr.bf16.mxu0 0
        %1280 = vmatmul.mubr.bf16.gmra.mrb[0].mxu0 %v1091
        %v1281 = vpop.f32.mrb[0].mxu0
        %v1282 = vadd.f32 %v1169, %v1281
        %v1283 = vpop.f32.mrb[0].mxu0
        %v1284 = vadd.f32 %v1171, %v1283
        %v1285 = vpop.f32.mrb[0].mxu0
        %v1286 = vadd.f32 %v1173, %v1285
        %v1287 = vpop.f32.mrb[0].mxu0
        %v1288 = vadd.f32 %v1175, %v1287
        %1289 = vmatprep.mubr.bf16.mxu0 0
        %1290 = vmatmul.mubr.bf16.gmra.mrb[0].mxu0 %v1094
        %v1291 = vpop.f32.mrb[0].mxu0
        %v1292 = vadd.f32 %v1179, %v1291
        %v1293 = vpop.f32.mrb[0].mxu0
        %v1294 = vadd.f32 %v1181, %v1293
        %v1295 = vpop.f32.mrb[0].mxu0
        %v1296 = vadd.f32 %v1183, %v1295
        %v1297 = vpop.f32.mrb[0].mxu0
        %v1298 = vadd.f32 %v1185, %v1297
        %1299 = vmatprep.mubr.bf16.mxu0 0
        %1300 = vmatmul.mubr.bf16.gmra.mrb[0].mxu0 %v1097
        %v1301 = vpop.f32.mrb[0].mxu0
        %v1302 = vadd.f32 %v1189, %v1301
        %v1303 = vpop.f32.mrb[0].mxu0
        %v1304 = vadd.f32 %v1191, %v1303
        %v1305 = vpop.f32.mrb[0].mxu0
        %v1306 = vadd.f32 %v1193, %v1305
        %v1307 = vpop.f32.mrb[0].mxu0
        %v1308 = vadd.f32 %v1195, %v1307
        %1309 = vmatprep.mubr.bf16.mxu0 0
        %1310 = vmatmul.mubr.bf16.gmra.mrb[0].mxu0 %v1100
        %v1311 = vpop.f32.mrb[0].mxu0
        %v1312 = vadd.f32 %v1199, %v1311
        %v1313 = vpop.f32.mrb[0].mxu0
        %v1314 = vadd.f32 %v1201, %v1313
        %v1315 = vpop.f32.mrb[0].mxu0
        %v1316 = vadd.f32 %v1203, %v1315
        %v1317 = vpop.f32.mrb[0].mxu0
        %v1318 = vadd.f32 %v1205, %v1317
        %1319 = vmatprep.mubr.bf16.mxu0 0
        %1320 = vmatmul.mubr.bf16.gmra.mrb[0].mxu0 %v1103
        %v1321 = vpop.f32.mrb[0].mxu0
        %v1322 = vadd.f32 %v1209, %v1321
        %v1323 = vpop.f32.mrb[0].mxu0
        %v1324 = vadd.f32 %v1211, %v1323
        %v1325 = vpop.f32.mrb[0].mxu0
        %v1326 = vadd.f32 %v1213, %v1325
        %v1327 = vpop.f32.mrb[0].mxu0
        %v1328 = vadd.f32 %v1215, %v1327
        %1329 = vmatprep.mubr.bf16.mxu0 0
        %1330 = vmatmul.mubr.bf16.gmra.mrb[0].mxu0 %v1106
        %v1331 = vpop.f32.mrb[0].mxu0
        %v1332 = vadd.f32 %v1219, %v1331
        %v1333 = vpop.f32.mrb[0].mxu0
        %v1334 = vadd.f32 %v1221, %v1333
        %v1335 = vpop.f32.mrb[0].mxu0
        %v1336 = vadd.f32 %v1223, %v1335
        %v1337 = vpop.f32.mrb[0].mxu0
        %v1338 = vadd.f32 %v1225, %v1337
        %1339 = vdwg.mxu0
        %v1340 = vadd.f32 %v853, %v1262
        %v1341 = vadd.f32 %v854, %v1264
        %v1342 = vadd.f32 %v855, %v1266
        %v1343 = vadd.f32 %v856, %v1268
        %v1344 = vadd.f32 %v857, %v1272
        %v1345 = vadd.f32 %v858, %v1274
        %v1346 = vadd.f32 %v859, %v1276
        %v1347 = vadd.f32 %v860, %v1278
        %v1348 = vadd.f32 %v861, %v1282
        %v1349 = vadd.f32 %v862, %v1284
        %v1350 = vadd.f32 %v863, %v1286
        %v1351 = vadd.f32 %v864, %v1288
        %v1352 = vadd.f32 %v865, %v1292
        %v1353 = vadd.f32 %v866, %v1294
        %v1354 = vadd.f32 %v867, %v1296
        %v1355 = vadd.f32 %v868, %v1298
        %v1356 = vadd.f32 %v869, %v1302
        %v1357 = vadd.f32 %v870, %v1304
        %v1358 = vadd.f32 %v871, %v1306
        %v1359 = vadd.f32 %v872, %v1308
        %v1360 = vadd.f32 %v873, %v1312
        %v1361 = vadd.f32 %v874, %v1314
        %v1362 = vadd.f32 %v875, %v1316
        %v1363 = vadd.f32 %v876, %v1318
        %v1364 = vadd.f32 %v877, %v1322
        %v1365 = vadd.f32 %v878, %v1324
        %v1366 = vadd.f32 %v879, %v1326
        %v1367 = vadd.f32 %v880, %v1328
        %v1368 = vadd.f32 %v881, %v1332
        %v1369 = vadd.f32 %v882, %v1334
        %v1370 = vadd.f32 %v883, %v1336
        %v1371 = vadd.f32 %v884, %v1338
        %v1372 = vld [vmem:[#allocation3 + $0x10] sm:$0xff]
        %v1373 = vld [vmem:[#allocation3 + $0x18] sm:$0xff]
        %v1374 = vld [vmem:[#allocation3 + $0x20] sm:$0xff]
        %v1375 = vld [vmem:[#allocation3 + $0x28] sm:$0xff]
        %v1376 = vld [vmem:[#allocation3 + $0x30] sm:$0xff]
        %v1377 = vld [vmem:[#allocation3 + $0x38] sm:$0xff]
        %v1378 = vld [vmem:[#allocation3 + $0x40] sm:$0xff]
        %v1379 = vld [vmem:[#allocation3 + $0x48] sm:$0xff]
        %v1380 = vld [vmem:[%s5] sm:$0xff]
        %v1381 = vld [vmem:[%s5 + $0x8] sm:$0xff]
        %v1382 = vld [vmem:[%s5 + $0x10] sm:$0xff]
        %v1383 = vld [vmem:[%s5 + $0x18] sm:$0xff]
        %v1384 = vld [vmem:[%s5 + $0x20] sm:$0xff]
        %v1385 = vld [vmem:[%s5 + $0x28] sm:$0xff]
        %v1386 = vld [vmem:[%s5 + $0x30] sm:$0xff]
        %v1387 = vld [vmem:[%s5 + $0x38] sm:$0xff]
        %v1388 = vmul.f32 %v1380, %v1372
        %v1389 = vmul.f32 %v1381, %v1373
        %v1390 = vmul.f32 %v1382, %v1374
        %v1391 = vmul.f32 %v1383, %v1375
        %v1392 = vmul.f32 %v1384, %v1376
        %v1393 = vmul.f32 %v1385, %v1377
        %v1394 = vmul.f32 %v1386, %v1378
        %v1395 = vmul.f32 %v1387, %v1379
        %v1396 = vadd.f32 %v1340, %v1388
        %v1397 = vadd.f32 %v1341, %v1389
        %v1398 = vadd.f32 %v1342, %v1390
        %v1399 = vadd.f32 %v1343, %v1391
        %v1400 = vadd.f32 %v1344, %v1392
        %v1401 = vadd.f32 %v1345, %v1393
        %v1402 = vadd.f32 %v1346, %v1394
        %v1403 = vadd.f32 %v1347, %v1395
        %v1404 = vxor.u32 %v1396, 2147483648
        %v1405 = vxor.u32 %v1397, 2147483648
        %v1406 = vxor.u32 %v1398, 2147483648
        %v1407 = vxor.u32 %v1399, 2147483648
        %v1408 = vxor.u32 %v1400, 2147483648
        %v1409 = vxor.u32 %v1401, 2147483648
        %v1410 = vxor.u32 %v1402, 2147483648
        %v1411 = vxor.u32 %v1403, 2147483648
        %v1412 = vmul.f32 %v1404, 1.442695
        %v1413 = vpow.pop %v1412
        %v1414 = vmul.f32 %v1405, 1.442695
        %v1415 = vpow.pop %v1414
        %v1416 = vmul.f32 %v1406, 1.442695
        %v1417 = vpow.pop %v1416
        %v1418 = vmul.f32 %v1407, 1.442695
        %v1419 = vpow.pop %v1418
        %v1420 = vmul.f32 %v1408, 1.442695
        %v1421 = vpow.pop %v1420
        %v1422 = vmul.f32 %v1409, 1.442695
        %v1423 = vpow.pop %v1422
        %v1424 = vmul.f32 %v1410, 1.442695
        %v1425 = vpow.pop %v1424
        %v1426 = vmul.f32 %v1411, 1.442695
        %v1427 = vpow.pop %v1426
        %v1428 = vadd.f32 %v1413, 1.0
        %v1429 = vadd.f32 %v1415, 1.0
        %v1430 = vadd.f32 %v1417, 1.0
        %v1431 = vadd.f32 %v1419, 1.0
        %v1432 = vadd.f32 %v1421, 1.0
        %v1433 = vadd.f32 %v1423, 1.0
        %v1434 = vadd.f32 %v1425, 1.0
        %v1435 = vadd.f32 %v1427, 1.0
        %v1436 = vrcp.pop %v1428
        %v1437 = vmul.f32 1.0, %v1436
        %v1438 = vrcp.pop %v1429
        %v1439 = vmul.f32 1.0, %v1438
        %v1440 = vrcp.pop %v1430
        %v1441 = vmul.f32 1.0, %v1440
        %v1442 = vrcp.pop %v1431
        %v1443 = vmul.f32 1.0, %v1442
        %v1444 = vrcp.pop %v1432
        %v1445 = vmul.f32 1.0, %v1444
        %v1446 = vrcp.pop %v1433
        %v1447 = vmul.f32 1.0, %v1446
        %v1448 = vrcp.pop %v1434
        %v1449 = vmul.f32 1.0, %v1448
        %v1450 = vrcp.pop %v1435
        %v1451 = vmul.f32 1.0, %v1450
        %s1452 = scalar_lea.vmem %s5, 64
        %v1453 = vld [vmem:[%s1452] sm:$0xff]
        %v1454 = vld [vmem:[%s1452 + $0x8] sm:$0xff]
        %v1455 = vld [vmem:[%s1452 + $0x10] sm:$0xff]
        %v1456 = vld [vmem:[%s1452 + $0x18] sm:$0xff]
        %v1457 = vld [vmem:[%s1452 + $0x20] sm:$0xff]
        %v1458 = vld [vmem:[%s1452 + $0x28] sm:$0xff]
        %v1459 = vld [vmem:[%s1452 + $0x30] sm:$0xff]
        %v1460 = vld [vmem:[%s1452 + $0x38] sm:$0xff]
        %v1461 = vmul.f32 %v1453, %v1372
        %v1462 = vmul.f32 %v1454, %v1373
        %v1463 = vmul.f32 %v1455, %v1374
        %v1464 = vmul.f32 %v1456, %v1375
        %v1465 = vmul.f32 %v1457, %v1376
        %v1466 = vmul.f32 %v1458, %v1377
        %v1467 = vmul.f32 %v1459, %v1378
        %v1468 = vmul.f32 %v1460, %v1379
        %v1469 = vadd.f32 %v1348, %v1461
        %v1470 = vadd.f32 %v1349, %v1462
        %v1471 = vadd.f32 %v1350, %v1463
        %v1472 = vadd.f32 %v1351, %v1464
        %v1473 = vadd.f32 %v1352, %v1465
        %v1474 = vadd.f32 %v1353, %v1466
        %v1475 = vadd.f32 %v1354, %v1467
        %v1476 = vadd.f32 %v1355, %v1468
        %v1477 = vxor.u32 %v1469, 2147483648
        %v1478 = vxor.u32 %v1470, 2147483648
        %v1479 = vxor.u32 %v1471, 2147483648
        %v1480 = vxor.u32 %v1472, 2147483648
        %v1481 = vxor.u32 %v1473, 2147483648
        %v1482 = vxor.u32 %v1474, 2147483648
        %v1483 = vxor.u32 %v1475, 2147483648
        %v1484 = vxor.u32 %v1476, 2147483648
        %v1485 = vmul.f32 %v1477, 1.442695
        %v1486 = vpow.pop %v1485
        %v1487 = vmul.f32 %v1478, 1.442695
        %v1488 = vpow.pop %v1487
        %v1489 = vmul.f32 %v1479, 1.442695
        %v1490 = vpow.pop %v1489
        %v1491 = vmul.f32 %v1480, 1.442695
        %v1492 = vpow.pop %v1491
        %v1493 = vmul.f32 %v1481, 1.442695
        %v1494 = vpow.pop %v1493
        %v1495 = vmul.f32 %v1482, 1.442695
        %v1496 = vpow.pop %v1495
        %v1497 = vmul.f32 %v1483, 1.442695
        %v1498 = vpow.pop %v1497
        %v1499 = vmul.f32 %v1484, 1.442695
        %v1500 = vpow.pop %v1499
        %v1501 = vadd.f32 %v1486, 1.0
        %v1502 = vadd.f32 %v1488, 1.0
        %v1503 = vadd.f32 %v1490, 1.0
        %v1504 = vadd.f32 %v1492, 1.0
        %v1505 = vadd.f32 %v1494, 1.0
        %v1506 = vadd.f32 %v1496, 1.0
        %v1507 = vadd.f32 %v1498, 1.0
        %v1508 = vadd.f32 %v1500, 1.0
        %v1509 = vrcp.pop %v1501
        %v1510 = vmul.f32 1.0, %v1509
        %v1511 = vrcp.pop %v1502
        %v1512 = vmul.f32 1.0, %v1511
        %v1513 = vrcp.pop %v1503
        %v1514 = vmul.f32 1.0, %v1513
        %v1515 = vrcp.pop %v1504
        %v1516 = vmul.f32 1.0, %v1515
        %v1517 = vrcp.pop %v1505
        %v1518 = vmul.f32 1.0, %v1517
        %v1519 = vrcp.pop %v1506
        %v1520 = vmul.f32 1.0, %v1519
        %v1521 = vrcp.pop %v1507
        %v1522 = vmul.f32 1.0, %v1521
        %v1523 = vrcp.pop %v1508
        %v1524 = vmul.f32 1.0, %v1523
        %v1525 = vmul.f32 %v1510, %v1372
        %v1526 = vmul.f32 %v1512, %v1373
        %v1527 = vmul.f32 %v1514, %v1374
        %v1528 = vmul.f32 %v1516, %v1375
        %v1529 = vmul.f32 %v1518, %v1376
        %v1530 = vmul.f32 %v1520, %v1377
        %v1531 = vmul.f32 %v1522, %v1378
        %v1532 = vmul.f32 %v1524, %v1379
        %v1533 = vtanh.pop %v1356
        %v1534 = vtanh.pop %v1357
        %v1535 = vtanh.pop %v1358
        %v1536 = vtanh.pop %v1359
        %v1537 = vtanh.pop %v1360
        %v1538 = vtanh.pop %v1361
        %v1539 = vtanh.pop %v1362
        %v1540 = vtanh.pop %v1363
        %v1541 = vmul.f32 %v1437, %v1533
        %v1542 = vmul.f32 %v1439, %v1534
        %v1543 = vmul.f32 %v1441, %v1535
        %v1544 = vmul.f32 %v1443, %v1536
        %v1545 = vmul.f32 %v1445, %v1537
        %v1546 = vmul.f32 %v1447, %v1538
        %v1547 = vmul.f32 %v1449, %v1539
        %v1548 = vmul.f32 %v1451, %v1540
        %v1549 = vadd.f32 %v1525, %v1541
        %v1550 = vadd.f32 %v1526, %v1542
        %v1551 = vadd.f32 %v1527, %v1543
        %v1552 = vadd.f32 %v1528, %v1544
        %v1553 = vadd.f32 %v1529, %v1545
        %v1554 = vadd.f32 %v1530, %v1546
        %v1555 = vadd.f32 %v1531, %v1547
        %v1556 = vadd.f32 %v1532, %v1548
        %v1557 = vxor.u32 %v1364, 2147483648
        %v1558 = vxor.u32 %v1365, 2147483648
        %v1559 = vxor.u32 %v1366, 2147483648
        %v1560 = vxor.u32 %v1367, 2147483648
        %v1561 = vxor.u32 %v1368, 2147483648
        %v1562 = vxor.u32 %v1369, 2147483648
        %v1563 = vxor.u32 %v1370, 2147483648
        %v1564 = vxor.u32 %v1371, 2147483648
        %v1565 = vmul.f32 %v1557, 1.442695
        %v1566 = vpow.pop %v1565
        %v1567 = vmul.f32 %v1558, 1.442695
        %v1568 = vpow.pop %v1567
        %v1569 = vmul.f32 %v1559, 1.442695
        %v1570 = vpow.pop %v1569
        %v1571 = vmul.f32 %v1560, 1.442695
        %v1572 = vpow.pop %v1571
        %v1573 = vmul.f32 %v1561, 1.442695
        %v1574 = vpow.pop %v1573
        %v1575 = vmul.f32 %v1562, 1.442695
        %v1576 = vpow.pop %v1575
        %v1577 = vmul.f32 %v1563, 1.442695
        %v1578 = vpow.pop %v1577
        %v1579 = vmul.f32 %v1564, 1.442695
        %v1580 = vpow.pop %v1579
        %v1581 = vadd.f32 %v1566, 1.0
        %v1582 = vadd.f32 %v1568, 1.0
        %v1583 = vadd.f32 %v1570, 1.0
        %v1584 = vadd.f32 %v1572, 1.0
        %v1585 = vadd.f32 %v1574, 1.0
        %v1586 = vadd.f32 %v1576, 1.0
        %v1587 = vadd.f32 %v1578, 1.0
        %v1588 = vadd.f32 %v1580, 1.0
        %v1589 = vrcp.pop %v1581
        %v1590 = vmul.f32 1.0, %v1589
        %v1591 = vrcp.pop %v1582
        %v1592 = vmul.f32 1.0, %v1591
        %v1593 = vrcp.pop %v1583
        %v1594 = vmul.f32 1.0, %v1593
        %v1595 = vrcp.pop %v1584
        %v1596 = vmul.f32 1.0, %v1595
        %v1597 = vrcp.pop %v1585
        %v1598 = vmul.f32 1.0, %v1597
        %v1599 = vrcp.pop %v1586
        %v1600 = vmul.f32 1.0, %v1599
        %v1601 = vrcp.pop %v1587
        %v1602 = vmul.f32 1.0, %v1601
        %v1603 = vrcp.pop %v1588
        %v1604 = vmul.f32 1.0, %v1603
        %v1605 = vtanh.pop %v1549
        %v1606 = vtanh.pop %v1550
        %v1607 = vtanh.pop %v1551
        %v1608 = vtanh.pop %v1552
        %v1609 = vtanh.pop %v1553
        %v1610 = vtanh.pop %v1554
        %v1611 = vtanh.pop %v1555
        %v1612 = vtanh.pop %v1556
        %v1613 = vmul.f32 %v1590, %v1605
        %v1614 = vmul.f32 %v1592, %v1606
        %v1615 = vmul.f32 %v1594, %v1607
        %v1616 = vmul.f32 %v1596, %v1608
        %v1617 = vmul.f32 %v1598, %v1609
        %v1618 = vmul.f32 %v1600, %v1610
        %v1619 = vmul.f32 %v1602, %v1611
        %v1620 = vmul.f32 %v1604, %v1612
        %1621 = vst [vmem:[#allocation3 + $0x10] sm:$0xff] %v1549
        %1622 = vst [vmem:[#allocation3 + $0x18] sm:$0xff] %v1550
        %1623 = vst [vmem:[#allocation3 + $0x20] sm:$0xff] %v1551
        %1624 = vst [vmem:[#allocation3 + $0x28] sm:$0xff] %v1552
        %1625 = vst [vmem:[#allocation3 + $0x30] sm:$0xff] %v1553
        %1626 = vst [vmem:[#allocation3 + $0x38] sm:$0xff] %v1554
        %1627 = vst [vmem:[#allocation3 + $0x40] sm:$0xff] %v1555
        %1628 = vst [vmem:[#allocation3 + $0x48] sm:$0xff] %v1556
        %1629 = vrot.lane.b32.xlu0 %v1613, 17
        %v1630 = vpop.permute.xlu0 %1629
        %1631 = vrot.lane.b32.xlu0 %v1615, 17
        %v1632 = vpop.permute.xlu0 %1631
        %1633 = vrot.lane.b32.xlu0 %v1617, 17
        %v1634 = vpop.permute.xlu0 %1633
        %1635 = vrot.lane.b32.xlu0 %v1619, 17
        %v1636 = vpop.permute.xlu0 %1635
        %1637 = vrot.lane.b32.xlu0 %v1614, 17
        %v1638 = vpop.permute.xlu0 %1637
        %1639 = vrot.lane.b32.xlu0 %v1616, 17
        %v1640 = vpop.permute.xlu0 %1639
        %1641 = vrot.lane.b32.xlu0 %v1618, 17
        %v1642 = vpop.permute.xlu0 %1641
        %1643 = vrot.lane.b32.xlu0 %v1620, 17
        %v1644 = vpop.permute.xlu0 %1643
        %v1645 = vsel %vm654, %v1630, %v1638
        %v1646 = vsel %vm654, %v1632, %v1640
        %v1647 = vsel %vm654, %v1634, %v1642
        %v1648 = vsel %vm654, %v1636, %v1644
        %v1649 = vsel %vm654, %v1638, %v1630
        %v1650 = vsel %vm654, %v1640, %v1632
        %v1651 = vsel %vm654, %v1642, %v1634
        %v1652 = vsel %vm654, %v1644, %v1636
        %v1653 = vld [vmem:[%s1] sm:$0xff]
        %v1654 = vld [vmem:[%s1 + $0x8] sm:$0xff]
        %v1655 = vld [vmem:[%s1 + $0x10] sm:$0xff]
        %v1656 = vld [vmem:[%s1 + $0x18] sm:$0xff]
        %v1657 = vld [vmem:[%s1 + $0x20] sm:$0xff]
        %v1658 = vld [vmem:[%s1 + $0x28] sm:$0xff]
        %v1659 = vld [vmem:[%s1 + $0x30] sm:$0xff]
        %v1660 = vld [vmem:[%s1 + $0x38] sm:$0xff]
        %v1661 = vmul.f32 %v1649, %v1653
        %v1662 = vmul.f32 %v1645, %v1654
        %v1663 = vmul.f32 %v1650, %v1655
        %v1664 = vmul.f32 %v1646, %v1656
        %v1665 = vmul.f32 %v1651, %v1657
        %v1666 = vmul.f32 %v1647, %v1658
        %v1667 = vmul.f32 %v1652, %v1659
        %v1668 = vmul.f32 %v1648, %v1660
        %1669 = vst [vmem:[#allocation2 + $0x90] sm:$0xff] %v1661
        %1670 = vst [vmem:[#allocation2 + $0x98] sm:$0xff] %v1662
        %1671 = vst [vmem:[#allocation2 + $0xa0] sm:$0xff] %v1663
        %1672 = vst [vmem:[#allocation2 + $0xa8] sm:$0xff] %v1664
        %1673 = vst [vmem:[#allocation2 + $0xb0] sm:$0xff] %v1665
        %1674 = vst [vmem:[#allocation2 + $0xb8] sm:$0xff] %v1666
        %1675 = vst [vmem:[#allocation2 + $0xc0] sm:$0xff] %v1667
        %1676 = vst [vmem:[#allocation2 + $0xc8] sm:$0xff] %v1668
        %1677 = vrot.lane.b32.xlu0 %v1613, 16
        %v1678 = vpop.permute.xlu0 %1677
        %1679 = vrot.lane.b32.xlu0 %v1615, 16
        %v1680 = vpop.permute.xlu0 %1679
        %1681 = vrot.lane.b32.xlu0 %v1617, 16
        %v1682 = vpop.permute.xlu0 %1681
        %1683 = vrot.lane.b32.xlu0 %v1619, 16
        %v1684 = vpop.permute.xlu0 %1683
        %1685 = vrot.lane.b32.xlu0 %v1614, 16
        %v1686 = vpop.permute.xlu0 %1685
        %1687 = vrot.lane.b32.xlu0 %v1616, 16
        %v1688 = vpop.permute.xlu0 %1687
        %1689 = vrot.lane.b32.xlu0 %v1618, 16
        %v1690 = vpop.permute.xlu0 %1689
        %1691 = vrot.lane.b32.xlu0 %v1620, 16
        %v1692 = vpop.permute.xlu0 %1691
        %v1693 = vsel %vm667, %v1678, %v1686
        %v1694 = vsel %vm667, %v1680, %v1688
        %v1695 = vsel %vm667, %v1682, %v1690
        %v1696 = vsel %vm667, %v1684, %v1692
        %v1697 = vsel %vm667, %v1686, %v1678
        %v1698 = vsel %vm667, %v1688, %v1680
        %v1699 = vsel %vm667, %v1690, %v1682
        %v1700 = vsel %vm667, %v1692, %v1684
        %v1701 = vld [vmem:[%s670] sm:$0xff]
        %v1702 = vld [vmem:[%s670 + $0x8] sm:$0xff]
        %v1703 = vld [vmem:[%s670 + $0x10] sm:$0xff]
        %v1704 = vld [vmem:[%s670 + $0x18] sm:$0xff]
        %v1705 = vld [vmem:[%s670 + $0x20] sm:$0xff]
        %v1706 = vld [vmem:[%s670 + $0x28] sm:$0xff]
        %v1707 = vld [vmem:[%s670 + $0x30] sm:$0xff]
        %v1708 = vld [vmem:[%s670 + $0x38] sm:$0xff]
        %v1709 = vmul.f32 %v1697, %v1701
        %v1710 = vmul.f32 %v1693, %v1702
        %v1711 = vmul.f32 %v1698, %v1703
        %v1712 = vmul.f32 %v1694, %v1704
        %v1713 = vmul.f32 %v1699, %v1705
        %v1714 = vmul.f32 %v1695, %v1706
        %v1715 = vmul.f32 %v1700, %v1707
        %v1716 = vmul.f32 %v1696, %v1708
        %1717 = vst [vmem:[#allocation2 + $0xd0] sm:$0xff] %v1709
        %1718 = vst [vmem:[#allocation2 + $0xd8] sm:$0xff] %v1710
        %1719 = vst [vmem:[#allocation2 + $0xe0] sm:$0xff] %v1711
        %1720 = vst [vmem:[#allocation2 + $0xe8] sm:$0xff] %v1712
        %1721 = vst [vmem:[#allocation2 + $0xf0] sm:$0xff] %v1713
        %1722 = vst [vmem:[#allocation2 + $0xf8] sm:$0xff] %v1714
        %1723 = vst [vmem:[#allocation2 + $0x100] sm:$0xff] %v1715
        %1724 = vst [vmem:[#allocation2 + $0x108] sm:$0xff] %v1716
        %1725 = vrot.lane.b32.xlu0 %v1613, 15
        %v1726 = vpop.permute.xlu0 %1725
        %1727 = vrot.lane.b32.xlu0 %v1615, 15
        %v1728 = vpop.permute.xlu0 %1727
        %1729 = vrot.lane.b32.xlu0 %v1617, 15
        %v1730 = vpop.permute.xlu0 %1729
        %1731 = vrot.lane.b32.xlu0 %v1619, 15
        %v1732 = vpop.permute.xlu0 %1731
        %1733 = vrot.lane.b32.xlu0 %v1614, 15
        %v1734 = vpop.permute.xlu0 %1733
        %1735 = vrot.lane.b32.xlu0 %v1616, 15
        %v1736 = vpop.permute.xlu0 %1735
        %1737 = vrot.lane.b32.xlu0 %v1618, 15
        %v1738 = vpop.permute.xlu0 %1737
        %1739 = vrot.lane.b32.xlu0 %v1620, 15
        %v1740 = vpop.permute.xlu0 %1739
        %v1741 = vsel %vm681, %v1726, %v1734
        %v1742 = vsel %vm681, %v1728, %v1736
        %v1743 = vsel %vm681, %v1730, %v1738
        %v1744 = vsel %vm681, %v1732, %v1740
        %v1745 = vsel %vm681, %v1734, %v1726
        %v1746 = vsel %vm681, %v1736, %v1728
        %v1747 = vsel %vm681, %v1738, %v1730
        %v1748 = vsel %vm681, %v1740, %v1732
        %v1749 = vld [vmem:[%s684] sm:$0xff]
        %v1750 = vld [vmem:[%s684 + $0x8] sm:$0xff]
        %v1751 = vld [vmem:[%s684 + $0x10] sm:$0xff]
        %v1752 = vld [vmem:[%s684 + $0x18] sm:$0xff]
        %v1753 = vld [vmem:[%s684 + $0x20] sm:$0xff]
        %v1754 = vld [vmem:[%s684 + $0x28] sm:$0xff]
        %v1755 = vld [vmem:[%s684 + $0x30] sm:$0xff]
        %v1756 = vld [vmem:[%s684 + $0x38] sm:$0xff]
        %v1757 = vmul.f32 %v1745, %v1749
        %v1758 = vmul.f32 %v1741, %v1750
        %v1759 = vmul.f32 %v1746, %v1751
        %v1760 = vmul.f32 %v1742, %v1752
        %v1761 = vmul.f32 %v1747, %v1753
        %v1762 = vmul.f32 %v1743, %v1754
        %v1763 = vmul.f32 %v1748, %v1755
        %v1764 = vmul.f32 %v1744, %v1756
        %1765 = vst [vmem:[#allocation2 + $0x110] sm:$0xff] %v1757
        %1766 = vst [vmem:[#allocation2 + $0x118] sm:$0xff] %v1758
        %1767 = vst [vmem:[#allocation2 + $0x120] sm:$0xff] %v1759
        %1768 = vst [vmem:[#allocation2 + $0x128] sm:$0xff] %v1760
        %1769 = vst [vmem:[#allocation2 + $0x130] sm:$0xff] %v1761
        %1770 = vst [vmem:[#allocation2 + $0x138] sm:$0xff] %v1762
        %1771 = vst [vmem:[#allocation2 + $0x140] sm:$0xff] %v1763
        %1772 = vst [vmem:[#allocation2 + $0x148] sm:$0xff] %v1764
        %1773 = vrot.lane.b32.xlu0 %v1613, 1
        %v1774 = vpop.permute.xlu0 %1773
        %1775 = vrot.lane.b32.xlu0 %v1615, 1
        %v1776 = vpop.permute.xlu0 %1775
        %1777 = vrot.lane.b32.xlu0 %v1617, 1
        %v1778 = vpop.permute.xlu0 %1777
        %1779 = vrot.lane.b32.xlu0 %v1619, 1
        %v1780 = vpop.permute.xlu0 %1779
        %1781 = vrot.lane.b32.xlu0 %v1614, 1
        %v1782 = vpop.permute.xlu0 %1781
        %1783 = vrot.lane.b32.xlu0 %v1616, 1
        %v1784 = vpop.permute.xlu0 %1783
        %1785 = vrot.lane.b32.xlu0 %v1618, 1
        %v1786 = vpop.permute.xlu0 %1785
        %1787 = vrot.lane.b32.xlu0 %v1620, 1
        %v1788 = vpop.permute.xlu0 %1787
        %v1789 = vsel %vm695, %v1774, %v1782
        %v1790 = vsel %vm695, %v1776, %v1784
        %v1791 = vsel %vm695, %v1778, %v1786
        %v1792 = vsel %vm695, %v1780, %v1788
        %v1793 = vsel %vm695, %v1782, %v1774
        %v1794 = vsel %vm695, %v1784, %v1776
        %v1795 = vsel %vm695, %v1786, %v1778
        %v1796 = vsel %vm695, %v1788, %v1780
        %v1797 = vld [vmem:[%s698] sm:$0xff]
        %v1798 = vld [vmem:[%s698 + $0x8] sm:$0xff]
        %v1799 = vld [vmem:[%s698 + $0x10] sm:$0xff]
        %v1800 = vld [vmem:[%s698 + $0x18] sm:$0xff]
        %v1801 = vld [vmem:[%s698 + $0x20] sm:$0xff]
        %v1802 = vld [vmem:[%s698 + $0x28] sm:$0xff]
        %v1803 = vld [vmem:[%s698 + $0x30] sm:$0xff]
        %v1804 = vld [vmem:[%s698 + $0x38] sm:$0xff]
        %v1805 = vmul.f32 %v1793, %v1797
        %v1806 = vmul.f32 %v1789, %v1798
        %v1807 = vmul.f32 %v1794, %v1799
        %v1808 = vmul.f32 %v1790, %v1800
        %v1809 = vmul.f32 %v1795, %v1801
        %v1810 = vmul.f32 %v1791, %v1802
        %v1811 = vmul.f32 %v1796, %v1803
        %v1812 = vmul.f32 %v1792, %v1804
        %1813 = vst [vmem:[#allocation2 + $0x150] sm:$0xff] %v1805
        %1814 = vst [vmem:[#allocation2 + $0x158] sm:$0xff] %v1806
        %1815 = vst [vmem:[#allocation2 + $0x160] sm:$0xff] %v1807
        %1816 = vst [vmem:[#allocation2 + $0x168] sm:$0xff] %v1808
        %1817 = vst [vmem:[#allocation2 + $0x170] sm:$0xff] %v1809
        %1818 = vst [vmem:[#allocation2 + $0x178] sm:$0xff] %v1810
        %1819 = vst [vmem:[#allocation2 + $0x180] sm:$0xff] %v1811
        %1820 = vst [vmem:[#allocation2 + $0x188] sm:$0xff] %v1812
        %1821 = vst [vmem:[#allocation2 + $0x190] sm:$0xff] %v1613
        %1822 = vst [vmem:[#allocation2 + $0x198] sm:$0xff] %v1614
        %1823 = vst [vmem:[#allocation2 + $0x1a0] sm:$0xff] %v1615
        %1824 = vst [vmem:[#allocation2 + $0x1a8] sm:$0xff] %v1616
        %1825 = vst [vmem:[#allocation2 + $0x1b0] sm:$0xff] %v1617
        %1826 = vst [vmem:[#allocation2 + $0x1b8] sm:$0xff] %v1618
        %1827 = vst [vmem:[#allocation2 + $0x1c0] sm:$0xff] %v1619
        %1828 = vst [vmem:[#allocation2 + $0x1c8] sm:$0xff] %v1620
        %1829 = vrot.lane.b32.xlu0 %v1613, 127
        %v1830 = vpop.permute.xlu0 %1829
        %1831 = vrot.lane.b32.xlu0 %v1615, 127
        %v1832 = vpop.permute.xlu0 %1831
        %1833 = vrot.lane.b32.xlu0 %v1617, 127
        %v1834 = vpop.permute.xlu0 %1833
        %1835 = vrot.lane.b32.xlu0 %v1619, 127
        %v1836 = vpop.permute.xlu0 %1835
        %1837 = vrot.lane.b32.xlu0 %v1614, 127
        %v1838 = vpop.permute.xlu0 %1837
        %1839 = vrot.lane.b32.xlu0 %v1616, 127
        %v1840 = vpop.permute.xlu0 %1839
        %1841 = vrot.lane.b32.xlu0 %v1618, 127
        %v1842 = vpop.permute.xlu0 %1841
        %1843 = vrot.lane.b32.xlu0 %v1620, 127
        %v1844 = vpop.permute.xlu0 %1843
        %v1845 = vsel %vm711, %v1830, %v1838
        %v1846 = vsel %vm711, %v1832, %v1840
        %v1847 = vsel %vm711, %v1834, %v1842
        %v1848 = vsel %vm711, %v1836, %v1844
        %v1849 = vsel %vm711, %v1838, %v1830
        %v1850 = vsel %vm711, %v1840, %v1832
        %v1851 = vsel %vm711, %v1842, %v1834
        %v1852 = vsel %vm711, %v1844, %v1836
        %v1853 = vld [vmem:[%s714] sm:$0xff]
        %v1854 = vld [vmem:[%s714 + $0x8] sm:$0xff]
        %v1855 = vld [vmem:[%s714 + $0x10] sm:$0xff]
        %v1856 = vld [vmem:[%s714 + $0x18] sm:$0xff]
        %v1857 = vld [vmem:[%s714 + $0x20] sm:$0xff]
        %v1858 = vld [vmem:[%s714 + $0x28] sm:$0xff]
        %v1859 = vld [vmem:[%s714 + $0x30] sm:$0xff]
        %v1860 = vld [vmem:[%s714 + $0x38] sm:$0xff]
        %v1861 = vmul.f32 %v1845, %v1853
        %v1862 = vmul.f32 %v1849, %v1854
        %v1863 = vmul.f32 %v1846, %v1855
        %v1864 = vmul.f32 %v1850, %v1856
        %v1865 = vmul.f32 %v1847, %v1857
        %v1866 = vmul.f32 %v1851, %v1858
        %v1867 = vmul.f32 %v1848, %v1859
        %v1868 = vmul.f32 %v1852, %v1860
        %1869 = vst [vmem:[#allocation2 + $0x1d0] sm:$0xff] %v1861
        %1870 = vst [vmem:[#allocation2 + $0x1d8] sm:$0xff] %v1862
        %1871 = vst [vmem:[#allocation2 + $0x1e0] sm:$0xff] %v1863
        %1872 = vst [vmem:[#allocation2 + $0x1e8] sm:$0xff] %v1864
        %1873 = vst [vmem:[#allocation2 + $0x1f0] sm:$0xff] %v1865
        %1874 = vst [vmem:[#allocation2 + $0x1f8] sm:$0xff] %v1866
        %1875 = vst [vmem:[#allocation2 + $0x200] sm:$0xff] %v1867
        %1876 = vst [vmem:[#allocation2 + $0x208] sm:$0xff] %v1868
        %1877 = vrot.lane.b32.xlu0 %v1613, 113
        %v1878 = vpop.permute.xlu0 %1877
        %1879 = vrot.lane.b32.xlu0 %v1615, 113
        %v1880 = vpop.permute.xlu0 %1879
        %1881 = vrot.lane.b32.xlu0 %v1617, 113
        %v1882 = vpop.permute.xlu0 %1881
        %1883 = vrot.lane.b32.xlu0 %v1619, 113
        %v1884 = vpop.permute.xlu0 %1883
        %1885 = vrot.lane.b32.xlu0 %v1614, 113
        %v1886 = vpop.permute.xlu0 %1885
        %1887 = vrot.lane.b32.xlu0 %v1616, 113
        %v1888 = vpop.permute.xlu0 %1887
        %1889 = vrot.lane.b32.xlu0 %v1618, 113
        %v1890 = vpop.permute.xlu0 %1889
        %1891 = vrot.lane.b32.xlu0 %v1620, 113
        %v1892 = vpop.permute.xlu0 %1891
        %v1893 = vsel %vm725, %v1878, %v1886
        %v1894 = vsel %vm725, %v1880, %v1888
        %v1895 = vsel %vm725, %v1882, %v1890
        %v1896 = vsel %vm725, %v1884, %v1892
        %v1897 = vsel %vm725, %v1886, %v1878
        %v1898 = vsel %vm725, %v1888, %v1880
        %v1899 = vsel %vm725, %v1890, %v1882
        %v1900 = vsel %vm725, %v1892, %v1884
        %v1901 = vld [vmem:[%s728] sm:$0xff]
        %v1902 = vld [vmem:[%s728 + $0x8] sm:$0xff]
        %v1903 = vld [vmem:[%s728 + $0x10] sm:$0xff]
        %v1904 = vld [vmem:[%s728 + $0x18] sm:$0xff]
        %v1905 = vld [vmem:[%s728 + $0x20] sm:$0xff]
        %v1906 = vld [vmem:[%s728 + $0x28] sm:$0xff]
        %v1907 = vld [vmem:[%s728 + $0x30] sm:$0xff]
        %v1908 = vld [vmem:[%s728 + $0x38] sm:$0xff]
        %v1909 = vmul.f32 %v1893, %v1901
        %v1910 = vmul.f32 %v1897, %v1902
        %v1911 = vmul.f32 %v1894, %v1903
        %v1912 = vmul.f32 %v1898, %v1904
        %v1913 = vmul.f32 %v1895, %v1905
        %v1914 = vmul.f32 %v1899, %v1906
        %v1915 = vmul.f32 %v1896, %v1907
        %v1916 = vmul.f32 %v1900, %v1908
        %1917 = vst [vmem:[#allocation2 + $0x210] sm:$0xff] %v1909
        %1918 = vst [vmem:[#allocation2 + $0x218] sm:$0xff] %v1910
        %1919 = vst [vmem:[#allocation2 + $0x220] sm:$0xff] %v1911
        %1920 = vst [vmem:[#allocation2 + $0x228] sm:$0xff] %v1912
        %1921 = vst [vmem:[#allocation2 + $0x230] sm:$0xff] %v1913
        %1922 = vst [vmem:[#allocation2 + $0x238] sm:$0xff] %v1914
        %1923 = vst [vmem:[#allocation2 + $0x240] sm:$0xff] %v1915
        %1924 = vst [vmem:[#allocation2 + $0x248] sm:$0xff] %v1916
        %1925 = vrot.lane.b32.xlu0 %v1613, 112
        %v1926 = vpop.permute.xlu0 %1925
        %1927 = vrot.lane.b32.xlu0 %v1615, 112
        %v1928 = vpop.permute.xlu0 %1927
        %1929 = vrot.lane.b32.xlu0 %v1617, 112
        %v1930 = vpop.permute.xlu0 %1929
        %1931 = vrot.lane.b32.xlu0 %v1619, 112
        %v1932 = vpop.permute.xlu0 %1931
        %1933 = vrot.lane.b32.xlu0 %v1614, 112
        %v1934 = vpop.permute.xlu0 %1933
        %1935 = vrot.lane.b32.xlu0 %v1616, 112
        %v1936 = vpop.permute.xlu0 %1935
        %1937 = vrot.lane.b32.xlu0 %v1618, 112
        %v1938 = vpop.permute.xlu0 %1937
        %1939 = vrot.lane.b32.xlu0 %v1620, 112
        %v1940 = vpop.permute.xlu0 %1939
        %v1941 = vsel %vm739, %v1926, %v1934
        %v1942 = vsel %vm739, %v1928, %v1936
        %v1943 = vsel %vm739, %v1930, %v1938
        %v1944 = vsel %vm739, %v1932, %v1940
        %v1945 = vsel %vm739, %v1934, %v1926
        %v1946 = vsel %vm739, %v1936, %v1928
        %v1947 = vsel %vm739, %v1938, %v1930
        %v1948 = vsel %vm739, %v1940, %v1932
        %v1949 = vld [vmem:[%s742] sm:$0xff]
        %v1950 = vld [vmem:[%s742 + $0x8] sm:$0xff]
        %v1951 = vld [vmem:[%s742 + $0x10] sm:$0xff]
        %v1952 = vld [vmem:[%s742 + $0x18] sm:$0xff]
        %v1953 = vld [vmem:[%s742 + $0x20] sm:$0xff]
        %v1954 = vld [vmem:[%s742 + $0x28] sm:$0xff]
        %v1955 = vld [vmem:[%s742 + $0x30] sm:$0xff]
        %v1956 = vld [vmem:[%s742 + $0x38] sm:$0xff]
        %v1957 = vmul.f32 %v1941, %v1949
        %v1958 = vmul.f32 %v1945, %v1950
        %v1959 = vmul.f32 %v1942, %v1951
        %v1960 = vmul.f32 %v1946, %v1952
        %v1961 = vmul.f32 %v1943, %v1953
        %v1962 = vmul.f32 %v1947, %v1954
        %v1963 = vmul.f32 %v1944, %v1955
        %v1964 = vmul.f32 %v1948, %v1956
        %1965 = vst [vmem:[#allocation2 + $0x250] sm:$0xff] %v1957
        %1966 = vst [vmem:[#allocation2 + $0x258] sm:$0xff] %v1958
        %1967 = vst [vmem:[#allocation2 + $0x260] sm:$0xff] %v1959
        %1968 = vst [vmem:[#allocation2 + $0x268] sm:$0xff] %v1960
        %1969 = vst [vmem:[#allocation2 + $0x270] sm:$0xff] %v1961
        %1970 = vst [vmem:[#allocation2 + $0x278] sm:$0xff] %v1962
        %1971 = vst [vmem:[#allocation2 + $0x280] sm:$0xff] %v1963
        %1972 = vst [vmem:[#allocation2 + $0x288] sm:$0xff] %v1964
        %1973 = vrot.lane.b32.xlu0 %v1613, 111
        %v1974 = vpop.permute.xlu0 %1973
        %1975 = vrot.lane.b32.xlu0 %v1615, 111
        %v1976 = vpop.permute.xlu0 %1975
        %1977 = vrot.lane.b32.xlu0 %v1617, 111
        %v1978 = vpop.permute.xlu0 %1977
        %1979 = vrot.lane.b32.xlu0 %v1619, 111
        %v1980 = vpop.permute.xlu0 %1979
        %1981 = vrot.lane.b32.xlu0 %v1614, 111
        %v1982 = vpop.permute.xlu0 %1981
        %1983 = vrot.lane.b32.xlu0 %v1616, 111
        %v1984 = vpop.permute.xlu0 %1983
        %1985 = vrot.lane.b32.xlu0 %v1618, 111
        %v1986 = vpop.permute.xlu0 %1985
        %1987 = vrot.lane.b32.xlu0 %v1620, 111
        %v1988 = vpop.permute.xlu0 %1987
        %v1989 = vsel %vm753, %v1974, %v1982
        %v1990 = vsel %vm753, %v1976, %v1984
        %v1991 = vsel %vm753, %v1978, %v1986
        %v1992 = vsel %vm753, %v1980, %v1988
        %v1993 = vsel %vm753, %v1982, %v1974
        %v1994 = vsel %vm753, %v1984, %v1976
        %v1995 = vsel %vm753, %v1986, %v1978
        %v1996 = vsel %vm753, %v1988, %v1980
        %v1997 = vld [vmem:[%s756] sm:$0xff]
        %v1998 = vld [vmem:[%s756 + $0x8] sm:$0xff]
        %v1999 = vld [vmem:[%s756 + $0x10] sm:$0xff]
        %v2000 = vld [vmem:[%s756 + $0x18] sm:$0xff]
        %v2001 = vld [vmem:[%s756 + $0x20] sm:$0xff]
        %v2002 = vld [vmem:[%s756 + $0x28] sm:$0xff]
        %v2003 = vld [vmem:[%s756 + $0x30] sm:$0xff]
        %v2004 = vld [vmem:[%s756 + $0x38] sm:$0xff]
        %v2005 = vmul.f32 %v1989, %v1997
        %v2006 = vmul.f32 %v1993, %v1998
        %v2007 = vmul.f32 %v1990, %v1999
        %v2008 = vmul.f32 %v1994, %v2000
        %v2009 = vmul.f32 %v1991, %v2001
        %v2010 = vmul.f32 %v1995, %v2002
        %v2011 = vmul.f32 %v1992, %v2003
        %v2012 = vmul.f32 %v1996, %v2004
        %2013 = vst [vmem:[#allocation2 + $0x290] sm:$0xff] %v2005
        %2014 = vst [vmem:[#allocation2 + $0x298] sm:$0xff] %v2006
        %2015 = vst [vmem:[#allocation2 + $0x2a0] sm:$0xff] %v2007
        %2016 = vst [vmem:[#allocation2 + $0x2a8] sm:$0xff] %v2008
        %2017 = vst [vmem:[#allocation2 + $0x2b0] sm:$0xff] %v2009
        %2018 = vst [vmem:[#allocation2 + $0x2b8] sm:$0xff] %v2010
        %2019 = vst [vmem:[#allocation2 + $0x2c0] sm:$0xff] %v2011
        %2020 = vst [vmem:[#allocation2 + $0x2c8] sm:$0xff] %v2012
        %p2021 = scmp.eq.s32.totalorder %s20, 3
        // Predicated region
        $region84: #{conv_lstm_forward.3} parent=74 // pred_check
          %p2022 = pneg %p2021
        $region85: #{conv_lstm_forward.3} parent=74 // pred_check_branch
          %2024 = sbr.rel (%p2022) target = $region87
        $region86: #{conv_lstm_forward.3} parent=74 // pred_region
          %v2025 = vpack.c.bf16 %v1615, %v1613
          %v2026 = vpack.c.bf16 %v1616, %v1614
          %v2027 = vpack.c.bf16 %v1619, %v1617
          %v2028 = vpack.c.bf16 %v1620, %v1618
          %v2029 = vpack.c.bf16 %v1551, %v1549
          %v2030 = vpack.c.bf16 %v1552, %v1550
          %v2031 = vpack.c.bf16 %v1555, %v1553
          %v2032 = vpack.c.bf16 %v1556, %v1554
          %v2033 = vld [vmem:[%s7] sm:$0x3]
          %v2034 = vld [vmem:[%s8] sm:$0x7]
          %2036 = vset.pattern.permute.xlu0 0
          %2037 = vperm.xlu0 %2036, %v2034
          %v2038 = vpop.permute.xlu0 %2037
          %vm2040 = vcmask 523264
          %v2042 = vsel %vm2040, %v2033, 0
          %2044 = vmatprep.subr.bf16.mxu0 %v2026
          %2045 = vmatpush1.bf16.msra.mxu0 %v2025
          %2046 = vmatprep.subr.bf16.mxu0 %v2028
          %2047 = vmatpush1.bf16.msra.mxu0 %v2027
          %2048 = vmatprep.subr.bf16.mxu0 %v2030
          %2049 = vmatpush1.bf16.msra.mxu0 %v2029
          %2050 = vmatprep.subr.bf16.mxu0 %v2032
          %2051 = vmatpush1.bf16.msra.mxu0 %v2031
          %2052 = vmatprep.subr.bf16.mxu0 0
          %2053 = vmatpush1.bf16.msra.mxu0 0
          %2054 = vmatprep.subr.bf16.mxu0 0
          %2055 = vmatpush1.bf16.msra.mxu0 0
          %2056 = vmatprep.subr.bf16.mxu0 0
          %2057 = vmatpush1.bf16.msra.mxu0 0
          %2058 = vmatprep.subr.bf16.mxu0 0
          %2059 = vmatpush1.bf16.msra.mxu0 0
          %2060 = vmatprep.subr.bf16.mxu0 0
          %2061 = vmatpush1.bf16.msra.mxu0 0
          %2062 = vmatprep.subr.bf16.mxu0 0
          %2063 = vmatpush1.bf16.msra.mxu0 0
          %2064 = vmatprep.subr.bf16.mxu0 0
          %2065 = vmatpush1.bf16.msra.mxu0 0
          %2066 = vmatprep.subr.bf16.mxu0 0
          %2067 = vmatpush1.bf16.msra.mxu0 0
          %2068 = vmatprep.subr.bf16.mxu0 0
          %2069 = vmatpush1.bf16.msra.mxu0 0
          %2070 = vmatprep.subr.bf16.mxu0 0
          %2071 = vmatpush1.bf16.msra.mxu0 0
          %2072 = vmatprep.subr.bf16.mxu0 0
          %2073 = vmatpush1.bf16.msra.mxu0 0
          %2074 = vmatprep.subr.bf16.mxu0 0
          %2075 = vmatpush1.bf16.msra.mxu0 0
          %2076 = vmatprep.mubr.bf16.mxu0 0
          %2077 = vmatmul.mubr.bf16.gmra.mrb[0].mxu0 %v2042
          %v2078 = vpop.f32.mrb[0].mxu0
          %v2079 = vadd.f32 %v2038, %v2078
          %v2080 = vpop.f32.mrb[0].mxu0
          %v2081 = vadd.f32 %v2038, %v2080
          %v2082 = vpop.f32.mrb[0].mxu0
          %v2083 = vpop.f32.mrb[0].mxu0
          %2084 = vdwg.mxu0
          %v2087 = vcombine.low %v2079, %v2081
          %2089 = vst [vmem:[%s9] sm:$0x77] %v2087
        $region87: #{conv_lstm_forward.3} parent=74 // pred_fallthru
          _
        // Predicated region
        $region88: #{conv_lstm_forward.3} parent=74 // pred_check
          %p2090 = pneg %p227
        $region89: #{conv_lstm_forward.3} parent=74 // pred_check_branch
          %2092 = sbr.rel (%p2090) target = $region91
        $region90: #{conv_lstm_forward.3} parent=74 // pred_region
          _
        $region91: #{conv_lstm_forward.3} parent=74 // pred_fallthru
          _
        // Predicated region
        $region92: #{conv_lstm_forward.3} parent=74 // pred_check
          %p2093 = pneg %p227
        $region93: #{conv_lstm_forward.3} parent=74 // pred_check_branch
          %2095 = sbr.rel (%p2093) target = $region95
        $region94: #{conv_lstm_forward.3} parent=74 // pred_region
          _
        $region95: #{conv_lstm_forward.3} parent=74 // pred_fallthru
          _
      $region75: #{conv_lstm_forward.3} parent=5 // pred_fallthru
        _
      %p2096 = scmp.le.s32.totalorder 2, %s15
      // Predicated region
      $region96: #{conv_lstm_forward.3} parent=5 // pred_check
        %p2097 = pneg %p2096
      $region97: #{conv_lstm_forward.3} parent=5 // pred_check_branch
        %2099 = sbr.rel (%p2097) target = $region99
      $region98: #{conv_lstm_forward.3} parent=5 // pred_region
        %s2100 = ssub.s32 %s15, 2
      $region99: #{conv_lstm_forward.3} parent=5 // pred_fallthru
        _
    $region6: #{conv_lstm_forward.3} parent=1 // loop_footer
      %s19 = sadd.s32 1, %s15
    $region7: #{conv_lstm_forward.3} parent=1 // loop_footer_branch
      %14 = sbr.rel target = $region3
    $region8: #{conv_lstm_forward.3} parent=1 // loop_exit
      _

</llo_original>
